<compile_context>
chip_gen: v7x
topology: tpu7x:2x2x1
jax: 0.10.0
libtpu: 0.0.40
codegen_flags: <defaults>
</compile_context>

<pallas_src>
import functools
import math

import numpy as np
import jax
import jax.numpy as jnp
from jax import lax
from jax.experimental import pallas as pl
from jax.experimental.pallas import tpu as pltpu


VMEM_BUDGET = 56 * 1024 * 1024          # keep headroom under v7x's 64 MiB VMEM


# ----------------------------------------------------------------------------
# helpers
# ----------------------------------------------------------------------------
def _layer_norm(x, w, b, eps=1e-5):
    mean = jnp.mean(x, axis=-1, keepdims=True)
    var = jnp.mean(jnp.square(x - mean), axis=-1, keepdims=True)
    return (x - mean) * lax.rsqrt(var + eps) * w + b


def _mxu_row_target():
    """128-row fill target on 128-wide MXUs (v2..v5), 256 on v6e/v7x."""
    try:
        kind = jax.devices()[0].device_kind.lower()
    except Exception:
        return 256
    if any(t in kind for t in ("v2", "v3", "v4", "v5")):
        return 128
    return 256


def _vmem_estimate(Bb, Lv, Lc, D, H):
    """Rough per-step VMEM footprint (bytes) with single-buffered weights."""
    R = H * Lc
    weights = (3 * D * D + 8 * D * D) * 2                       # wk/wv/wo + w1/w2 (bf16)
    small = R * D * 2 + Lc * D * 4 + H * D * 4 + 12 * D * 4     # q_blk, query, sel, vec, b1
    io = 2 * Bb * Lv * D * 2 + 2 * Bb * Lc * D * 4 + 8 * Bb * Lv * 4
    act = (Bb * Lv * D * (2 * 4 + 2 * 2)                        # k/v f32 + bf16 casts
           + Bb * R * Lv * (3 * 4 + 2)                          # scores/attn/comb
           + Bb * R * D * (4 + 2)                               # wv_full + q broadcast
           + Bb * Lc * 4 * D * (4 + 2)                          # FFN hidden
           + 6 * Bb * Lc * D * 4)                               # tail temporaries
    return weights + small + io + act


def _pick_batch_block(B, Lv, Lc, D, H, target_rows):
    """Rows-per-grid-step: hit the generation's MXU row target on the FFN tail
    (Bb*Lc >= target), stay inside the VMEM budget, and prefer keeping >= 2
    grid steps when the batch allows it (v7x has 2 TensorCores)."""
    divs = [d for d in range(1, B + 1) if B % d == 0]
    feas = [d for d in divs if _vmem_estimate(d, Lv, Lc, D, H) <= VMEM_BUDGET] or [1]
    two_step = [d for d in feas if B // d >= 2]
    pool = two_step if two_step else feas
    hit = [d for d in pool if d * Lc >= target_rows]
    return min(hit) if hit else max(pool)


# ----------------------------------------------------------------------------
# Pallas kernel (Bb batch rows, all heads, per grid step)
# ----------------------------------------------------------------------------
def compressor_kernel(*args, num_heads, weight_alpha, use_extern,
                      batch_block, compute_dtype):
    if use_extern:
        (fv_ref, bias_ref, ew_ref, qblk_ref, query_ref, sel_ref,
         wk_ref, wv_ref, wo_ref, w1_ref, w2_ref, b1_ref, vec_ref, out_ref) = args
    else:
        (fv_ref, bias_ref, qblk_ref, query_ref, sel_ref,
         wk_ref, wv_ref, wo_ref, w1_ref, w2_ref, b1_ref, vec_ref, out_ref) = args
        ew_ref = None

    cdt = compute_dtype
    Bb = batch_block
    H = num_heads

    fv = fv_ref[...]                      # (Bb, Lv, D)  cdt (bf16)
    bias = bias_ref[...]                  # (Bb, 1, Lv)  f32 additive mask (0 / -1e9)
    q_blk = qblk_ref[...]                 # (H*Lc, D)    cdt, block-diagonal per head
    Lv, D = fv.shape[1], fv.shape[2]
    R = q_blk.shape[0]
    Lc = R // H
    hd = D // H
    scale = 1.0 / math.sqrt(hd)

    vec = vec_ref[...]                    # (8, D) f32 packed bias/LN vectors
    bk, bv_, bo = vec[0:1], vec[1:2], vec[2:3]
    ln1w, ln1b = vec[3:4], vec[4:5]
    b2 = vec[5:6]
    ln2w, ln2b = vec[6:7], vec[7:8]

    # ---- k / v projections for every (batch row, frame) at once -------------
    fv2d = fv.reshape(Bb * Lv, D)
    k2 = jnp.dot(fv2d, wk_ref[...], preferred_element_type=jnp.float32) + bk
    v2 = jnp.dot(fv2d, wv_ref[...], preferred_element_type=jnp.float32) + bv_
    k3 = k2.reshape(Bb, Lv, D).astype(cdt)
    v3 = v2.reshape(Bb, Lv, D).astype(cdt)

    # ---- attention: all batch rows & all heads in two batched matmuls -------
    # q_blk row (h, c) is q[c] restricted to head-h columns, so contracting the
    # full D reproduces the per-head hd-contraction exactly (the extra terms
    # are exact zeros); heads live in the row dim instead of a batch dim.
    qb = jnp.broadcast_to(q_blk[None], (Bb, R, D))          # hoisted once/step
    s = jnp.einsum("brd,bvd->brv", qb, k3,
                   preferred_element_type=jnp.float32) * scale       # (Bb, R, Lv)
    s = s + bias                                             # additive mask bias
    s = s - jnp.max(s, axis=-1, keepdims=True)
    e = jnp.exp(s)
    attn = e * pl.reciprocal(jnp.sum(e, axis=-1, keepdims=True), approx=True)
    if use_extern:
        # ew_ref already holds the masked, normalized, (1-alpha)-scaled row.
        comb = weight_alpha * attn + ew_ref[...]
        comb = comb * pl.reciprocal(
            jnp.sum(comb, axis=-1, keepdims=True) + 1e-9, approx=True)
    else:
        comb = attn

    wv_full = jnp.einsum("brv,bvd->brd", comb.astype(cdt), v3,
                         preferred_element_type=jnp.float32)          # (Bb, R, D)

    # Head recombine: row (h, c) of wv_full is valid only in head-h columns.
    # Select those columns and sum over the (leading) head axis — cheap VPU
    # mask+add, no concatenates, no masked partial stores.
    sel = sel_ref[...]                                                # (H, 1, D)
    wv = jnp.sum(wv_full.reshape(Bb, H, Lc, D) * sel[None], axis=1)   # (Bb, Lc, D)

    # ---- out_proj + residual MLP tail on all Bb*Lc rows at once -------------
    wv2d = wv.reshape(Bb * Lc, D).astype(cdt)
    attn_out = jnp.dot(wv2d, wo_ref[...],
                       preferred_element_type=jnp.float32) + bo       # (Bb*Lc, D)
    x3 = _layer_norm(attn_out.reshape(Bb, Lc, D) + query_ref[...][None],
                     ln1w, ln1b)                                      # (Bb, Lc, D)
    x2 = x3.reshape(Bb * Lc, D)
    h1 = jnp.maximum(
        jnp.dot(x2.astype(cdt), w1_ref[...],
                preferred_element_type=jnp.float32) + b1_ref[...], 0.0)
    ff = jnp.dot(h1.astype(cdt), w2_ref[...],
                 preferred_element_type=jnp.float32) + b2
    y = _layer_norm(x2 + ff, ln2w, ln2b)                              # (Bb*Lc, D)

    out_ref[...] = y.reshape(Bb, Lc, D).astype(out_ref.dtype)


# ----------------------------------------------------------------------------
# Wrapper
# ----------------------------------------------------------------------------
def compressor_with_external_weights(Fv, mask, extern_weight, params, *,
                                     num_heads=8, weight_alpha=0.5,
                                     compute_dtype=jnp.bfloat16,
                                     out_dtype=jnp.float32,
                                     batch_block=None):
    B, Lv, D = Fv.shape
    Lc = params["query"].shape[0]
    H = num_heads
    hd = D // H
    R = H * Lc
    cdt = compute_dtype
    use_extern = extern_weight is not None

    # ---- mask bias / extern-weight row prepared once in plain XLA -----------
    if mask is not None:
        mvalid = mask > 0
        bias = jnp.where(mvalid, 0.0, -1e9).astype(jnp.float32).reshape(B, 1, Lv)
    else:
        mvalid = None
        bias = jnp.zeros((B, 1, Lv), jnp.float32)
    if use_extern:
        ew = extern_weight.astype(jnp.float32)
        if mask is not None:              # torch only masks/normalizes when mask given
            ew = jnp.where(mvalid, ew, 0.0)
            ew = ew / (jnp.sum(ew, axis=-1, keepdims=True) + 1e-9)
        ew_scaled = ((1.0 - weight_alpha) * ew).reshape(B, 1, Lv)

    # ---- batch-invariant q projection + block-diagonal head layout ----------
    q_pre = (jnp.dot(params["query"].astype(cdt), params["wq"].astype(cdt),
                     preferred_element_type=jnp.float32) + params["bq"])   # (Lc, D)
    q4 = q_pre.reshape(Lc, H, hd)
    eye = jnp.eye(H, dtype=q_pre.dtype)
    # q_blk[h*Lc + c, g*hd + d] = q_pre[c, g*hd + d] * (h == g)
    q_blk = (q4[None, :, :, :] * eye[:, None, :, None]).reshape(R, D).astype(cdt)
    query_f32 = params["query"].astype(jnp.float32)

    # head-column selector for the recombine step
    head_sel = jnp.repeat(jnp.eye(H, dtype=jnp.float32), hd, axis=1).reshape(H, 1, D)

    # packed (1, D) bias / LayerNorm vectors -> one (8, D) input
    vec = jnp.concatenate(
        [params["bk"], params["bv"], params["bo"],
         params["ln1_w"], params["ln1_b"], params["b2"],
         params["ln2_w"], params["ln2_b"]], axis=0).astype(jnp.float32)

    # ---- rows per grid step --------------------------------------------------
    target = _mxu_row_target()
    if batch_block is None:
        batch_block = _pick_batch_block(B, Lv, Lc, D, H, target)
    assert B % batch_block == 0, "batch_block must divide batch size"
    Bb = batch_block
    grid = (B // Bb,)

    est = _vmem_estimate(Bb, Lv, Lc, D, H)
    vmem_limit = int(min(60 * 1024 * 1024, max(32 * 1024 * 1024, 2 * est)))

    kernel = functools.partial(
        compressor_kernel, num_heads=H, weight_alpha=weight_alpha,
        use_extern=use_extern, batch_block=Bb, compute_dtype=cdt)

    inputs = [Fv.astype(cdt), bias]
    if use_extern:
        inputs.append(ew_scaled)
    inputs += [q_blk, query_f32, head_sel,
               params["wk"].astype(cdt), params["wv"].astype(cdt),
               params["wo"].astype(cdt),
               params["w1"].astype(cdt), params["w2"].astype(cdt),
               params["b1"].astype(jnp.float32), vec]

    def _rep(shape, single_buffer):
        nd = len(shape)
        idx = lambda b, nd=nd: (0,) * nd
        if single_buffer:
            # replicated block (constant index_map): double-buffering is pure
            # VMEM waste -> single-buffer it.
            return pl.BlockSpec(shape, idx, pipeline_mode=pl.Buffered(1))
        return pl.BlockSpec(shape, idx)

    def _call(single_buffer_weights):
        rep = lambda shape: _rep(shape, single_buffer_weights)
        in_specs = [
            pl.BlockSpec((Bb, Lv, D), lambda b: (b, 0, 0)),    # Fv
            pl.BlockSpec((Bb, 1, Lv), lambda b: (b, 0, 0)),    # mask bias
        ]
        if use_extern:
            in_specs.append(pl.BlockSpec((Bb, 1, Lv), lambda b: (b, 0, 0)))
        in_specs += [
            rep((R, D)),                                       # q_blk (bf16)
            rep((Lc, D)),                                      # query (residual)
            rep((H, 1, D)),                                    # head selector
            rep((D, D)), rep((D, D)), rep((D, D)),             # wk, wv, wo
            rep((D, 4 * D)), rep((4 * D, D)),                  # w1, w2
            rep((1, 4 * D)),                                   # b1
            rep((8, D)),                                       # packed vectors
        ]
        return pl.pallas_call(
            kernel,
            grid=grid,
            in_specs=in_specs,
            out_specs=pl.BlockSpec((Bb, Lc, D), lambda b: (b, 0, 0)),
            out_shape=jax.ShapeDtypeStruct((B, Lc, D), out_dtype),
            compiler_params=pltpu.CompilerParams(
                dimension_semantics=("parallel",),
                vmem_limit_bytes=vmem_limit),
        )(*inputs)

    try:
        fv_compress = _call(True)
    except Exception:
        # Safety net for toolchains where pl.Buffered(1) is unavailable:
        # fall back to default (double-buffered) replicated blocks.
        fv_compress = _call(False)

    compress_mask = jnp.ones((B, Lc), dtype=bool)
    return fv_compress, compress_mask


# ----------------------------------------------------------------------------
# Deterministic parameter init (shapes follow the nn.Module; weights as (in,out))
# ----------------------------------------------------------------------------
def init_params(key, D, Lc):
    ks = jax.random.split(key, 13)

    def lin(kw, kb, fi, fo):
        w = jax.random.normal(kw, (fi, fo), jnp.float32) / math.sqrt(fi)
        b = jax.random.normal(kb, (1, fo), jnp.float32) * 0.02
        return w, b

    wq, bq = lin(ks[0], ks[1], D, D)
    wk, bk = lin(ks[2], ks[3], D, D)
    wv, bv = lin(ks[4], ks[5], D, D)
    wo, bo = lin(ks[6], ks[7], D, D)
    w1, b1 = lin(ks[8], ks[9], D, 4 * D)
    w2, b2 = lin(ks[10], ks[11], 4 * D, D)
    query = jax.random.normal(ks[12], (Lc, D), jnp.float32) / math.sqrt(D)
    return dict(
        query=query,
        wq=wq, bq=bq, wk=wk, bk=bk, wv=wv, bv=bv, wo=wo, bo=bo,
        ln1_w=jnp.ones((1, D), jnp.float32), ln1_b=jnp.zeros((1, D), jnp.float32),
        w1=w1, b1=b1, w2=w2, b2=b2,
        ln2_w=jnp.ones((1, D), jnp.float32), ln2_b=jnp.zeros((1, D), jnp.float32),
    )


# ----------------------------------------------------------------------------
# Pure-JAX reference (mirrors the PyTorch forward in eval mode, with the same
# bf16-operand / f32-accumulate matmul policy the kernel uses)
# ----------------------------------------------------------------------------
def reference_forward(Fv, mask, extern_weight, params, num_heads, weight_alpha,
                      compute_dtype=jnp.bfloat16):
    B, Lv, D = Fv.shape
    Lc = params["query"].shape[0]
    H = num_heads
    hd = D // H
    cdt = compute_dtype

    def mm(a, b):
        return jnp.dot(a.astype(cdt), b.astype(cdt),
                       preferred_element_type=jnp.float32)

    query = params["query"].astype(jnp.float32)                     # (Lc, D)
    q = mm(query, params["wq"]) + params["bq"]                      # (Lc, D)
    k = mm(Fv, params["wk"]) + params["bk"]                         # (B, Lv, D)
    v = mm(Fv, params["wv"]) + params["bv"]

    qh = q.reshape(Lc, H, hd).transpose(1, 0, 2)                    # (H, Lc, hd)
    kh = k.reshape(B, Lv, H, hd).transpose(0, 2, 1, 3)              # (B, H, Lv, hd)
    vh = v.reshape(B, Lv, H, hd).transpose(0, 2, 1, 3)

    scores = jnp.einsum("hcd,bhvd->bhcv", qh.astype(cdt), kh.astype(cdt),
                        preferred_element_type=jnp.float32) / math.sqrt(hd)
    if mask is not None:
        scores = jnp.where(mask[:, None, None, :] > 0, scores, -1e9)
    attn = jax.nn.softmax(scores, axis=-1)
    if extern_weight is not None:
        ewm = extern_weight.astype(jnp.float32)
        if mask is not None:
            ewm = jnp.where(mask > 0, ewm, 0.0)
            ewm = ewm / (jnp.sum(ewm, axis=-1, keepdims=True) + 1e-9)
        comb = weight_alpha * attn + (1 - weight_alpha) * ewm[:, None, None, :]
        comb = comb / (jnp.sum(comb, axis=-1, keepdims=True) + 1e-9)
    else:
        comb = attn
    wv = jnp.einsum("bhcv,bhvd->bhcd", comb.astype(cdt), vh.astype(cdt),
                    preferred_element_type=jnp.float32)
    wv = wv.transpose(0, 2, 1, 3).reshape(B, Lc, D)
    attn_out = mm(wv, params["wo"]) + params["bo"]

    def ln(x, w, b, eps=1e-5):
        m = x.mean(-1, keepdims=True)
        var = ((x - m) ** 2).mean(-1, keepdims=True)
        return (x - m) / jnp.sqrt(var + eps) * w + b

    x = ln(query[None, :, :] + attn_out, params["ln1_w"], params["ln1_b"])
    h1 = jnp.maximum(mm(x, params["w1"]) + params["b1"], 0.0)
    ff = mm(h1, params["w2"]) + params["b2"]
    out = ln(x + ff, params["ln2_w"], params["ln2_b"])
    return out, jnp.ones((B, Lc), dtype=bool)


# ----------------------------------------------------------------------------
if __name__ == "__main__":
    B, Lv, D, Lc, H = 2, 16, 64, 8, 8
    key = jax.random.PRNGKey(0)
    k_fv, k_ew, k_p = jax.random.split(key, 3)

    Fv = jax.random.normal(k_fv, (B, Lv, D), jnp.float32)
    extern_weight = jax.random.uniform(k_ew, (B, Lv), jnp.float32)
    # batch 0: all frames valid; batch 1: only 5 valid
    valid_lens = jnp.array([[Lv], [5]], dtype=jnp.int32)
    mask = (jnp.arange(Lv)[None, :] < valid_lens).astype(jnp.int32)

    params = init_params(k_p, D, Lc)

    # with external weights
    out_ew, cm_ew = compressor_with_external_weights(
        Fv, mask, extern_weight, params, num_heads=H, weight_alpha=0.5)
    # without external weights (input is dropped entirely, kernel specialized)
    out_no, cm_no = compressor_with_external_weights(
        Fv, mask, None, params, num_heads=H, weight_alpha=0.5)
    jax.block_until_ready(out_ew)
    jax.block_until_ready(out_no)

    ref_ew, rcm_ew = reference_forward(Fv, mask, extern_weight, params, H, 0.5)
    ref_no, rcm_no = reference_forward(Fv, mask, None, params, H, 0.5)

    assert out_ew.shape == (B, Lc, D) and cm_ew.shape == (B, Lc)
    assert out_no.shape == (B, Lc, D) and cm_no.shape == (B, Lc)
    assert np.allclose(np.asarray(out_ew), np.asarray(ref_ew),
                       atol=2e-2, rtol=2e-2), "extern-weight output mismatch"
    assert np.allclose(np.asarray(out_no), np.asarray(ref_no),
                       atol=2e-2, rtol=2e-2), "no-extern-weight output mismatch"
    assert np.array_equal(np.asarray(cm_ew), np.asarray(rcm_ew))
    assert np.array_equal(np.asarray(cm_no), np.asarray(rcm_no))

    print("KERNEL_OK")
</pallas_src>

<mosaic_0001>
module attributes {stable_mosaic.version = 11 : i64} {
  func.func @compressor_kernel(%arg0: i32, %arg1: memref<1x16x64xbf16, #tpu.memory_space<vmem>>, %arg2: memref<1x1x16xf32, #tpu.memory_space<vmem>>, %arg3: memref<1x1x16xf32, #tpu.memory_space<vmem>>, %arg4: memref<64x64xbf16, #tpu.memory_space<vmem>>, %arg5: memref<8x64xf32, #tpu.memory_space<vmem>>, %arg6: memref<8x1x64xf32, #tpu.memory_space<vmem>>, %arg7: memref<64x64xbf16, #tpu.memory_space<vmem>>, %arg8: memref<64x64xbf16, #tpu.memory_space<vmem>>, %arg9: memref<64x64xbf16, #tpu.memory_space<vmem>>, %arg10: memref<64x256xbf16, #tpu.memory_space<vmem>>, %arg11: memref<256x64xbf16, #tpu.memory_space<vmem>>, %arg12: memref<1x256xf32, #tpu.memory_space<vmem>>, %arg13: memref<8x64xf32, #tpu.memory_space<vmem>>, %arg14: memref<1x8x64xf32, #tpu.memory_space<vmem>>) attributes {dimension_semantics = [#tpu.dimension_semantics<parallel>], iteration_bounds = array<i64: 2>, scalar_prefetch = 0 : i64, scratch_operands = 0 : i64, tpu.core_type = #tpu.core_type<tc>, window_params = [{transform_indices = @transform_0, window_bounds = array<i64: 1, 16, 64>}, {transform_indices = @transform_1, window_bounds = array<i64: 1, 1, 16>}, {transform_indices = @transform_2, window_bounds = array<i64: 1, 1, 16>}, {pipeline_mode = #tpu.pipeline_mode<synchronous>, transform_indices = @transform_3, window_bounds = array<i64: 64, 64>}, {pipeline_mode = #tpu.pipeline_mode<synchronous>, transform_indices = @transform_4, window_bounds = array<i64: 8, 64>}, {pipeline_mode = #tpu.pipeline_mode<synchronous>, transform_indices = @transform_5, window_bounds = array<i64: 8, 1, 64>}, {pipeline_mode = #tpu.pipeline_mode<synchronous>, transform_indices = @transform_6, window_bounds = array<i64: 64, 64>}, {pipeline_mode = #tpu.pipeline_mode<synchronous>, transform_indices = @transform_7, window_bounds = array<i64: 64, 64>}, {pipeline_mode = #tpu.pipeline_mode<synchronous>, transform_indices = @transform_8, window_bounds = array<i64: 64, 64>}, {pipeline_mode = #tpu.pipeline_mode<synchronous>, transform_indices = @transform_9, window_bounds = array<i64: 64, 256>}, {pipeline_mode = #tpu.pipeline_mode<synchronous>, transform_indices = @transform_10, window_bounds = array<i64: 256, 64>}, {pipeline_mode = #tpu.pipeline_mode<synchronous>, transform_indices = @transform_11, window_bounds = array<i64: 1, 256>}, {pipeline_mode = #tpu.pipeline_mode<synchronous>, transform_indices = @transform_12, window_bounds = array<i64: 8, 64>}, {transform_indices = @transform_13, window_bounds = array<i64: 1, 8, 64>}]} {
    %c0 = arith.constant 0 : index
    %c0_0 = arith.constant 0 : index
    %c0_1 = arith.constant 0 : index
    %0 = vector.load %arg1[%c0, %c0_0, %c0_1] : memref<1x16x64xbf16, #tpu.memory_space<vmem>>, vector<1x16x64xbf16>
    %c0_2 = arith.constant 0 : index
    %c0_3 = arith.constant 0 : index
    %c0_4 = arith.constant 0 : index
    %1 = vector.load %arg2[%c0_2, %c0_3, %c0_4] : memref<1x1x16xf32, #tpu.memory_space<vmem>>, vector<1x1x16xf32>
    %c0_5 = arith.constant 0 : index
    %c0_6 = arith.constant 0 : index
    %2 = vector.load %arg4[%c0_5, %c0_6] : memref<64x64xbf16, #tpu.memory_space<vmem>>, vector<64x64xbf16>
    %c0_7 = arith.constant 0 : index
    %c0_8 = arith.constant 0 : index
    %3 = vector.load %arg13[%c0_7, %c0_8] : memref<8x64xf32, #tpu.memory_space<vmem>>, vector<8x64xf32>
    %4 = vector.extract_strided_slice %3 {offsets = [0, 0], sizes = [1, 64], strides = [1, 1]} : vector<8x64xf32> to vector<1x64xf32>
    %5 = vector.extract_strided_slice %3 {offsets = [1, 0], sizes = [1, 64], strides = [1, 1]} : vector<8x64xf32> to vector<1x64xf32>
    %6 = vector.extract_strided_slice %3 {offsets = [2, 0], sizes = [1, 64], strides = [1, 1]} : vector<8x64xf32> to vector<1x64xf32>
    %7 = vector.extract_strided_slice %3 {offsets = [3, 0], sizes = [1, 64], strides = [1, 1]} : vector<8x64xf32> to vector<1x64xf32>
    %8 = vector.extract_strided_slice %3 {offsets = [4, 0], sizes = [1, 64], strides = [1, 1]} : vector<8x64xf32> to vector<1x64xf32>
    %9 = vector.extract_strided_slice %3 {offsets = [5, 0], sizes = [1, 64], strides = [1, 1]} : vector<8x64xf32> to vector<1x64xf32>
    %10 = vector.extract_strided_slice %3 {offsets = [6, 0], sizes = [1, 64], strides = [1, 1]} : vector<8x64xf32> to vector<1x64xf32>
    %11 = vector.extract_strided_slice %3 {offsets = [7, 0], sizes = [1, 64], strides = [1, 1]} : vector<8x64xf32> to vector<1x64xf32>
    %12 = vector.shape_cast %0 : vector<1x16x64xbf16> to vector<16x64xbf16>
    %c0_9 = arith.constant 0 : index
    %c0_10 = arith.constant 0 : index
    %13 = vector.load %arg7[%c0_9, %c0_10] : memref<64x64xbf16, #tpu.memory_space<vmem>>, vector<64x64xbf16>
    %cst = arith.constant dense<0.000000e+00> : vector<16x64xf32>
    %14 = tpu.matmul %12, %13, %cst {dimension_numbers = #tpu.dot_dimension_numbers<[1], [0], [0], [1], [0, 0, 1, 1], [], []>} : vector<16x64xbf16>, vector<64x64xbf16>, vector<16x64xf32> -> vector<16x64xf32>
    %15 = vector.broadcast %4 : vector<1x64xf32> to vector<16x64xf32>
    %16 = arith.addf %14, %15 : vector<16x64xf32>
    %c0_11 = arith.constant 0 : index
    %c0_12 = arith.constant 0 : index
    %17 = vector.load %arg8[%c0_11, %c0_12] : memref<64x64xbf16, #tpu.memory_space<vmem>>, vector<64x64xbf16>
    %cst_13 = arith.constant dense<0.000000e+00> : vector<16x64xf32>
    %18 = tpu.matmul %12, %17, %cst_13 {dimension_numbers = #tpu.dot_dimension_numbers<[1], [0], [0], [1], [0, 0, 1, 1], [], []>} : vector<16x64xbf16>, vector<64x64xbf16>, vector<16x64xf32> -> vector<16x64xf32>
    %19 = vector.broadcast %5 : vector<1x64xf32> to vector<16x64xf32>
    %20 = arith.addf %18, %19 : vector<16x64xf32>
    %21 = vector.shape_cast %16 : vector<16x64xf32> to vector<1x16x64xf32>
    %22 = arith.truncf %21 : vector<1x16x64xf32> to vector<1x16x64xbf16>
    %23 = vector.shape_cast %20 : vector<16x64xf32> to vector<1x16x64xf32>
    %24 = arith.truncf %23 : vector<1x16x64xf32> to vector<1x16x64xbf16>
    %25 = vector.shape_cast %2 : vector<64x64xbf16> to vector<1x64x64xbf16>
    "tpu.trace_start"() <{level = 10 : i32, message = "brd,bvd->brv"}> : () -> ()
    %cst_14 = arith.constant dense<0.000000e+00> : vector<1x64x16xf32>
    %26 = tpu.matmul %25, %22, %cst_14 {dimension_numbers = #tpu.dot_dimension_numbers<[2], [2], [1], [1], [0, 0, 0, 1, 1, 1], [0], [0]>} : vector<1x64x64xbf16>, vector<1x16x64xbf16>, vector<1x64x16xf32> -> vector<1x64x16xf32>
    "tpu.trace_stop"() : () -> ()
    %cst_15 = arith.constant 0.353553385 : f32
    %27 = vector.broadcast %cst_15 : f32 to vector<1x64x16xf32>
    %28 = arith.mulf %26, %27 : vector<1x64x16xf32>
    %29 = vector.broadcast %1 : vector<1x1x16xf32> to vector<1x64x16xf32>
    %30 = arith.addf %28, %29 : vector<1x64x16xf32>
    %cst_16 = arith.constant dense<0xFF800000> : vector<1x64xf32>
    %31 = vector.multi_reduction <maximumf>, %30, %cst_16 [2] : vector<1x64x16xf32> to vector<1x64xf32>
    %32 = vector.shape_cast %31 : vector<1x64xf32> to vector<1x64x1xf32>
    %33 = vector.broadcast %32 : vector<1x64x1xf32> to vector<1x64x16xf32>
    %34 = arith.subf %30, %33 : vector<1x64x16xf32>
    %35 = math.exp %34 : vector<1x64x16xf32>
    %cst_17 = arith.constant dense<0.000000e+00> : vector<1x64xf32>
    %36 = vector.multi_reduction <add>, %35, %cst_17 [2] : vector<1x64x16xf32> to vector<1x64xf32>
    %37 = vector.shape_cast %36 : vector<1x64xf32> to vector<1x64x1xf32>
    %38 = tpu.reciprocal %37 {approx = true} : vector<1x64x1xf32> -> vector<1x64x1xf32>
    %39 = vector.broadcast %38 : vector<1x64x1xf32> to vector<1x64x16xf32>
    %40 = arith.mulf %35, %39 : vector<1x64x16xf32>
    %cst_18 = arith.constant 5.000000e-01 : f32
    %41 = vector.broadcast %cst_18 : f32 to vector<1x64x16xf32>
    %42 = arith.mulf %41, %40 : vector<1x64x16xf32>
    %c0_19 = arith.constant 0 : index
    %c0_20 = arith.constant 0 : index
    %c0_21 = arith.constant 0 : index
    %43 = vector.load %arg3[%c0_19, %c0_20, %c0_21] : memref<1x1x16xf32, #tpu.memory_space<vmem>>, vector<1x1x16xf32>
    %44 = vector.broadcast %43 : vector<1x1x16xf32> to vector<1x64x16xf32>
    %45 = arith.addf %42, %44 : vector<1x64x16xf32>
    %cst_22 = arith.constant dense<0.000000e+00> : vector<1x64xf32>
    %46 = vector.multi_reduction <add>, %45, %cst_22 [2] : vector<1x64x16xf32> to vector<1x64xf32>
    %47 = vector.shape_cast %46 : vector<1x64xf32> to vector<1x64x1xf32>
    %cst_23 = arith.constant 9.99999971E-10 : f32
    %48 = vector.broadcast %cst_23 : f32 to vector<1x64x1xf32>
    %49 = arith.addf %47, %48 : vector<1x64x1xf32>
    %50 = tpu.reciprocal %49 {approx = true} : vector<1x64x1xf32> -> vector<1x64x1xf32>
    %51 = vector.broadcast %50 : vector<1x64x1xf32> to vector<1x64x16xf32>
    %52 = arith.mulf %45, %51 : vector<1x64x16xf32>
    %53 = arith.truncf %52 : vector<1x64x16xf32> to vector<1x64x16xbf16>
    "tpu.trace_start"() <{level = 10 : i32, message = "brv,bvd->brd"}> : () -> ()
    %cst_24 = arith.constant dense<0.000000e+00> : vector<1x64x64xf32>
    %54 = tpu.matmul %53, %24, %cst_24 {dimension_numbers = #tpu.dot_dimension_numbers<[2], [1], [1], [2], [0, 0, 0, 1, 1, 2], [0], [0]>} : vector<1x64x16xbf16>, vector<1x16x64xbf16>, vector<1x64x64xf32> -> vector<1x64x64xf32>
    "tpu.trace_stop"() : () -> ()
    %c0_25 = arith.constant 0 : index
    %c0_26 = arith.constant 0 : index
    %c0_27 = arith.constant 0 : index
    %55 = vector.load %arg6[%c0_25, %c0_26, %c0_27] : memref<8x1x64xf32, #tpu.memory_space<vmem>>, vector<8x1x64xf32>
    %56 = vector.shape_cast %54 : vector<1x64x64xf32> to vector<1x8x8x64xf32>
    %57 = vector.shape_cast %55 : vector<8x1x64xf32> to vector<1x8x1x64xf32>
    %58 = vector.broadcast %57 : vector<1x8x1x64xf32> to vector<1x8x8x64xf32>
    %59 = arith.mulf %56, %58 : vector<1x8x8x64xf32>
    %cst_28 = arith.constant dense<0.000000e+00> : vector<1x8x64xf32>
    %60 = vector.multi_reduction <add>, %59, %cst_28 [1] : vector<1x8x8x64xf32> to vector<1x8x64xf32>
    %61 = vector.shape_cast %60 : vector<1x8x64xf32> to vector<8x64xf32>
    %62 = arith.truncf %61 : vector<8x64xf32> to vector<8x64xbf16>
    %c0_29 = arith.constant 0 : index
    %c0_30 = arith.constant 0 : index
    %63 = vector.load %arg9[%c0_29, %c0_30] : memref<64x64xbf16, #tpu.memory_space<vmem>>, vector<64x64xbf16>
    %cst_31 = arith.constant dense<0.000000e+00> : vector<8x64xf32>
    %64 = tpu.matmul %62, %63, %cst_31 {dimension_numbers = #tpu.dot_dimension_numbers<[1], [0], [0], [1], [0, 0, 1, 1], [], []>} : vector<8x64xbf16>, vector<64x64xbf16>, vector<8x64xf32> -> vector<8x64xf32>
    %65 = vector.broadcast %6 : vector<1x64xf32> to vector<8x64xf32>
    %66 = arith.addf %64, %65 : vector<8x64xf32>
    %67 = vector.shape_cast %66 : vector<8x64xf32> to vector<1x8x64xf32>
    %c0_32 = arith.constant 0 : index
    %c0_33 = arith.constant 0 : index
    %68 = vector.load %arg5[%c0_32, %c0_33] : memref<8x64xf32, #tpu.memory_space<vmem>>, vector<8x64xf32>
    %69 = vector.shape_cast %68 : vector<8x64xf32> to vector<1x8x64xf32>
    %70 = arith.addf %67, %69 : vector<1x8x64xf32>
    %cst_34 = arith.constant dense<0.000000e+00> : vector<1x8xf32>
    %71 = vector.multi_reduction <add>, %70, %cst_34 [2] : vector<1x8x64xf32> to vector<1x8xf32>
    %72 = vector.shape_cast %71 : vector<1x8xf32> to vector<1x8x1xf32>
    %cst_35 = arith.constant 6.400000e+01 : f32
    %73 = vector.broadcast %cst_35 : f32 to vector<1x8x1xf32>
    %74 = arith.divf %72, %73 : vector<1x8x1xf32>
    %75 = vector.broadcast %74 : vector<1x8x1xf32> to vector<1x8x64xf32>
    %76 = arith.subf %70, %75 : vector<1x8x64xf32>
    %77 = arith.mulf %76, %76 : vector<1x8x64xf32>
    %cst_36 = arith.constant dense<0.000000e+00> : vector<1x8xf32>
    %78 = vector.multi_reduction <add>, %77, %cst_36 [2] : vector<1x8x64xf32> to vector<1x8xf32>
    %79 = vector.shape_cast %78 : vector<1x8xf32> to vector<1x8x1xf32>
    %cst_37 = arith.constant 6.400000e+01 : f32
    %80 = vector.broadcast %cst_37 : f32 to vector<1x8x1xf32>
    %81 = arith.divf %79, %80 : vector<1x8x1xf32>
    %82 = vector.broadcast %74 : vector<1x8x1xf32> to vector<1x8x64xf32>
    %83 = arith.subf %70, %82 : vector<1x8x64xf32>
    %cst_38 = arith.constant 9.99999974E-6 : f32
    %84 = vector.broadcast %cst_38 : f32 to vector<1x8x1xf32>
    %85 = arith.addf %81, %84 : vector<1x8x1xf32>
    %86 = math.rsqrt %85 : vector<1x8x1xf32>
    %87 = vector.broadcast %86 : vector<1x8x1xf32> to vector<1x8x64xf32>
    %88 = arith.mulf %83, %87 : vector<1x8x64xf32>
    %89 = vector.shape_cast %7 : vector<1x64xf32> to vector<1x1x64xf32>
    %90 = vector.broadcast %89 : vector<1x1x64xf32> to vector<1x8x64xf32>
    %91 = arith.mulf %88, %90 : vector<1x8x64xf32>
    %92 = vector.shape_cast %8 : vector<1x64xf32> to vector<1x1x64xf32>
    %93 = vector.broadcast %92 : vector<1x1x64xf32> to vector<1x8x64xf32>
    %94 = arith.addf %91, %93 : vector<1x8x64xf32>
    %95 = vector.shape_cast %94 : vector<1x8x64xf32> to vector<8x64xf32>
    %96 = arith.truncf %95 : vector<8x64xf32> to vector<8x64xbf16>
    %c0_39 = arith.constant 0 : index
    %c0_40 = arith.constant 0 : index
    %97 = vector.load %arg10[%c0_39, %c0_40] : memref<64x256xbf16, #tpu.memory_space<vmem>>, vector<64x256xbf16>
    %cst_41 = arith.constant dense<0.000000e+00> : vector<8x256xf32>
    %98 = tpu.matmul %96, %97, %cst_41 {dimension_numbers = #tpu.dot_dimension_numbers<[1], [0], [0], [1], [0, 0, 1, 1], [], []>} : vector<8x64xbf16>, vector<64x256xbf16>, vector<8x256xf32> -> vector<8x256xf32>
    %c0_42 = arith.constant 0 : index
    %c0_43 = arith.constant 0 : index
    %99 = vector.load %arg12[%c0_42, %c0_43] : memref<1x256xf32, #tpu.memory_space<vmem>>, vector<1x256xf32>
    %100 = vector.broadcast %99 : vector<1x256xf32> to vector<8x256xf32>
    %101 = arith.addf %98, %100 : vector<8x256xf32>
    %cst_44 = arith.constant 0.000000e+00 : f32
    %102 = vector.broadcast %cst_44 : f32 to vector<8x256xf32>
    %103 = arith.maximumf %101, %102 : vector<8x256xf32>
    %104 = arith.truncf %103 : vector<8x256xf32> to vector<8x256xbf16>
    %c0_45 = arith.constant 0 : index
    %c0_46 = arith.constant 0 : index
    %105 = vector.load %arg11[%c0_45, %c0_46] : memref<256x64xbf16, #tpu.memory_space<vmem>>, vector<256x64xbf16>
    %cst_47 = arith.constant dense<0.000000e+00> : vector<8x64xf32>
    %106 = tpu.matmul %104, %105, %cst_47 {dimension_numbers = #tpu.dot_dimension_numbers<[1], [0], [0], [1], [0, 0, 1, 1], [], []>} : vector<8x256xbf16>, vector<256x64xbf16>, vector<8x64xf32> -> vector<8x64xf32>
    %107 = vector.broadcast %9 : vector<1x64xf32> to vector<8x64xf32>
    %108 = arith.addf %106, %107 : vector<8x64xf32>
    %109 = arith.addf %95, %108 : vector<8x64xf32>
    %cst_48 = arith.constant dense<0.000000e+00> : vector<8xf32>
    %110 = vector.multi_reduction <add>, %109, %cst_48 [1] : vector<8x64xf32> to vector<8xf32>
    %111 = vector.shape_cast %110 : vector<8xf32> to vector<8x1xf32>
    %cst_49 = arith.constant 6.400000e+01 : f32
    %112 = vector.broadcast %cst_49 : f32 to vector<8x1xf32>
    %113 = arith.divf %111, %112 : vector<8x1xf32>
    %114 = vector.broadcast %113 : vector<8x1xf32> to vector<8x64xf32>
    %115 = arith.subf %109, %114 : vector<8x64xf32>
    %116 = arith.mulf %115, %115 : vector<8x64xf32>
    %cst_50 = arith.constant dense<0.000000e+00> : vector<8xf32>
    %117 = vector.multi_reduction <add>, %116, %cst_50 [1] : vector<8x64xf32> to vector<8xf32>
    %118 = vector.shape_cast %117 : vector<8xf32> to vector<8x1xf32>
    %cst_51 = arith.constant 6.400000e+01 : f32
    %119 = vector.broadcast %cst_51 : f32 to vector<8x1xf32>
    %120 = arith.divf %118, %119 : vector<8x1xf32>
    %121 = vector.broadcast %113 : vector<8x1xf32> to vector<8x64xf32>
    %122 = arith.subf %109, %121 : vector<8x64xf32>
    %cst_52 = arith.constant 9.99999974E-6 : f32
    %123 = vector.broadcast %cst_52 : f32 to vector<8x1xf32>
    %124 = arith.addf %120, %123 : vector<8x1xf32>
    %125 = math.rsqrt %124 : vector<8x1xf32>
    %126 = vector.broadcast %125 : vector<8x1xf32> to vector<8x64xf32>
    %127 = arith.mulf %122, %126 : vector<8x64xf32>
    %128 = vector.broadcast %10 : vector<1x64xf32> to vector<8x64xf32>
    %129 = arith.mulf %127, %128 : vector<8x64xf32>
    %130 = vector.broadcast %11 : vector<1x64xf32> to vector<8x64xf32>
    %131 = arith.addf %129, %130 : vector<8x64xf32>
    %132 = vector.shape_cast %131 : vector<8x64xf32> to vector<1x8x64xf32>
    %c0_53 = arith.constant 0 : index
    %c0_54 = arith.constant 0 : index
    %c0_55 = arith.constant 0 : index
    %133 = vector.load %arg14[%c0_53, %c0_54, %c0_55] : memref<1x8x64xf32, #tpu.memory_space<vmem>>, vector<1x8x64xf32>
    tpu.vector_store %arg14[%c0_53, %c0_54, %c0_55], %132 {strides = array<i32>} : memref<1x8x64xf32, #tpu.memory_space<vmem>>, vector<1x8x64xf32>,
    return
  }
  func.func @transform_0(%arg0: i32) -> (i32, i32, i32) {
    %c0_i32 = arith.constant 0 : i32
    %c0_i32_0 = arith.constant 0 : i32
    %c0_i32_1 = arith.constant 0 : i32
    return %arg0, %c0_i32, %c0_i32_0 : i32, i32, i32
  }
  func.func @transform_1(%arg0: i32) -> (i32, i32, i32) {
    %c0_i32 = arith.constant 0 : i32
    %c0_i32_0 = arith.constant 0 : i32
    %c0_i32_1 = arith.constant 0 : i32
    return %arg0, %c0_i32, %c0_i32_0 : i32, i32, i32
  }
  func.func @transform_2(%arg0: i32) -> (i32, i32, i32) {
    %c0_i32 = arith.constant 0 : i32
    %c0_i32_0 = arith.constant 0 : i32
    %c0_i32_1 = arith.constant 0 : i32
    return %arg0, %c0_i32, %c0_i32_0 : i32, i32, i32
  }
  func.func @transform_3(%arg0: i32) -> (i32, i32) {
    %c0_i32 = arith.constant 0 : i32
    %c0_i32_0 = arith.constant 0 : i32
    %c0_i32_1 = arith.constant 0 : i32
    return %c0_i32, %c0_i32_0 : i32, i32
  }
  func.func @transform_4(%arg0: i32) -> (i32, i32) {
    %c0_i32 = arith.constant 0 : i32
    %c0_i32_0 = arith.constant 0 : i32
    %c0_i32_1 = arith.constant 0 : i32
    return %c0_i32, %c0_i32_0 : i32, i32
  }
  func.func @transform_5(%arg0: i32) -> (i32, i32, i32) {
    %c0_i32 = arith.constant 0 : i32
    %c0_i32_0 = arith.constant 0 : i32
    %c0_i32_1 = arith.constant 0 : i32
    %c0_i32_2 = arith.constant 0 : i32
    return %c0_i32, %c0_i32_0, %c0_i32_1 : i32, i32, i32
  }
  func.func @transform_6(%arg0: i32) -> (i32, i32) {
    %c0_i32 = arith.constant 0 : i32
    %c0_i32_0 = arith.constant 0 : i32
    %c0_i32_1 = arith.constant 0 : i32
    return %c0_i32, %c0_i32_0 : i32, i32
  }
  func.func @transform_7(%arg0: i32) -> (i32, i32) {
    %c0_i32 = arith.constant 0 : i32
    %c0_i32_0 = arith.constant 0 : i32
    %c0_i32_1 = arith.constant 0 : i32
    return %c0_i32, %c0_i32_0 : i32, i32
  }
  func.func @transform_8(%arg0: i32) -> (i32, i32) {
    %c0_i32 = arith.constant 0 : i32
    %c0_i32_0 = arith.constant 0 : i32
    %c0_i32_1 = arith.constant 0 : i32
    return %c0_i32, %c0_i32_0 : i32, i32
  }
  func.func @transform_9(%arg0: i32) -> (i32, i32) {
    %c0_i32 = arith.constant 0 : i32
    %c0_i32_0 = arith.constant 0 : i32
    %c0_i32_1 = arith.constant 0 : i32
    return %c0_i32, %c0_i32_0 : i32, i32
  }
  func.func @transform_10(%arg0: i32) -> (i32, i32) {
    %c0_i32 = arith.constant 0 : i32
    %c0_i32_0 = arith.constant 0 : i32
    %c0_i32_1 = arith.constant 0 : i32
    return %c0_i32, %c0_i32_0 : i32, i32
  }
  func.func @transform_11(%arg0: i32) -> (i32, i32) {
    %c0_i32 = arith.constant 0 : i32
    %c0_i32_0 = arith.constant 0 : i32
    %c0_i32_1 = arith.constant 0 : i32
    return %c0_i32, %c0_i32_0 : i32, i32
  }
  func.func @transform_12(%arg0: i32) -> (i32, i32) {
    %c0_i32 = arith.constant 0 : i32
    %c0_i32_0 = arith.constant 0 : i32
    %c0_i32_1 = arith.constant 0 : i32
    return %c0_i32, %c0_i32_0 : i32, i32
  }
  func.func @transform_13(%arg0: i32) -> (i32, i32, i32) {
    %c0_i32 = arith.constant 0 : i32
    %c0_i32_0 = arith.constant 0 : i32
    %c0_i32_1 = arith.constant 0 : i32
    return %arg0, %c0_i32, %c0_i32_0 : i32, i32, i32
  }
}

module attributes {stable_mosaic.version = 11 : i64} {
  func.func @compressor_kernel(%arg0: i32, %arg1: memref<1x16x64xbf16, #tpu.memory_space<vmem>>, %arg2: memref<1x1x16xf32, #tpu.memory_space<vmem>>, %arg3: memref<1x1x16xf32, #tpu.memory_space<vmem>>, %arg4: memref<64x64xbf16, #tpu.memory_space<vmem>>, %arg5: memref<8x64xf32, #tpu.memory_space<vmem>>, %arg6: memref<8x1x64xf32, #tpu.memory_space<vmem>>, %arg7: memref<64x64xbf16, #tpu.memory_space<vmem>>, %arg8: memref<64x64xbf16, #tpu.memory_space<vmem>>, %arg9: memref<64x64xbf16, #tpu.memory_space<vmem>>, %arg10: memref<64x256xbf16, #tpu.memory_space<vmem>>, %arg11: memref<256x64xbf16, #tpu.memory_space<vmem>>, %arg12: memref<1x256xf32, #tpu.memory_space<vmem>>, %arg13: memref<8x64xf32, #tpu.memory_space<vmem>>, %arg14: memref<1x8x64xf32, #tpu.memory_space<vmem>>) attributes {dimension_semantics = [#tpu.dimension_semantics<parallel>], iteration_bounds = array<i64: 2>, scalar_prefetch = 0 : i64, scratch_operands = 0 : i64, tpu.core_type = #tpu.core_type<tc>, window_params = [{transform_indices = @transform_0, window_bounds = array<i64: 1, 16, 64>}, {transform_indices = @transform_1, window_bounds = array<i64: 1, 1, 16>}, {transform_indices = @transform_2, window_bounds = array<i64: 1, 1, 16>}, {pipeline_mode = #tpu.pipeline_mode<synchronous>, transform_indices = @transform_3, window_bounds = array<i64: 64, 64>}, {pipeline_mode = #tpu.pipeline_mode<synchronous>, transform_indices = @transform_4, window_bounds = array<i64: 8, 64>}, {pipeline_mode = #tpu.pipeline_mode<synchronous>, transform_indices = @transform_5, window_bounds = array<i64: 8, 1, 64>}, {pipeline_mode = #tpu.pipeline_mode<synchronous>, transform_indices = @transform_6, window_bounds = array<i64: 64, 64>}, {pipeline_mode = #tpu.pipeline_mode<synchronous>, transform_indices = @transform_7, window_bounds = array<i64: 64, 64>}, {pipeline_mode = #tpu.pipeline_mode<synchronous>, transform_indices = @transform_8, window_bounds = array<i64: 64, 64>}, {pipeline_mode = #tpu.pipeline_mode<synchronous>, transform_indices = @transform_9, window_bounds = array<i64: 64, 256>}, {pipeline_mode = #tpu.pipeline_mode<synchronous>, transform_indices = @transform_10, window_bounds = array<i64: 256, 64>}, {pipeline_mode = #tpu.pipeline_mode<synchronous>, transform_indices = @transform_11, window_bounds = array<i64: 1, 256>}, {pipeline_mode = #tpu.pipeline_mode<synchronous>, transform_indices = @transform_12, window_bounds = array<i64: 8, 64>}, {transform_indices = @transform_13, window_bounds = array<i64: 1, 8, 64>}]} {
    %c0 = arith.constant 0 : index
    %c0_0 = arith.constant 0 : index
    %c0_1 = arith.constant 0 : index
    %0 = vector.load %arg1[%c0, %c0_0, %c0_1] : memref<1x16x64xbf16, #tpu.memory_space<vmem>>, vector<1x16x64xbf16>
    %c0_2 = arith.constant 0 : index
    %c0_3 = arith.constant 0 : index
    %c0_4 = arith.constant 0 : index
    %1 = vector.load %arg2[%c0_2, %c0_3, %c0_4] : memref<1x1x16xf32, #tpu.memory_space<vmem>>, vector<1x1x16xf32>
    %c0_5 = arith.constant 0 : index
    %c0_6 = arith.constant 0 : index
    %2 = vector.load %arg4[%c0_5, %c0_6] : memref<64x64xbf16, #tpu.memory_space<vmem>>, vector<64x64xbf16>
    %c0_7 = arith.constant 0 : index
    %c0_8 = arith.constant 0 : index
    %3 = vector.load %arg13[%c0_7, %c0_8] : memref<8x64xf32, #tpu.memory_space<vmem>>, vector<8x64xf32>
    %4 = vector.extract_strided_slice %3 {offsets = [0, 0], sizes = [1, 64], strides = [1, 1]} : vector<8x64xf32> to vector<1x64xf32>
    %5 = vector.extract_strided_slice %3 {offsets = [1, 0], sizes = [1, 64], strides = [1, 1]} : vector<8x64xf32> to vector<1x64xf32>
    %6 = vector.extract_strided_slice %3 {offsets = [2, 0], sizes = [1, 64], strides = [1, 1]} : vector<8x64xf32> to vector<1x64xf32>
    %7 = vector.extract_strided_slice %3 {offsets = [3, 0], sizes = [1, 64], strides = [1, 1]} : vector<8x64xf32> to vector<1x64xf32>
    %8 = vector.extract_strided_slice %3 {offsets = [4, 0], sizes = [1, 64], strides = [1, 1]} : vector<8x64xf32> to vector<1x64xf32>
    %9 = vector.extract_strided_slice %3 {offsets = [5, 0], sizes = [1, 64], strides = [1, 1]} : vector<8x64xf32> to vector<1x64xf32>
    %10 = vector.extract_strided_slice %3 {offsets = [6, 0], sizes = [1, 64], strides = [1, 1]} : vector<8x64xf32> to vector<1x64xf32>
    %11 = vector.extract_strided_slice %3 {offsets = [7, 0], sizes = [1, 64], strides = [1, 1]} : vector<8x64xf32> to vector<1x64xf32>
    %12 = vector.shape_cast %0 : vector<1x16x64xbf16> to vector<16x64xbf16>
    %c0_9 = arith.constant 0 : index
    %c0_10 = arith.constant 0 : index
    %13 = vector.load %arg7[%c0_9, %c0_10] : memref<64x64xbf16, #tpu.memory_space<vmem>>, vector<64x64xbf16>
    %cst = arith.constant dense<0.000000e+00> : vector<16x64xf32>
    %14 = tpu.matmul %12, %13, %cst {dimension_numbers = #tpu.dot_dimension_numbers<[1], [0], [0], [1], [0, 0, 1, 1], [], []>} : vector<16x64xbf16>, vector<64x64xbf16>, vector<16x64xf32> -> vector<16x64xf32>
    %15 = vector.broadcast %4 : vector<1x64xf32> to vector<16x64xf32>
    %16 = arith.addf %14, %15 : vector<16x64xf32>
    %c0_11 = arith.constant 0 : index
    %c0_12 = arith.constant 0 : index
    %17 = vector.load %arg8[%c0_11, %c0_12] : memref<64x64xbf16, #tpu.memory_space<vmem>>, vector<64x64xbf16>
    %cst_13 = arith.constant dense<0.000000e+00> : vector<16x64xf32>
    %18 = tpu.matmul %12, %17, %cst_13 {dimension_numbers = #tpu.dot_dimension_numbers<[1], [0], [0], [1], [0, 0, 1, 1], [], []>} : vector<16x64xbf16>, vector<64x64xbf16>, vector<16x64xf32> -> vector<16x64xf32>
    %19 = vector.broadcast %5 : vector<1x64xf32> to vector<16x64xf32>
    %20 = arith.addf %18, %19 : vector<16x64xf32>
    %21 = vector.shape_cast %16 : vector<16x64xf32> to vector<1x16x64xf32>
    %22 = arith.truncf %21 : vector<1x16x64xf32> to vector<1x16x64xbf16>
    %23 = vector.shape_cast %20 : vector<16x64xf32> to vector<1x16x64xf32>
    %24 = arith.truncf %23 : vector<1x16x64xf32> to vector<1x16x64xbf16>
    %25 = vector.shape_cast %2 : vector<64x64xbf16> to vector<1x64x64xbf16>
    "tpu.trace_start"() <{level = 10 : i32, message = "brd,bvd->brv"}> : () -> ()
    %cst_14 = arith.constant dense<0.000000e+00> : vector<1x64x16xf32>
    %26 = tpu.matmul %25, %22, %cst_14 {dimension_numbers = #tpu.dot_dimension_numbers<[2], [2], [1], [1], [0, 0, 0, 1, 1, 1], [0], [0]>} : vector<1x64x64xbf16>, vector<1x16x64xbf16>, vector<1x64x16xf32> -> vector<1x64x16xf32>
    "tpu.trace_stop"() : () -> ()
    %cst_15 = arith.constant 0.353553385 : f32
    %27 = vector.broadcast %cst_15 : f32 to vector<1x64x16xf32>
    %28 = arith.mulf %26, %27 : vector<1x64x16xf32>
    %29 = vector.broadcast %1 : vector<1x1x16xf32> to vector<1x64x16xf32>
    %30 = arith.addf %28, %29 : vector<1x64x16xf32>
    %cst_16 = arith.constant dense<0xFF800000> : vector<1x64xf32>
    %31 = vector.multi_reduction <maximumf>, %30, %cst_16 [2] : vector<1x64x16xf32> to vector<1x64xf32>
    %32 = vector.shape_cast %31 : vector<1x64xf32> to vector<1x64x1xf32>
    %33 = vector.broadcast %32 : vector<1x64x1xf32> to vector<1x64x16xf32>
    %34 = arith.subf %30, %33 : vector<1x64x16xf32>
    %35 = math.exp %34 : vector<1x64x16xf32>
    %cst_17 = arith.constant dense<0.000000e+00> : vector<1x64xf32>
    %36 = vector.multi_reduction <add>, %35, %cst_17 [2] : vector<1x64x16xf32> to vector<1x64xf32>
    %37 = vector.shape_cast %36 : vector<1x64xf32> to vector<1x64x1xf32>
    %38 = tpu.reciprocal %37 {approx = true} : vector<1x64x1xf32> -> vector<1x64x1xf32>
    %39 = vector.broadcast %38 : vector<1x64x1xf32> to vector<1x64x16xf32>
    %40 = arith.mulf %35, %39 : vector<1x64x16xf32>
    %cst_18 = arith.constant 5.000000e-01 : f32
    %41 = vector.broadcast %cst_18 : f32 to vector<1x64x16xf32>
    %42 = arith.mulf %41, %40 : vector<1x64x16xf32>
    %c0_19 = arith.constant 0 : index
    %c0_20 = arith.constant 0 : index
    %c0_21 = arith.constant 0 : index
    %43 = vector.load %arg3[%c0_19, %c0_20, %c0_21] : memref<1x1x16xf32, #tpu.memory_space<vmem>>, vector<1x1x16xf32>
    %44 = vector.broadcast %43 : vector<1x1x16xf32> to vector<1x64x16xf32>
    %45 = arith.addf %42, %44 : vector<1x64x16xf32>
    %cst_22 = arith.constant dense<0.000000e+00> : vector<1x64xf32>
    %46 = vector.multi_reduction <add>, %45, %cst_22 [2] : vector<1x64x16xf32> to vector<1x64xf32>
    %47 = vector.shape_cast %46 : vector<1x64xf32> to vector<1x64x1xf32>
    %cst_23 = arith.constant 9.99999971E-10 : f32
    %48 = vector.broadcast %cst_23 : f32 to vector<1x64x1xf32>
    %49 = arith.addf %47, %48 : vector<1x64x1xf32>
    %50 = tpu.reciprocal %49 {approx = true} : vector<1x64x1xf32> -> vector<1x64x1xf32>
    %51 = vector.broadcast %50 : vector<1x64x1xf32> to vector<1x64x16xf32>
    %52 = arith.mulf %45, %51 : vector<1x64x16xf32>
    %53 = arith.truncf %52 : vector<1x64x16xf32> to vector<1x64x16xbf16>
    "tpu.trace_start"() <{level = 10 : i32, message = "brv,bvd->brd"}> : () -> ()
    %cst_24 = arith.constant dense<0.000000e+00> : vector<1x64x64xf32>
    %54 = tpu.matmul %53, %24, %cst_24 {dimension_numbers = #tpu.dot_dimension_numbers<[2], [1], [1], [2], [0, 0, 0, 1, 1, 2], [0], [0]>} : vector<1x64x16xbf16>, vector<1x16x64xbf16>, vector<1x64x64xf32> -> vector<1x64x64xf32>
    "tpu.trace_stop"() : () -> ()
    %c0_25 = arith.constant 0 : index
    %c0_26 = arith.constant 0 : index
    %c0_27 = arith.constant 0 : index
    %55 = vector.load %arg6[%c0_25, %c0_26, %c0_27] : memref<8x1x64xf32, #tpu.memory_space<vmem>>, vector<8x1x64xf32>
    %56 = vector.shape_cast %54 : vector<1x64x64xf32> to vector<1x8x8x64xf32>
    %57 = vector.shape_cast %55 : vector<8x1x64xf32> to vector<1x8x1x64xf32>
    %58 = vector.broadcast %57 : vector<1x8x1x64xf32> to vector<1x8x8x64xf32>
    %59 = arith.mulf %56, %58 : vector<1x8x8x64xf32>
    %cst_28 = arith.constant dense<0.000000e+00> : vector<1x8x64xf32>
    %60 = vector.multi_reduction <add>, %59, %cst_28 [1] : vector<1x8x8x64xf32> to vector<1x8x64xf32>
    %61 = vector.shape_cast %60 : vector<1x8x64xf32> to vector<8x64xf32>
    %62 = arith.truncf %61 : vector<8x64xf32> to vector<8x64xbf16>
    %c0_29 = arith.constant 0 : index
    %c0_30 = arith.constant 0 : index
    %63 = vector.load %arg9[%c0_29, %c0_30] : memref<64x64xbf16, #tpu.memory_space<vmem>>, vector<64x64xbf16>
    %cst_31 = arith.constant dense<0.000000e+00> : vector<8x64xf32>
    %64 = tpu.matmul %62, %63, %cst_31 {dimension_numbers = #tpu.dot_dimension_numbers<[1], [0], [0], [1], [0, 0, 1, 1], [], []>} : vector<8x64xbf16>, vector<64x64xbf16>, vector<8x64xf32> -> vector<8x64xf32>
    %65 = vector.broadcast %6 : vector<1x64xf32> to vector<8x64xf32>
    %66 = arith.addf %64, %65 : vector<8x64xf32>
    %67 = vector.shape_cast %66 : vector<8x64xf32> to vector<1x8x64xf32>
    %c0_32 = arith.constant 0 : index
    %c0_33 = arith.constant 0 : index
    %68 = vector.load %arg5[%c0_32, %c0_33] : memref<8x64xf32, #tpu.memory_space<vmem>>, vector<8x64xf32>
    %69 = vector.shape_cast %68 : vector<8x64xf32> to vector<1x8x64xf32>
    %70 = arith.addf %67, %69 : vector<1x8x64xf32>
    %cst_34 = arith.constant dense<0.000000e+00> : vector<1x8xf32>
    %71 = vector.multi_reduction <add>, %70, %cst_34 [2] : vector<1x8x64xf32> to vector<1x8xf32>
    %72 = vector.shape_cast %71 : vector<1x8xf32> to vector<1x8x1xf32>
    %cst_35 = arith.constant 6.400000e+01 : f32
    %73 = vector.broadcast %cst_35 : f32 to vector<1x8x1xf32>
    %74 = arith.divf %72, %73 : vector<1x8x1xf32>
    %75 = vector.broadcast %74 : vector<1x8x1xf32> to vector<1x8x64xf32>
    %76 = arith.subf %70, %75 : vector<1x8x64xf32>
    %77 = arith.mulf %76, %76 : vector<1x8x64xf32>
    %cst_36 = arith.constant dense<0.000000e+00> : vector<1x8xf32>
    %78 = vector.multi_reduction <add>, %77, %cst_36 [2] : vector<1x8x64xf32> to vector<1x8xf32>
    %79 = vector.shape_cast %78 : vector<1x8xf32> to vector<1x8x1xf32>
    %cst_37 = arith.constant 6.400000e+01 : f32
    %80 = vector.broadcast %cst_37 : f32 to vector<1x8x1xf32>
    %81 = arith.divf %79, %80 : vector<1x8x1xf32>
    %82 = vector.broadcast %74 : vector<1x8x1xf32> to vector<1x8x64xf32>
    %83 = arith.subf %70, %82 : vector<1x8x64xf32>
    %cst_38 = arith.constant 9.99999974E-6 : f32
    %84 = vector.broadcast %cst_38 : f32 to vector<1x8x1xf32>
    %85 = arith.addf %81, %84 : vector<1x8x1xf32>
    %86 = math.rsqrt %85 : vector<1x8x1xf32>
    %87 = vector.broadcast %86 : vector<1x8x1xf32> to vector<1x8x64xf32>
    %88 = arith.mulf %83, %87 : vector<1x8x64xf32>
    %89 = vector.shape_cast %7 : vector<1x64xf32> to vector<1x1x64xf32>
    %90 = vector.broadcast %89 : vector<1x1x64xf32> to vector<1x8x64xf32>
    %91 = arith.mulf %88, %90 : vector<1x8x64xf32>
    %92 = vector.shape_cast %8 : vector<1x64xf32> to vector<1x1x64xf32>
    %93 = vector.broadcast %92 : vector<1x1x64xf32> to vector<1x8x64xf32>
    %94 = arith.addf %91, %93 : vector<1x8x64xf32>
    %95 = vector.shape_cast %94 : vector<1x8x64xf32> to vector<8x64xf32>
    %96 = arith.truncf %95 : vector<8x64xf32> to vector<8x64xbf16>
    %c0_39 = arith.constant 0 : index
    %c0_40 = arith.constant 0 : index
    %97 = vector.load %arg10[%c0_39, %c0_40] : memref<64x256xbf16, #tpu.memory_space<vmem>>, vector<64x256xbf16>
    %cst_41 = arith.constant dense<0.000000e+00> : vector<8x256xf32>
    %98 = tpu.matmul %96, %97, %cst_41 {dimension_numbers = #tpu.dot_dimension_numbers<[1], [0], [0], [1], [0, 0, 1, 1], [], []>} : vector<8x64xbf16>, vector<64x256xbf16>, vector<8x256xf32> -> vector<8x256xf32>
    %c0_42 = arith.constant 0 : index
    %c0_43 = arith.constant 0 : index
    %99 = vector.load %arg12[%c0_42, %c0_43] : memref<1x256xf32, #tpu.memory_space<vmem>>, vector<1x256xf32>
    %100 = vector.broadcast %99 : vector<1x256xf32> to vector<8x256xf32>
    %101 = arith.addf %98, %100 : vector<8x256xf32>
    %cst_44 = arith.constant 0.000000e+00 : f32
    %102 = vector.broadcast %cst_44 : f32 to vector<8x256xf32>
    %103 = arith.maximumf %101, %102 : vector<8x256xf32>
    %104 = arith.truncf %103 : vector<8x256xf32> to vector<8x256xbf16>
    %c0_45 = arith.constant 0 : index
    %c0_46 = arith.constant 0 : index
    %105 = vector.load %arg11[%c0_45, %c0_46] : memref<256x64xbf16, #tpu.memory_space<vmem>>, vector<256x64xbf16>
    %cst_47 = arith.constant dense<0.000000e+00> : vector<8x64xf32>
    %106 = tpu.matmul %104, %105, %cst_47 {dimension_numbers = #tpu.dot_dimension_numbers<[1], [0], [0], [1], [0, 0, 1, 1], [], []>} : vector<8x256xbf16>, vector<256x64xbf16>, vector<8x64xf32> -> vector<8x64xf32>
    %107 = vector.broadcast %9 : vector<1x64xf32> to vector<8x64xf32>
    %108 = arith.addf %106, %107 : vector<8x64xf32>
    %109 = arith.addf %95, %108 : vector<8x64xf32>
    %cst_48 = arith.constant dense<0.000000e+00> : vector<8xf32>
    %110 = vector.multi_reduction <add>, %109, %cst_48 [1] : vector<8x64xf32> to vector<8xf32>
    %111 = vector.shape_cast %110 : vector<8xf32> to vector<8x1xf32>
    %cst_49 = arith.constant 6.400000e+01 : f32
    %112 = vector.broadcast %cst_49 : f32 to vector<8x1xf32>
    %113 = arith.divf %111, %112 : vector<8x1xf32>
    %114 = vector.broadcast %113 : vector<8x1xf32> to vector<8x64xf32>
    %115 = arith.subf %109, %114 : vector<8x64xf32>
    %116 = arith.mulf %115, %115 : vector<8x64xf32>
    %cst_50 = arith.constant dense<0.000000e+00> : vector<8xf32>
    %117 = vector.multi_reduction <add>, %116, %cst_50 [1] : vector<8x64xf32> to vector<8xf32>
    %118 = vector.shape_cast %117 : vector<8xf32> to vector<8x1xf32>
    %cst_51 = arith.constant 6.400000e+01 : f32
    %119 = vector.broadcast %cst_51 : f32 to vector<8x1xf32>
    %120 = arith.divf %118, %119 : vector<8x1xf32>
    %121 = vector.broadcast %113 : vector<8x1xf32> to vector<8x64xf32>
    %122 = arith.subf %109, %121 : vector<8x64xf32>
    %cst_52 = arith.constant 9.99999974E-6 : f32
    %123 = vector.broadcast %cst_52 : f32 to vector<8x1xf32>
    %124 = arith.addf %120, %123 : vector<8x1xf32>
    %125 = math.rsqrt %124 : vector<8x1xf32>
    %126 = vector.broadcast %125 : vector<8x1xf32> to vector<8x64xf32>
    %127 = arith.mulf %122, %126 : vector<8x64xf32>
    %128 = vector.broadcast %10 : vector<1x64xf32> to vector<8x64xf32>
    %129 = arith.mulf %127, %128 : vector<8x64xf32>
    %130 = vector.broadcast %11 : vector<1x64xf32> to vector<8x64xf32>
    %131 = arith.addf %129, %130 : vector<8x64xf32>
    %132 = vector.shape_cast %131 : vector<8x64xf32> to vector<1x8x64xf32>
    %c0_53 = arith.constant 0 : index
    %c0_54 = arith.constant 0 : index
    %c0_55 = arith.constant 0 : index
    %133 = vector.load %arg14[%c0_53, %c0_54, %c0_55] : memref<1x8x64xf32, #tpu.memory_space<vmem>>, vector<1x8x64xf32>
    tpu.vector_store %arg14[%c0_53, %c0_54, %c0_55], %132 {strides = array<i32>} : memref<1x8x64xf32, #tpu.memory_space<vmem>>, vector<1x8x64xf32>,
    return
  }
  func.func @transform_0(%arg0: i32) -> (i32, i32, i32) {
    %c0_i32 = arith.constant 0 : i32
    %c0_i32_0 = arith.constant 0 : i32
    %c0_i32_1 = arith.constant 0 : i32
    return %arg0, %c0_i32, %c0_i32_0 : i32, i32, i32
  }
  func.func @transform_1(%arg0: i32) -> (i32, i32, i32) {
    %c0_i32 = arith.constant 0 : i32
    %c0_i32_0 = arith.constant 0 : i32
    %c0_i32_1 = arith.constant 0 : i32
    return %arg0, %c0_i32, %c0_i32_0 : i32, i32, i32
  }
  func.func @transform_2(%arg0: i32) -> (i32, i32, i32) {
    %c0_i32 = arith.constant 0 : i32
    %c0_i32_0 = arith.constant 0 : i32
    %c0_i32_1 = arith.constant 0 : i32
    return %arg0, %c0_i32, %c0_i32_0 : i32, i32, i32
  }
  func.func @transform_3(%arg0: i32) -> (i32, i32) {
    %c0_i32 = arith.constant 0 : i32
    %c0_i32_0 = arith.constant 0 : i32
    %c0_i32_1 = arith.constant 0 : i32
    return %c0_i32, %c0_i32_0 : i32, i32
  }
  func.func @transform_4(%arg0: i32) -> (i32, i32) {
    %c0_i32 = arith.constant 0 : i32
    %c0_i32_0 = arith.constant 0 : i32
    %c0_i32_1 = arith.constant 0 : i32
    return %c0_i32, %c0_i32_0 : i32, i32
  }
  func.func @transform_5(%arg0: i32) -> (i32, i32, i32) {
    %c0_i32 = arith.constant 0 : i32
    %c0_i32_0 = arith.constant 0 : i32
    %c0_i32_1 = arith.constant 0 : i32
    %c0_i32_2 = arith.constant 0 : i32
    return %c0_i32, %c0_i32_0, %c0_i32_1 : i32, i32, i32
  }
  func.func @transform_6(%arg0: i32) -> (i32, i32) {
    %c0_i32 = arith.constant 0 : i32
    %c0_i32_0 = arith.constant 0 : i32
    %c0_i32_1 = arith.constant 0 : i32
    return %c0_i32, %c0_i32_0 : i32, i32
  }
  func.func @transform_7(%arg0: i32) -> (i32, i32) {
    %c0_i32 = arith.constant 0 : i32
    %c0_i32_0 = arith.constant 0 : i32
    %c0_i32_1 = arith.constant 0 : i32
    return %c0_i32, %c0_i32_0 : i32, i32
  }
  func.func @transform_8(%arg0: i32) -> (i32, i32) {
    %c0_i32 = arith.constant 0 : i32
    %c0_i32_0 = arith.constant 0 : i32
    %c0_i32_1 = arith.constant 0 : i32
    return %c0_i32, %c0_i32_0 : i32, i32
  }
  func.func @transform_9(%arg0: i32) -> (i32, i32) {
    %c0_i32 = arith.constant 0 : i32
    %c0_i32_0 = arith.constant 0 : i32
    %c0_i32_1 = arith.constant 0 : i32
    return %c0_i32, %c0_i32_0 : i32, i32
  }
  func.func @transform_10(%arg0: i32) -> (i32, i32) {
    %c0_i32 = arith.constant 0 : i32
    %c0_i32_0 = arith.constant 0 : i32
    %c0_i32_1 = arith.constant 0 : i32
    return %c0_i32, %c0_i32_0 : i32, i32
  }
  func.func @transform_11(%arg0: i32) -> (i32, i32) {
    %c0_i32 = arith.constant 0 : i32
    %c0_i32_0 = arith.constant 0 : i32
    %c0_i32_1 = arith.constant 0 : i32
    return %c0_i32, %c0_i32_0 : i32, i32
  }
  func.func @transform_12(%arg0: i32) -> (i32, i32) {
    %c0_i32 = arith.constant 0 : i32
    %c0_i32_0 = arith.constant 0 : i32
    %c0_i32_1 = arith.constant 0 : i32
    return %c0_i32, %c0_i32_0 : i32, i32
  }
  func.func @transform_13(%arg0: i32) -> (i32, i32, i32) {
    %c0_i32 = arith.constant 0 : i32
    %c0_i32_0 = arith.constant 0 : i32
    %c0_i32_1 = arith.constant 0 : i32
    return %arg0, %c0_i32, %c0_i32_0 : i32, i32, i32
  }
}

</mosaic_0001>

<llo_original>
// kernel: tpu_custom_call.1
$region0: #{tpu_custom_call.1}
  #allocation0 [shape = 'u32[]', space=smem, size = 0x4, offset = 0x4, fixed_abs, tag = 'smem constant byte address 0x4 - core index']
  #allocation1 [shape = 'u32[144,128]{1,0:T(1,128)}', space=vmem, size = 0x12000, scoped, tag = 'internal scratch']
  %s0 = inlined_call_operand.hbm [shape: bf16[2,16,64], index: 0, kind: input, shape index: {}]
  %s1 = inlined_call_operand.vmem [shape: f32[2,1,16], index: 1, kind: input, shape index: {}]
  %s2 = inlined_call_operand.hbm [shape: f32[2,1,16], index: 2, kind: input, shape index: {}]
  %s3 = inlined_call_operand.vmem [shape: bf16[64,64], index: 3, kind: input, shape index: {}]
  %s4 = inlined_call_operand.vmem [shape: f32[8,64], index: 4, kind: input, shape index: {}]
  %s5 = inlined_call_operand.vmem [shape: f32[8,1,64], index: 5, kind: input, shape index: {}]
  %s6 = inlined_call_operand.vmem [shape: bf16[64,64], index: 6, kind: input, shape index: {}]
  %s7 = inlined_call_operand.vmem [shape: bf16[64,64], index: 7, kind: input, shape index: {}]
  %s8 = inlined_call_operand.vmem [shape: bf16[64,64], index: 8, kind: input, shape index: {}]
  %s9 = inlined_call_operand.vmem [shape: bf16[64,256], index: 9, kind: input, shape index: {}]
  %s10 = inlined_call_operand.vmem [shape: bf16[256,64], index: 10, kind: input, shape index: {}]
  %s11 = inlined_call_operand.vmem [shape: f32[1,256], index: 11, kind: input, shape index: {}]
  %s12 = inlined_call_operand.vmem [shape: f32[8,64], index: 12, kind: input, shape index: {}]
  %s13 = inlined_call_operand.hbm [shape: f32[2,8,64], index: 13, kind: output, shape index: {}]
  %s14 = sld [smem:[#allocation0]]
  $region93: #{tpu_custom_call.1} parent=0
    _
  %s16 = ssub.s32 1, %s14
  %s17 = scalar_select 0, %s16, %s14
  $region1: #{tpu_custom_call.1} parent=0
    #allocation2 [shape = 'u8[8192]{0}', space=vmem, size = 0x2000, scoped, tag = 'input window, operand 0']
    #allocation3 [shape = 's32[2]{0}', space=sflag, size = 0x8, scoped, tag = 'scoped memory for tpu_custom_call.1']
    #allocation4 [shape = 's32[2]{0}', space=sflag, size = 0x8, scoped, tag = 'scoped memory for tpu_custom_call.1']
    #allocation5 [shape = 'u8[1024]{0}', space=vmem, size = 0x400, scoped, tag = 'input window, operand 2']
    #allocation6 [shape = 's32[2]{0}', space=sflag, size = 0x8, scoped, tag = 'scoped memory for tpu_custom_call.1']
    #allocation7 [shape = 'u8[8192]{0}', space=vmem, size = 0x2000, scoped, tag = 'output window, operand 0']
    %18 = vsyncpa [#allocation3], 0
    %s19 = scalar_lea.sflag [#allocation3], 1
    %20 = vsyncpa %s19, 0
    %21 = vsyncpa [#allocation6], 0
    %s22 = scalar_lea.sflag [#allocation6], 1
    %23 = vsyncpa %s22, 0
    %24 = vsyncpa [#allocation4], 0
    %s25 = scalar_lea.sflag [#allocation4], 1
    %26 = vsyncpa %s25, 0
    loop: start=0, step=1, limit=4
    $region2: #{tpu_custom_call.1} parent=1 // loop_pre_header
      _
    $region3: #{tpu_custom_call.1} parent=1 // loop_header
      %s28 = sphi 0, %s32
      %p29 = scmp.ge.s32.totalorder %s28, 4
      %s38 = sphi 0, %s40
      %s41 = sphi 0, %s38
      %s42 = sphi 0, %s41
      %s58 = sphi 0, %s42
      %s64 = sphi 0, %s66
      %s67 = sphi 0, %s64
      %s68 = sphi 0, %s67
      %s84 = sphi 0, %s68
      %s90 = sphi 0, %s92
      %s93 = sphi 0, %s90
      %s94 = sphi 0, %s93
      %s110 = sphi 0, %s94
      %s114 = sphi 0, %s114
      %s116 = sphi 0, %s114
      %s117 = sphi 0, %s116
      %s131 = sphi 0, %s117
      %s135 = sphi 0, %s135
      %s137 = sphi 0, %s135
      %s138 = sphi 0, %s137
      %s152 = sphi 0, %s138
      %s156 = sphi 0, %s156
      %s158 = sphi 0, %s156
      %s159 = sphi 0, %s158
      %s173 = sphi 0, %s159
      %s177 = sphi 0, %s177
      %s179 = sphi 0, %s177
      %s180 = sphi 0, %s179
      %s194 = sphi 0, %s180
      %s198 = sphi 0, %s198
      %s200 = sphi 0, %s198
      %s201 = sphi 0, %s200
      %s215 = sphi 0, %s201
      %s219 = sphi 0, %s219
      %s221 = sphi 0, %s219
      %s222 = sphi 0, %s221
      %s236 = sphi 0, %s222
      %s240 = sphi 0, %s240
      %s242 = sphi 0, %s240
      %s243 = sphi 0, %s242
      %s257 = sphi 0, %s243
      %s261 = sphi 0, %s261
      %s263 = sphi 0, %s261
      %s264 = sphi 0, %s263
      %s278 = sphi 0, %s264
      %s282 = sphi 0, %s282
      %s284 = sphi 0, %s282
      %s285 = sphi 0, %s284
      %s299 = sphi 0, %s285
      %s303 = sphi 0, %s303
      %s305 = sphi 0, %s303
      %s306 = sphi 0, %s305
      %s320 = sphi 0, %s306
      %s326 = sphi 0, %s328
      %s329 = sphi 0, %s326
      %s330 = sphi 0, %s329
      %s346 = sphi 0, %s330
    $region4: #{tpu_custom_call.1} parent=1 // loop_header_branch
      %31 = sbr.rel (%p29) target = $region8
    $region5: #{tpu_custom_call.1} parent=1 // loop_body
      %s33 = ssub.s32 %s28, 1
      %s34 = ssub.s32 %s28, 2
      %s35 = sadd.s32 %s28, 1
      %s36 = ssub.s32 %s28, %s35
      %p37 = scmp.eq.s32.totalorder %s36, 0
      %s39 = sadd.s32 %s38, 1
      %s40 = scalar_select %p37, %s38, %s39
      %p43 = pneg %p37
      %p44 = scmp.eq.s32.totalorder %s28, 1
      %p45 = por %p43, %p44
      %p46 = scmp.ne.s32.totalorder %s38, %s41
      %p47 = scmp.eq.s32.totalorder %s28, 0
      %p48 = por %p46, %p47
      %p49 = scmp.ne.s32.totalorder %s38, %s41
      %p50 = scmp.eq.s32.totalorder %s33, 1
      %p51 = por %p49, %p50
      %p52 = scmp.ne.s32.totalorder %s41, %s42
      %p53 = scmp.eq.s32.totalorder %s33, 0
      %p54 = por %p52, %p53
      %p55 = scmp.ne.s32.totalorder %s41, %s42
      %p56 = scmp.eq.s32.totalorder %s34, 1
      %p57 = por %p55, %p56
      %p59 = scmp.ne.s32.totalorder %s42, %s58
      %p60 = scmp.eq.s32.totalorder %s34, 0
      %p61 = por %p59, %p60
      %s62 = ssub.s32 %s28, %s35
      %p63 = scmp.eq.s32.totalorder %s62, 0
      %s65 = sadd.s32 %s64, 1
      %s66 = scalar_select %p63, %s64, %s65
      %p69 = pneg %p63
      %p70 = scmp.eq.s32.totalorder %s28, 1
      %p71 = por %p69, %p70
      %p72 = scmp.ne.s32.totalorder %s64, %s67
      %p73 = scmp.eq.s32.totalorder %s28, 0
      %p74 = por %p72, %p73
      %p75 = scmp.ne.s32.totalorder %s64, %s67
      %p76 = scmp.eq.s32.totalorder %s33, 1
      %p77 = por %p75, %p76
      %p78 = scmp.ne.s32.totalorder %s67, %s68
      %p79 = scmp.eq.s32.totalorder %s33, 0
      %p80 = por %p78, %p79
      %p81 = scmp.ne.s32.totalorder %s67, %s68
      %p82 = scmp.eq.s32.totalorder %s34, 1
      %p83 = por %p81, %p82
      %p85 = scmp.ne.s32.totalorder %s68, %s84
      %p86 = scmp.eq.s32.totalorder %s34, 0
      %p87 = por %p85, %p86
      %s88 = ssub.s32 %s28, %s35
      %p89 = scmp.eq.s32.totalorder %s88, 0
      %s91 = sadd.s32 %s90, 1
      %s92 = scalar_select %p89, %s90, %s91
      %p95 = pneg %p89
      %p96 = scmp.eq.s32.totalorder %s28, 1
      %p97 = por %p95, %p96
      %p98 = scmp.ne.s32.totalorder %s90, %s93
      %p99 = scmp.eq.s32.totalorder %s28, 0
      %p100 = por %p98, %p99
      %p101 = scmp.ne.s32.totalorder %s90, %s93
      %p102 = scmp.eq.s32.totalorder %s33, 1
      %p103 = por %p101, %p102
      %p104 = scmp.ne.s32.totalorder %s93, %s94
      %p105 = scmp.eq.s32.totalorder %s33, 0
      %p106 = por %p104, %p105
      %p107 = scmp.ne.s32.totalorder %s93, %s94
      %p108 = scmp.eq.s32.totalorder %s34, 1
      %p109 = por %p107, %p108
      %p111 = scmp.ne.s32.totalorder %s94, %s110
      %p112 = scmp.eq.s32.totalorder %s34, 0
      %p113 = por %p111, %p112
      %s115 = sadd.s32 %s114, 1
      %p118 = scmp.eq.s32.totalorder %s28, 1
      %p119 = scmp.ne.s32.totalorder %s114, %s116
      %p120 = scmp.eq.s32.totalorder %s28, 0
      %p121 = por %p119, %p120
      %p122 = scmp.ne.s32.totalorder %s114, %s116
      %p123 = scmp.eq.s32.totalorder %s33, 1
      %p124 = por %p122, %p123
      %p125 = scmp.ne.s32.totalorder %s116, %s117
      %p126 = scmp.eq.s32.totalorder %s33, 0
      %p127 = por %p125, %p126
      %p128 = scmp.ne.s32.totalorder %s116, %s117
      %p129 = scmp.eq.s32.totalorder %s34, 1
      %p130 = por %p128, %p129
      %p132 = scmp.ne.s32.totalorder %s117, %s131
      %p133 = scmp.eq.s32.totalorder %s34, 0
      %p134 = por %p132, %p133
      %s136 = sadd.s32 %s135, 1
      %p139 = scmp.eq.s32.totalorder %s28, 1
      %p140 = scmp.ne.s32.totalorder %s135, %s137
      %p141 = scmp.eq.s32.totalorder %s28, 0
      %p142 = por %p140, %p141
      %p143 = scmp.ne.s32.totalorder %s135, %s137
      %p144 = scmp.eq.s32.totalorder %s33, 1
      %p145 = por %p143, %p144
      %p146 = scmp.ne.s32.totalorder %s137, %s138
      %p147 = scmp.eq.s32.totalorder %s33, 0
      %p148 = por %p146, %p147
      %p149 = scmp.ne.s32.totalorder %s137, %s138
      %p150 = scmp.eq.s32.totalorder %s34, 1
      %p151 = por %p149, %p150
      %p153 = scmp.ne.s32.totalorder %s138, %s152
      %p154 = scmp.eq.s32.totalorder %s34, 0
      %p155 = por %p153, %p154
      %s157 = sadd.s32 %s156, 1
      %p160 = scmp.eq.s32.totalorder %s28, 1
      %p161 = scmp.ne.s32.totalorder %s156, %s158
      %p162 = scmp.eq.s32.totalorder %s28, 0
      %p163 = por %p161, %p162
      %p164 = scmp.ne.s32.totalorder %s156, %s158
      %p165 = scmp.eq.s32.totalorder %s33, 1
      %p166 = por %p164, %p165
      %p167 = scmp.ne.s32.totalorder %s158, %s159
      %p168 = scmp.eq.s32.totalorder %s33, 0
      %p169 = por %p167, %p168
      %p170 = scmp.ne.s32.totalorder %s158, %s159
      %p171 = scmp.eq.s32.totalorder %s34, 1
      %p172 = por %p170, %p171
      %p174 = scmp.ne.s32.totalorder %s159, %s173
      %p175 = scmp.eq.s32.totalorder %s34, 0
      %p176 = por %p174, %p175
      %s178 = sadd.s32 %s177, 1
      %p181 = scmp.eq.s32.totalorder %s28, 1
      %p182 = scmp.ne.s32.totalorder %s177, %s179
      %p183 = scmp.eq.s32.totalorder %s28, 0
      %p184 = por %p182, %p183
      %p185 = scmp.ne.s32.totalorder %s177, %s179
      %p186 = scmp.eq.s32.totalorder %s33, 1
      %p187 = por %p185, %p186
      %p188 = scmp.ne.s32.totalorder %s179, %s180
      %p189 = scmp.eq.s32.totalorder %s33, 0
      %p190 = por %p188, %p189
      %p191 = scmp.ne.s32.totalorder %s179, %s180
      %p192 = scmp.eq.s32.totalorder %s34, 1
      %p193 = por %p191, %p192
      %p195 = scmp.ne.s32.totalorder %s180, %s194
      %p196 = scmp.eq.s32.totalorder %s34, 0
      %p197 = por %p195, %p196
      %s199 = sadd.s32 %s198, 1
      %p202 = scmp.eq.s32.totalorder %s28, 1
      %p203 = scmp.ne.s32.totalorder %s198, %s200
      %p204 = scmp.eq.s32.totalorder %s28, 0
      %p205 = por %p203, %p204
      %p206 = scmp.ne.s32.totalorder %s198, %s200
      %p207 = scmp.eq.s32.totalorder %s33, 1
      %p208 = por %p206, %p207
      %p209 = scmp.ne.s32.totalorder %s200, %s201
      %p210 = scmp.eq.s32.totalorder %s33, 0
      %p211 = por %p209, %p210
      %p212 = scmp.ne.s32.totalorder %s200, %s201
      %p213 = scmp.eq.s32.totalorder %s34, 1
      %p214 = por %p212, %p213
      %p216 = scmp.ne.s32.totalorder %s201, %s215
      %p217 = scmp.eq.s32.totalorder %s34, 0
      %p218 = por %p216, %p217
      %s220 = sadd.s32 %s219, 1
      %p223 = scmp.eq.s32.totalorder %s28, 1
      %p224 = scmp.ne.s32.totalorder %s219, %s221
      %p225 = scmp.eq.s32.totalorder %s28, 0
      %p226 = por %p224, %p225
      %p227 = scmp.ne.s32.totalorder %s219, %s221
      %p228 = scmp.eq.s32.totalorder %s33, 1
      %p229 = por %p227, %p228
      %p230 = scmp.ne.s32.totalorder %s221, %s222
      %p231 = scmp.eq.s32.totalorder %s33, 0
      %p232 = por %p230, %p231
      %p233 = scmp.ne.s32.totalorder %s221, %s222
      %p234 = scmp.eq.s32.totalorder %s34, 1
      %p235 = por %p233, %p234
      %p237 = scmp.ne.s32.totalorder %s222, %s236
      %p238 = scmp.eq.s32.totalorder %s34, 0
      %p239 = por %p237, %p238
      %s241 = sadd.s32 %s240, 1
      %p244 = scmp.eq.s32.totalorder %s28, 1
      %p245 = scmp.ne.s32.totalorder %s240, %s242
      %p246 = scmp.eq.s32.totalorder %s28, 0
      %p247 = por %p245, %p246
      %p248 = scmp.ne.s32.totalorder %s240, %s242
      %p249 = scmp.eq.s32.totalorder %s33, 1
      %p250 = por %p248, %p249
      %p251 = scmp.ne.s32.totalorder %s242, %s243
      %p252 = scmp.eq.s32.totalorder %s33, 0
      %p253 = por %p251, %p252
      %p254 = scmp.ne.s32.totalorder %s242, %s243
      %p255 = scmp.eq.s32.totalorder %s34, 1
      %p256 = por %p254, %p255
      %p258 = scmp.ne.s32.totalorder %s243, %s257
      %p259 = scmp.eq.s32.totalorder %s34, 0
      %p260 = por %p258, %p259
      %s262 = sadd.s32 %s261, 1
      %p265 = scmp.eq.s32.totalorder %s28, 1
      %p266 = scmp.ne.s32.totalorder %s261, %s263
      %p267 = scmp.eq.s32.totalorder %s28, 0
      %p268 = por %p266, %p267
      %p269 = scmp.ne.s32.totalorder %s261, %s263
      %p270 = scmp.eq.s32.totalorder %s33, 1
      %p271 = por %p269, %p270
      %p272 = scmp.ne.s32.totalorder %s263, %s264
      %p273 = scmp.eq.s32.totalorder %s33, 0
      %p274 = por %p272, %p273
      %p275 = scmp.ne.s32.totalorder %s263, %s264
      %p276 = scmp.eq.s32.totalorder %s34, 1
      %p277 = por %p275, %p276
      %p279 = scmp.ne.s32.totalorder %s264, %s278
      %p280 = scmp.eq.s32.totalorder %s34, 0
      %p281 = por %p279, %p280
      %s283 = sadd.s32 %s282, 1
      %p286 = scmp.eq.s32.totalorder %s28, 1
      %p287 = scmp.ne.s32.totalorder %s282, %s284
      %p288 = scmp.eq.s32.totalorder %s28, 0
      %p289 = por %p287, %p288
      %p290 = scmp.ne.s32.totalorder %s282, %s284
      %p291 = scmp.eq.s32.totalorder %s33, 1
      %p292 = por %p290, %p291
      %p293 = scmp.ne.s32.totalorder %s284, %s285
      %p294 = scmp.eq.s32.totalorder %s33, 0
      %p295 = por %p293, %p294
      %p296 = scmp.ne.s32.totalorder %s284, %s285
      %p297 = scmp.eq.s32.totalorder %s34, 1
      %p298 = por %p296, %p297
      %p300 = scmp.ne.s32.totalorder %s285, %s299
      %p301 = scmp.eq.s32.totalorder %s34, 0
      %p302 = por %p300, %p301
      %s304 = sadd.s32 %s303, 1
      %p307 = scmp.eq.s32.totalorder %s28, 1
      %p308 = scmp.ne.s32.totalorder %s303, %s305
      %p309 = scmp.eq.s32.totalorder %s28, 0
      %p310 = por %p308, %p309
      %p311 = scmp.ne.s32.totalorder %s303, %s305
      %p312 = scmp.eq.s32.totalorder %s33, 1
      %p313 = por %p311, %p312
      %p314 = scmp.ne.s32.totalorder %s305, %s306
      %p315 = scmp.eq.s32.totalorder %s33, 0
      %p316 = por %p314, %p315
      %p317 = scmp.ne.s32.totalorder %s305, %s306
      %p318 = scmp.eq.s32.totalorder %s34, 1
      %p319 = por %p317, %p318
      %p321 = scmp.ne.s32.totalorder %s306, %s320
      %p322 = scmp.eq.s32.totalorder %s34, 0
      %p323 = por %p321, %p322
      %s324 = ssub.s32 %s28, %s35
      %p325 = scmp.eq.s32.totalorder %s324, 0
      %s327 = sadd.s32 %s326, 1
      %s328 = scalar_select %p325, %s326, %s327
      %p331 = pneg %p325
      %p332 = scmp.eq.s32.totalorder %s28, 1
      %p333 = por %p331, %p332
      %p334 = scmp.ne.s32.totalorder %s326, %s329
      %p335 = scmp.eq.s32.totalorder %s28, 0
      %p336 = por %p334, %p335
      %p337 = scmp.ne.s32.totalorder %s326, %s329
      %p338 = scmp.eq.s32.totalorder %s33, 1
      %p339 = por %p337, %p338
      %p340 = scmp.ne.s32.totalorder %s329, %s330
      %p341 = scmp.eq.s32.totalorder %s33, 0
      %p342 = por %p340, %p341
      %p343 = scmp.ne.s32.totalorder %s329, %s330
      %p344 = scmp.eq.s32.totalorder %s34, 1
      %p345 = por %p343, %p344
      %p347 = scmp.ne.s32.totalorder %s330, %s346
      %p348 = scmp.eq.s32.totalorder %s34, 0
      %p349 = por %p347, %p348
      %p350 = scmp.le.s32.totalorder 1, %s28
      %p351 = scmp.lt.s32.totalorder %s28, 3
      %p352 = pnand %p350, %p351
      %p353 = pneg %p352
      // Predicated region
      $region9: #{tpu_custom_call.1} parent=5 // pred_check
        _
      $region10: #{tpu_custom_call.1} parent=5 // pred_check_branch
        %355 = sbr.rel (%p352) target = $region12
      $region11: #{tpu_custom_call.1} parent=5 // pred_region
        %s356 = ssub.s32 %s28, 1
        // Predicated region
        $region13: #{tpu_custom_call.1} parent=11 // pred_check
          %p357 = pneg %p127
        $region14: #{tpu_custom_call.1} parent=11 // pred_check_branch
          %359 = sbr.rel (%p357) target = $region16
        $region15: #{tpu_custom_call.1} parent=11 // pred_region
          _
        $region16: #{tpu_custom_call.1} parent=11 // pred_fallthru
          _
        // Predicated region
        $region17: #{tpu_custom_call.1} parent=11 // pred_check
          %p360 = pneg %p148
        $region18: #{tpu_custom_call.1} parent=11 // pred_check_branch
          %362 = sbr.rel (%p360) target = $region20
        $region19: #{tpu_custom_call.1} parent=11 // pred_region
          _
        $region20: #{tpu_custom_call.1} parent=11 // pred_fallthru
          _
        // Predicated region
        $region21: #{tpu_custom_call.1} parent=11 // pred_check
          %p363 = pneg %p169
        $region22: #{tpu_custom_call.1} parent=11 // pred_check_branch
          %365 = sbr.rel (%p363) target = $region24
        $region23: #{tpu_custom_call.1} parent=11 // pred_region
          _
        $region24: #{tpu_custom_call.1} parent=11 // pred_fallthru
          _
        // Predicated region
        $region25: #{tpu_custom_call.1} parent=11 // pred_check
          %p366 = pneg %p190
        $region26: #{tpu_custom_call.1} parent=11 // pred_check_branch
          %368 = sbr.rel (%p366) target = $region28
        $region27: #{tpu_custom_call.1} parent=11 // pred_region
          _
        $region28: #{tpu_custom_call.1} parent=11 // pred_fallthru
          _
        // Predicated region
        $region29: #{tpu_custom_call.1} parent=11 // pred_check
          %p369 = pneg %p211
        $region30: #{tpu_custom_call.1} parent=11 // pred_check_branch
          %371 = sbr.rel (%p369) target = $region32
        $region31: #{tpu_custom_call.1} parent=11 // pred_region
          _
        $region32: #{tpu_custom_call.1} parent=11 // pred_fallthru
          _
        // Predicated region
        $region33: #{tpu_custom_call.1} parent=11 // pred_check
          %p372 = pneg %p232
        $region34: #{tpu_custom_call.1} parent=11 // pred_check_branch
          %374 = sbr.rel (%p372) target = $region36
        $region35: #{tpu_custom_call.1} parent=11 // pred_region
          _
        $region36: #{tpu_custom_call.1} parent=11 // pred_fallthru
          _
        // Predicated region
        $region37: #{tpu_custom_call.1} parent=11 // pred_check
          %p375 = pneg %p253
        $region38: #{tpu_custom_call.1} parent=11 // pred_check_branch
          %377 = sbr.rel (%p375) target = $region40
        $region39: #{tpu_custom_call.1} parent=11 // pred_region
          _
        $region40: #{tpu_custom_call.1} parent=11 // pred_fallthru
          _
        // Predicated region
        $region41: #{tpu_custom_call.1} parent=11 // pred_check
          %p378 = pneg %p274
        $region42: #{tpu_custom_call.1} parent=11 // pred_check_branch
          %380 = sbr.rel (%p378) target = $region44
        $region43: #{tpu_custom_call.1} parent=11 // pred_region
          _
        $region44: #{tpu_custom_call.1} parent=11 // pred_fallthru
          _
        // Predicated region
        $region45: #{tpu_custom_call.1} parent=11 // pred_check
          %p381 = pneg %p295
        $region46: #{tpu_custom_call.1} parent=11 // pred_check_branch
          %383 = sbr.rel (%p381) target = $region48
        $region47: #{tpu_custom_call.1} parent=11 // pred_region
          _
        $region48: #{tpu_custom_call.1} parent=11 // pred_fallthru
          _
        // Predicated region
        $region49: #{tpu_custom_call.1} parent=11 // pred_check
          %p384 = pneg %p316
        $region50: #{tpu_custom_call.1} parent=11 // pred_check_branch
          %386 = sbr.rel (%p384) target = $region52
        $region51: #{tpu_custom_call.1} parent=11 // pred_region
          _
        $region52: #{tpu_custom_call.1} parent=11 // pred_fallthru
          _
      $region12: #{tpu_custom_call.1} parent=5 // pred_fallthru
        _
      %p387 = scmp.lt.s32.totalorder %s28, 2
      // Predicated region
      $region53: #{tpu_custom_call.1} parent=5 // pred_check
        %p388 = pneg %p387
      $region54: #{tpu_custom_call.1} parent=5 // pred_check_branch
        %390 = sbr.rel (%p388) target = $region56
      $region55: #{tpu_custom_call.1} parent=5 // pred_region
        // Predicated region
        $region57: #{tpu_custom_call.1} parent=55 // pred_check
          %p391 = pneg %p48
        $region58: #{tpu_custom_call.1} parent=55 // pred_check_branch
          %393 = sbr.rel (%p391) target = $region60
        $region59: #{tpu_custom_call.1} parent=55 // pred_region
          %s394 = sand.u32 %s38, 1
          %s395 = scalar_lea.sflag [#allocation3], %s394
          %s396 = sand.u32 %s38, 1
          %s397 = smul.addr %s396, 8
          %s398 = scalar_lea.vmem [#allocation2], %s397
          %s400 = ssub.s32 128, 128
          %401 = vsyncadd %s395, %s400
          %s402 = smul.addr %s28, 2
          %s403 = smul.addr %s402, 64
          %s404 = scalar_lea.hbm %s0, %s403
          %s405 = sshll.u32 %s398, 4
          %s406 = int_to_ptr.vmem [resolvable:$true] %s405
          %411 = dma.hbm_to_vmem [thread:$0]  %s404, 128, %s406, %s395, 64, 64, 4
        $region60: #{tpu_custom_call.1} parent=55 // pred_fallthru
          _
        // Predicated region
        $region61: #{tpu_custom_call.1} parent=55 // pred_check
          %p412 = pneg %p74
        $region62: #{tpu_custom_call.1} parent=55 // pred_check_branch
          %414 = sbr.rel (%p412) target = $region64
        $region63: #{tpu_custom_call.1} parent=55 // pred_region
          %p415 = scmp.lt.s32.totalorder %s28, 1
          %s416 = scalar_select %p415, %s28, 1
          %s417 = scalar_lea.vmem %s1, %s416
        $region64: #{tpu_custom_call.1} parent=55 // pred_fallthru
          _
        // Predicated region
        $region65: #{tpu_custom_call.1} parent=55 // pred_check
          %p418 = pneg %p100
        $region66: #{tpu_custom_call.1} parent=55 // pred_check_branch
          %420 = sbr.rel (%p418) target = $region68
        $region67: #{tpu_custom_call.1} parent=55 // pred_region
          %s421 = sand.u32 %s90, 1
          %s422 = scalar_lea.sflag [#allocation6], %s421
          %s423 = sand.u32 %s90, 1
          %s424 = scalar_lea.vmem [#allocation5], %s423
          %s426 = ssub.s32 16, 16
          %427 = vsyncadd %s422, %s426
          %s428 = smul.addr %s28, 16
          %s429 = scalar_lea.hbm %s2, %s428
          %s431 = sshll.u32 %s424, 4
          %s432 = int_to_ptr.vmem [resolvable:$true] %s431
          %434 = dma.hbm_to_vmem [thread:$0]  %s429, 16, %s432, %s422
        $region68: #{tpu_custom_call.1} parent=55 // pred_fallthru
          _
      $region56: #{tpu_custom_call.1} parent=5 // pred_fallthru
        _
      %p435 = scmp.le.s32.totalorder 1, %s28
      %p436 = scmp.lt.s32.totalorder %s28, 3
      %p437 = pnand %p435, %p436
      %p438 = pneg %p437
      // Predicated region
      $region69: #{tpu_custom_call.1} parent=5 // pred_check
        _
      $region70: #{tpu_custom_call.1} parent=5 // pred_check_branch
        %440 = sbr.rel (%p437) target = $region72
      $region71: #{tpu_custom_call.1} parent=5 // pred_region
        %s441 = ssub.s32 %s28, 1
        %s442 = sand.u32 %s41, 1
        %s443 = scalar_lea.sflag [#allocation3], %s442
        %s444 = sand.u32 %s41, 1
        %s445 = smul.addr %s444, 8
        %s446 = scalar_lea.vmem [#allocation2], %s445
        // Predicated region
        $region73: #{tpu_custom_call.1} parent=71 // pred_check
          %p447 = pneg %p54
        $region74: #{tpu_custom_call.1} parent=71 // pred_check_branch
          %449 = sbr.rel (%p447) target = $region76
        $region75: #{tpu_custom_call.1} parent=71 // pred_region
          %450 = dma.done %s443, 128
        $region76: #{tpu_custom_call.1} parent=71 // pred_fallthru
          _
        %s451 = sand.u32 %s93, 1
        %s452 = scalar_lea.sflag [#allocation6], %s451
        %s453 = sand.u32 %s93, 1
        %s454 = scalar_lea.vmem [#allocation5], %s453
        // Predicated region
        $region77: #{tpu_custom_call.1} parent=71 // pred_check
          %p455 = pneg %p106
        $region78: #{tpu_custom_call.1} parent=71 // pred_check_branch
          %457 = sbr.rel (%p455) target = $region80
        $region79: #{tpu_custom_call.1} parent=71 // pred_region
          %458 = dma.done %s452, 16
        $region80: #{tpu_custom_call.1} parent=71 // pred_fallthru
          _
        %s459 = sand.u32 %s41, 1
        %s460 = scalar_lea.sflag [#allocation3], %s459
        %s461 = sand.u32 %s41, 1
        %s462 = smul.addr %s461, 8
        %s463 = scalar_lea.vmem [#allocation2], %s462
        %p464 = pneg %p54
        %p465 = pneg %p51
        %p466 = scmp.lt.s32.totalorder %s33, 1
        %s467 = scalar_select %p466, %s33, 1
        %s468 = scalar_lea.vmem %s1, %s467
        %p469 = pneg %p80
        %p470 = pneg %p77
        %s471 = sand.u32 %s93, 1
        %s472 = scalar_lea.sflag [#allocation6], %s471
        %s473 = sand.u32 %s93, 1
        %s474 = scalar_lea.vmem [#allocation5], %s473
        %p475 = pneg %p106
        %p476 = pneg %p103
        %p477 = pneg %p127
        %p478 = pneg %p124
        %p479 = pneg %p148
        %p480 = pneg %p145
        %p481 = pneg %p169
        %p482 = pneg %p166
        %p483 = pneg %p190
        %p484 = pneg %p187
        %p485 = pneg %p211
        %p486 = pneg %p208
        %p487 = pneg %p232
        %p488 = pneg %p229
        %p489 = pneg %p253
        %p490 = pneg %p250
        %p491 = pneg %p274
        %p492 = pneg %p271
        %p493 = pneg %p295
        %p494 = pneg %p292
        %p495 = pneg %p316
        %p496 = pneg %p313
        %p497 = pneg %p342
        %p498 = pneg %p339
        %s499 = sand.u32 %s329, 1
        %s500 = scalar_lea.sflag [#allocation4], %s499
        %s501 = sand.u32 %s329, 1
        %s502 = smul.addr %s501, 8
        %s503 = scalar_lea.vmem [#allocation7], %s502
        %p504 = scmp.lt.s32.totalorder %s33, 1
        %s505 = scalar_select %p504, %s33, 1
        %s506 = scalar_lea.vmem %s1, %s505
        %v508 = vld [vmem:[%s446] sm:$0xf]
        %v509 = vld [vmem:[%s446 + $0x4] sm:$0xf]
        %v510 = vld [vmem:[%s506] sm:$0x1]
        %v511 = vld [vmem:[%s3] sm:$0xf]
        %v512 = vld [vmem:[%s3 + $0x4] sm:$0xf]
        %v513 = vld [vmem:[%s3 + $0x8] sm:$0xf]
        %v514 = vld [vmem:[%s3 + $0xc] sm:$0xf]
        %v515 = vld [vmem:[%s3 + $0x10] sm:$0xf]
        %v516 = vld [vmem:[%s3 + $0x14] sm:$0xf]
        %v517 = vld [vmem:[%s3 + $0x18] sm:$0xf]
        %v518 = vld [vmem:[%s3 + $0x1c] sm:$0xf]
        %v519 = vld [vmem:[%s12] sm:$0xff]
        %v520 = vld [vmem:[%s6] sm:$0xf]
        %v521 = vld [vmem:[%s6 + $0x4] sm:$0xf]
        %v522 = vld [vmem:[%s6 + $0x8] sm:$0xf]
        %v523 = vld [vmem:[%s6 + $0xc] sm:$0xf]
        %v524 = vld [vmem:[%s6 + $0x10] sm:$0xf]
        %v525 = vld [vmem:[%s6 + $0x14] sm:$0xf]
        %v526 = vld [vmem:[%s6 + $0x18] sm:$0xf]
        %v527 = vld [vmem:[%s6 + $0x1c] sm:$0xf]
        %v528 = vlaneseq
        %v529 = vshrl.u32 %v528, 7
        %v530 = vsub.s32 0, %v529
        %v531 = vrot.slane %v519, %v530
        %v534 = vunpack.c.l.b16 %v508
        %v535 = vunpack.c.l.b16 %v509
        %v536 = vpack.c.b16 %v535, %v534
        %v545 = vunpack.c.l.b16 %v520
        %v546 = vunpack.c.l.b16 %v521
        %v547 = vunpack.c.l.b16 %v522
        %v548 = vunpack.c.l.b16 %v523
        %v549 = vunpack.c.l.b16 %v524
        %v550 = vunpack.c.l.b16 %v525
        %v551 = vunpack.c.l.b16 %v526
        %v552 = vunpack.c.l.b16 %v527
        %v553 = vpack.c.b16 %v546, %v545
        %v554 = vpack.c.b16 %v548, %v547
        %v555 = vpack.c.b16 %v550, %v549
        %v556 = vpack.c.b16 %v552, %v551
        %vm561 = vcmask 523264
        %v563 = vsel %vm561, %v536, 0
        %565 = vmatprep.subr.bf16.mxu0 0
        %566 = vmatpush1.bf16.msra.mxu0 %v553
        %567 = vmatprep.subr.bf16.mxu0 0
        %568 = vmatpush1.bf16.msra.mxu0 %v554
        %569 = vmatprep.subr.bf16.mxu0 0
        %570 = vmatpush1.bf16.msra.mxu0 %v555
        %571 = vmatprep.subr.bf16.mxu0 0
        %572 = vmatpush1.bf16.msra.mxu0 %v556
        %573 = vmatprep.subr.bf16.mxu0 0
        %574 = vmatpush1.bf16.msra.mxu0 0
        %575 = vmatprep.subr.bf16.mxu0 0
        %576 = vmatpush1.bf16.msra.mxu0 0
        %577 = vmatprep.subr.bf16.mxu0 0
        %578 = vmatpush1.bf16.msra.mxu0 0
        %579 = vmatprep.subr.bf16.mxu0 0
        %580 = vmatpush1.bf16.msra.mxu0 0
        %581 = vmatprep.subr.bf16.mxu0 0
        %582 = vmatpush1.bf16.msra.mxu0 0
        %583 = vmatprep.subr.bf16.mxu0 0
        %584 = vmatpush1.bf16.msra.mxu0 0
        %585 = vmatprep.subr.bf16.mxu0 0
        %586 = vmatpush1.bf16.msra.mxu0 0
        %587 = vmatprep.subr.bf16.mxu0 0
        %588 = vmatpush1.bf16.msra.mxu0 0
        %589 = vmatprep.subr.bf16.mxu0 0
        %590 = vmatpush1.bf16.msra.mxu0 0
        %591 = vmatprep.subr.bf16.mxu0 0
        %592 = vmatpush1.bf16.msra.mxu0 0
        %593 = vmatprep.subr.bf16.mxu0 0
        %594 = vmatpush1.bf16.msra.mxu0 0
        %595 = vmatprep.subr.bf16.mxu0 0
        %596 = vmatpush1.bf16.msra.mxu0 0
        %597 = vmatprep.mubr.bf16.mxu0 0
        %598 = vmatmul.mubr.bf16.gmra.mrb[0].mxu0 %v563
        %v599 = vpop.f32.mrb[0].mxu0
        %v600 = vadd.f32 %v531, %v599
        %v601 = vpop.f32.mrb[0].mxu0
        %v602 = vpop.f32.mrb[0].mxu0
        %v603 = vadd.f32 %v531, %v602
        %v604 = vpop.f32.mrb[0].mxu0
        %605 = vdwg.mxu0
        %v606 = vld [vmem:[%s7] sm:$0xf]
        %v607 = vld [vmem:[%s7 + $0x4] sm:$0xf]
        %v608 = vld [vmem:[%s7 + $0x8] sm:$0xf]
        %v609 = vld [vmem:[%s7 + $0xc] sm:$0xf]
        %v610 = vld [vmem:[%s7 + $0x10] sm:$0xf]
        %v611 = vld [vmem:[%s7 + $0x14] sm:$0xf]
        %v612 = vld [vmem:[%s7 + $0x18] sm:$0xf]
        %v613 = vld [vmem:[%s7 + $0x1c] sm:$0xf]
        %v614 = vlaneseq
        %v615 = vshrl.u32 %v614, 7
        %v616 = vsub.s32 1, %v615
        %v617 = vrot.slane %v519, %v616
        %v626 = vunpack.c.l.b16 %v606
        %v627 = vunpack.c.l.b16 %v607
        %v628 = vunpack.c.l.b16 %v608
        %v629 = vunpack.c.l.b16 %v609
        %v630 = vunpack.c.l.b16 %v610
        %v631 = vunpack.c.l.b16 %v611
        %v632 = vunpack.c.l.b16 %v612
        %v633 = vunpack.c.l.b16 %v613
        %v634 = vpack.c.b16 %v627, %v626
        %v635 = vpack.c.b16 %v629, %v628
        %v636 = vpack.c.b16 %v631, %v630
        %v637 = vpack.c.b16 %v633, %v632
        %642 = vmatprep.subr.bf16.mxu0 0
        %643 = vmatpush1.bf16.msra.mxu0 %v634
        %644 = vmatprep.subr.bf16.mxu0 0
        %645 = vmatpush1.bf16.msra.mxu0 %v635
        %646 = vmatprep.subr.bf16.mxu0 0
        %647 = vmatpush1.bf16.msra.mxu0 %v636
        %648 = vmatprep.subr.bf16.mxu0 0
        %649 = vmatpush1.bf16.msra.mxu0 %v637
        %650 = vmatprep.subr.bf16.mxu0 0
        %651 = vmatpush1.bf16.msra.mxu0 0
        %652 = vmatprep.subr.bf16.mxu0 0
        %653 = vmatpush1.bf16.msra.mxu0 0
        %654 = vmatprep.subr.bf16.mxu0 0
        %655 = vmatpush1.bf16.msra.mxu0 0
        %656 = vmatprep.subr.bf16.mxu0 0
        %657 = vmatpush1.bf16.msra.mxu0 0
        %658 = vmatprep.subr.bf16.mxu0 0
        %659 = vmatpush1.bf16.msra.mxu0 0
        %660 = vmatprep.subr.bf16.mxu0 0
        %661 = vmatpush1.bf16.msra.mxu0 0
        %662 = vmatprep.subr.bf16.mxu0 0
        %663 = vmatpush1.bf16.msra.mxu0 0
        %664 = vmatprep.subr.bf16.mxu0 0
        %665 = vmatpush1.bf16.msra.mxu0 0
        %666 = vmatprep.subr.bf16.mxu0 0
        %667 = vmatpush1.bf16.msra.mxu0 0
        %668 = vmatprep.subr.bf16.mxu0 0
        %669 = vmatpush1.bf16.msra.mxu0 0
        %670 = vmatprep.subr.bf16.mxu0 0
        %671 = vmatpush1.bf16.msra.mxu0 0
        %672 = vmatprep.subr.bf16.mxu0 0
        %673 = vmatpush1.bf16.msra.mxu0 0
        %674 = vmatprep.mubr.bf16.mxu0 0
        %675 = vmatmul.mubr.bf16.gmra.mrb[0].mxu0 %v563
        %v676 = vpop.f32.mrb[0].mxu0
        %v677 = vadd.f32 %v617, %v676
        %v678 = vpop.f32.mrb[0].mxu0
        %v679 = vpop.f32.mrb[0].mxu0
        %v680 = vadd.f32 %v617, %v679
        %v681 = vpop.f32.mrb[0].mxu0
        %682 = vdwg.mxu0
        %v683 = vpack.c.bf16 %v603, %v600
        %v684 = vpack.c.bf16 %v680, %v677
        %v693 = vunpack.c.l.b16 %v511
        %v694 = vunpack.c.l.b16 %v512
        %v695 = vunpack.c.l.b16 %v513
        %v696 = vunpack.c.l.b16 %v514
        %v697 = vunpack.c.l.b16 %v515
        %v698 = vunpack.c.l.b16 %v516
        %v699 = vunpack.c.l.b16 %v517
        %v700 = vunpack.c.l.b16 %v518
        %v701 = vpack.c.b16 %v694, %v693
        %v702 = vpack.c.b16 %v696, %v695
        %v703 = vpack.c.b16 %v698, %v697
        %v704 = vpack.c.b16 %v700, %v699
        %v706 = vsel %vm561, %v701, 0
        %v709 = vsel %vm561, %v702, 0
        %v712 = vsel %vm561, %v703, 0
        %v715 = vsel %vm561, %v704, 0
        %v718 = vsel %vm561, %v683, 0
        %720 = vmatprep.subr.bf16.mxu0 0
        %721 = vmatpush1.bf16.xpose.msra.mxu0 %v718
        %722 = vmatprep.subr.bf16.mxu0 0
        %723 = vmatpush1.bf16.xpose.msra.mxu0 0
        %724 = vmatprep.subr.bf16.mxu0 0
        %725 = vmatpush1.bf16.xpose.msra.mxu0 0
        %726 = vmatprep.subr.bf16.mxu0 0
        %727 = vmatpush1.bf16.xpose.msra.mxu0 0
        %728 = vmatprep.subr.bf16.mxu0 0
        %729 = vmatpush1.bf16.xpose.msra.mxu0 0
        %730 = vmatprep.subr.bf16.mxu0 0
        %731 = vmatpush1.bf16.xpose.msra.mxu0 0
        %732 = vmatprep.subr.bf16.mxu0 0
        %733 = vmatpush1.bf16.xpose.msra.mxu0 0
        %734 = vmatprep.subr.bf16.mxu0 0
        %735 = vmatpush1.bf16.xpose.msra.mxu0 0
        %736 = vmatprep.subr.bf16.mxu0 0
        %737 = vmatpush1.bf16.xpose.msra.mxu0 0
        %738 = vmatprep.subr.bf16.mxu0 0
        %739 = vmatpush1.bf16.xpose.msra.mxu0 0
        %740 = vmatprep.subr.bf16.mxu0 0
        %741 = vmatpush1.bf16.xpose.msra.mxu0 0
        %742 = vmatprep.subr.bf16.mxu0 0
        %743 = vmatpush1.bf16.xpose.msra.mxu0 0
        %744 = vmatprep.subr.bf16.mxu0 0
        %745 = vmatpush1.bf16.xpose.msra.mxu0 0
        %746 = vmatprep.subr.bf16.mxu0 0
        %747 = vmatpush1.bf16.xpose.msra.mxu0 0
        %748 = vmatprep.subr.bf16.mxu0 0
        %749 = vmatpush1.bf16.xpose.msra.mxu0 0
        %750 = vmatprep.subr.bf16.mxu0 0
        %751 = vmatpush1.bf16.xpose.msra.mxu0 0
        %752 = vmatprep.mubr.bf16.mxu0 0
        %753 = vmatmul.mubr.bf16.gmra.mrb[0].mxu0 %v706
        %v754 = vpop.f32.mrb[0].mxu0
        %v755 = vadd.f32 0.0, %v754
        %v756 = vpop.f32.mrb[0].mxu0
        %v757 = vpop.f32.mrb[0].mxu0
        %v758 = vadd.f32 0.0, %v757
        %v759 = vpop.f32.mrb[0].mxu0
        %760 = vmatprep.mubr.bf16.mxu0 0
        %761 = vmatmul.mubr.bf16.gmra.mrb[0].mxu0 %v709
        %v762 = vpop.f32.mrb[0].mxu0
        %v763 = vadd.f32 0.0, %v762
        %v764 = vpop.f32.mrb[0].mxu0
        %v765 = vpop.f32.mrb[0].mxu0
        %v766 = vadd.f32 0.0, %v765
        %v767 = vpop.f32.mrb[0].mxu0
        %768 = vmatprep.mubr.bf16.mxu0 0
        %769 = vmatmul.mubr.bf16.gmra.mrb[0].mxu0 %v712
        %v770 = vpop.f32.mrb[0].mxu0
        %v771 = vadd.f32 0.0, %v770
        %v772 = vpop.f32.mrb[0].mxu0
        %v773 = vpop.f32.mrb[0].mxu0
        %v774 = vadd.f32 0.0, %v773
        %v775 = vpop.f32.mrb[0].mxu0
        %776 = vmatprep.mubr.bf16.mxu0 0
        %777 = vmatmul.mubr.bf16.gmra.mrb[0].mxu0 %v715
        %v778 = vpop.f32.mrb[0].mxu0
        %v779 = vadd.f32 0.0, %v778
        %v780 = vpop.f32.mrb[0].mxu0
        %v781 = vpop.f32.mrb[0].mxu0
        %v782 = vadd.f32 0.0, %v781
        %v783 = vpop.f32.mrb[0].mxu0
        %784 = vdwg.mxu0
        %v785 = vmul.f32 %v755, 0.35355338
        %v786 = vmul.f32 %v758, 0.35355338
        %v787 = vmul.f32 %v763, 0.35355338
        %v788 = vmul.f32 %v766, 0.35355338
        %v789 = vmul.f32 %v771, 0.35355338
        %v790 = vmul.f32 %v774, 0.35355338
        %v791 = vmul.f32 %v779, 0.35355338
        %v792 = vmul.f32 %v782, 0.35355338
        %v794 = vlaneseq
        %v795 = vshrl.u32 %v794, 7
        %v796 = vsub.s32 0, %v795
        %v797 = vrot.slane %v510, %v796
        %v799 = vadd.f32 %v785, %v797
        %v800 = vadd.f32 %v786, %v797
        %v801 = vadd.f32 %v787, %v797
        %v802 = vadd.f32 %v788, %v797
        %v803 = vadd.f32 %v789, %v797
        %v804 = vadd.f32 %v790, %v797
        %v805 = vadd.f32 %v791, %v797
        %v806 = vadd.f32 %v792, %v797
        %vm807 = vcmask 130048
        %v808 = vsel %vm807, %v799, -inf
        %809 = vmax.xlane.f32.xlu0 %v808
        %v810 = vpop.xlane.xlu0 %809
        %v811 = vsel %vm807, %v800, -inf
        %812 = vmax.xlane.f32.xlu0 %v811
        %v813 = vpop.xlane.xlu0 %812
        %v814 = vsel %vm807, %v801, -inf
        %815 = vmax.xlane.f32.xlu0 %v814
        %v816 = vpop.xlane.xlu0 %815
        %v817 = vsel %vm807, %v802, -inf
        %818 = vmax.xlane.f32.xlu0 %v817
        %v819 = vpop.xlane.xlu0 %818
        %v820 = vsel %vm807, %v803, -inf
        %821 = vmax.xlane.f32.xlu0 %v820
        %v822 = vpop.xlane.xlu0 %821
        %v823 = vsel %vm807, %v804, -inf
        %824 = vmax.xlane.f32.xlu0 %v823
        %v825 = vpop.xlane.xlu0 %824
        %v826 = vsel %vm807, %v805, -inf
        %827 = vmax.xlane.f32.xlu0 %v826
        %v828 = vpop.xlane.xlu0 %827
        %v829 = vsel %vm807, %v806, -inf
        %830 = vmax.xlane.f32.xlu0 %v829
        %v831 = vpop.xlane.xlu0 %830
        %v832 = vsub.f32 %v799, %v810
        %v833 = vsub.f32 %v800, %v813
        %v834 = vsub.f32 %v801, %v816
        %v835 = vsub.f32 %v802, %v819
        %v836 = vsub.f32 %v803, %v822
        %v837 = vsub.f32 %v804, %v825
        %v838 = vsub.f32 %v805, %v828
        %v839 = vsub.f32 %v806, %v831
        %v840 = vmul.f32 %v832, 1.442695
        %v841 = vpow.pop %v840
        %v842 = vmul.f32 %v833, 1.442695
        %v843 = vpow.pop %v842
        %v844 = vmul.f32 %v834, 1.442695
        %v845 = vpow.pop %v844
        %v846 = vmul.f32 %v835, 1.442695
        %v847 = vpow.pop %v846
        %v848 = vmul.f32 %v836, 1.442695
        %v849 = vpow.pop %v848
        %v850 = vmul.f32 %v837, 1.442695
        %v851 = vpow.pop %v850
        %v852 = vmul.f32 %v838, 1.442695
        %v853 = vpow.pop %v852
        %v854 = vmul.f32 %v839, 1.442695
        %v855 = vpow.pop %v854
        %v856 = vsel %vm807, %v841, 0.0
        %857 = vadd.xlane.f32.xlu0 %v856
        %v858 = vpop.xlane.xlu0 %857
        %v859 = vsel %vm807, %v843, 0.0
        %860 = vadd.xlane.f32.xlu0 %v859
        %v861 = vpop.xlane.xlu0 %860
        %v862 = vsel %vm807, %v845, 0.0
        %863 = vadd.xlane.f32.xlu0 %v862
        %v864 = vpop.xlane.xlu0 %863
        %v865 = vsel %vm807, %v847, 0.0
        %866 = vadd.xlane.f32.xlu0 %v865
        %v867 = vpop.xlane.xlu0 %866
        %v868 = vsel %vm807, %v849, 0.0
        %869 = vadd.xlane.f32.xlu0 %v868
        %v870 = vpop.xlane.xlu0 %869
        %v871 = vsel %vm807, %v851, 0.0
        %872 = vadd.xlane.f32.xlu0 %v871
        %v873 = vpop.xlane.xlu0 %872
        %v874 = vsel %vm807, %v853, 0.0
        %875 = vadd.xlane.f32.xlu0 %v874
        %v876 = vpop.xlane.xlu0 %875
        %v877 = vsel %vm807, %v855, 0.0
        %878 = vadd.xlane.f32.xlu0 %v877
        %v879 = vpop.xlane.xlu0 %878
        %v880 = vrcp.pop %v858
        %v881 = vrcp.pop %v861
        %v882 = vrcp.pop %v864
        %v883 = vrcp.pop %v867
        %v884 = vrcp.pop %v870
        %v885 = vrcp.pop %v873
        %v886 = vrcp.pop %v876
        %v887 = vrcp.pop %v879
        %v888 = vmul.f32 %v841, %v880
        %v889 = vmul.f32 %v843, %v881
        %v890 = vmul.f32 %v845, %v882
        %v891 = vmul.f32 %v847, %v883
        %v892 = vmul.f32 %v849, %v884
        %v893 = vmul.f32 %v851, %v885
        %v894 = vmul.f32 %v853, %v886
        %v895 = vmul.f32 %v855, %v887
        %v896 = vmul.f32 %v888, 0.5
        %v897 = vmul.f32 %v889, 0.5
        %v898 = vmul.f32 %v890, 0.5
        %v899 = vmul.f32 %v891, 0.5
        %v900 = vmul.f32 %v892, 0.5
        %v901 = vmul.f32 %v893, 0.5
        %v902 = vmul.f32 %v894, 0.5
        %v903 = vmul.f32 %v895, 0.5
        %v904 = vld [vmem:[%s454] sm:$0x1]
        %v906 = vlaneseq
        %v907 = vshrl.u32 %v906, 7
        %v908 = vsub.s32 0, %v907
        %v909 = vrot.slane %v904, %v908
        %v911 = vadd.f32 %v896, %v909
        %v912 = vadd.f32 %v897, %v909
        %v913 = vadd.f32 %v898, %v909
        %v914 = vadd.f32 %v899, %v909
        %v915 = vadd.f32 %v900, %v909
        %v916 = vadd.f32 %v901, %v909
        %v917 = vadd.f32 %v902, %v909
        %v918 = vadd.f32 %v903, %v909
        %v919 = vsel %vm807, %v911, 0.0
        %920 = vadd.xlane.f32.xlu0 %v919
        %v921 = vpop.xlane.xlu0 %920
        %v922 = vsel %vm807, %v912, 0.0
        %923 = vadd.xlane.f32.xlu0 %v922
        %v924 = vpop.xlane.xlu0 %923
        %v925 = vsel %vm807, %v913, 0.0
        %926 = vadd.xlane.f32.xlu0 %v925
        %v927 = vpop.xlane.xlu0 %926
        %v928 = vsel %vm807, %v914, 0.0
        %929 = vadd.xlane.f32.xlu0 %v928
        %v930 = vpop.xlane.xlu0 %929
        %v931 = vsel %vm807, %v915, 0.0
        %932 = vadd.xlane.f32.xlu0 %v931
        %v933 = vpop.xlane.xlu0 %932
        %v934 = vsel %vm807, %v916, 0.0
        %935 = vadd.xlane.f32.xlu0 %v934
        %v936 = vpop.xlane.xlu0 %935
        %v937 = vsel %vm807, %v917, 0.0
        %938 = vadd.xlane.f32.xlu0 %v937
        %v939 = vpop.xlane.xlu0 %938
        %v940 = vsel %vm807, %v918, 0.0
        %941 = vadd.xlane.f32.xlu0 %v940
        %v942 = vpop.xlane.xlu0 %941
        %v943 = vadd.f32 %v921, 1e-09
        %v944 = vadd.f32 %v924, 1e-09
        %v945 = vadd.f32 %v927, 1e-09
        %v946 = vadd.f32 %v930, 1e-09
        %v947 = vadd.f32 %v933, 1e-09
        %v948 = vadd.f32 %v936, 1e-09
        %v949 = vadd.f32 %v939, 1e-09
        %v950 = vadd.f32 %v942, 1e-09
        %v951 = vrcp.pop %v943
        %v952 = vrcp.pop %v944
        %v953 = vrcp.pop %v945
        %v954 = vrcp.pop %v946
        %v955 = vrcp.pop %v947
        %v956 = vrcp.pop %v948
        %v957 = vrcp.pop %v949
        %v958 = vrcp.pop %v950
        %v959 = vmul.f32 %v911, %v951
        %v960 = vmul.f32 %v912, %v952
        %v961 = vmul.f32 %v913, %v953
        %v962 = vmul.f32 %v914, %v954
        %v963 = vmul.f32 %v915, %v955
        %v964 = vmul.f32 %v916, %v956
        %v965 = vmul.f32 %v917, %v957
        %v966 = vmul.f32 %v918, %v958
        %v967 = vpack.c.bf16 %v960, %v959
        %v968 = vpack.c.bf16 %v962, %v961
        %v969 = vpack.c.bf16 %v964, %v963
        %v970 = vpack.c.bf16 %v966, %v965
        %v972 = vsel %vm807, %v967, 0
        %v975 = vsel %vm807, %v968, 0
        %v978 = vsel %vm807, %v969, 0
        %v981 = vsel %vm807, %v970, 0
        %983 = vmatprep.subr.bf16.mxu0 0
        %984 = vmatpush1.bf16.msra.mxu0 %v684
        %985 = vmatprep.subr.bf16.mxu0 0
        %986 = vmatpush1.bf16.msra.mxu0 0
        %987 = vmatprep.subr.bf16.mxu0 0
        %988 = vmatpush1.bf16.msra.mxu0 0
        %989 = vmatprep.subr.bf16.mxu0 0
        %990 = vmatpush1.bf16.msra.mxu0 0
        %991 = vmatprep.subr.bf16.mxu0 0
        %992 = vmatpush1.bf16.msra.mxu0 0
        %993 = vmatprep.subr.bf16.mxu0 0
        %994 = vmatpush1.bf16.msra.mxu0 0
        %995 = vmatprep.subr.bf16.mxu0 0
        %996 = vmatpush1.bf16.msra.mxu0 0
        %997 = vmatprep.subr.bf16.mxu0 0
        %998 = vmatpush1.bf16.msra.mxu0 0
        %999 = vmatprep.subr.bf16.mxu0 0
        %1000 = vmatpush1.bf16.msra.mxu0 0
        %1001 = vmatprep.subr.bf16.mxu0 0
        %1002 = vmatpush1.bf16.msra.mxu0 0
        %1003 = vmatprep.subr.bf16.mxu0 0
        %1004 = vmatpush1.bf16.msra.mxu0 0
        %1005 = vmatprep.subr.bf16.mxu0 0
        %1006 = vmatpush1.bf16.msra.mxu0 0
        %1007 = vmatprep.subr.bf16.mxu0 0
        %1008 = vmatpush1.bf16.msra.mxu0 0
        %1009 = vmatprep.subr.bf16.mxu0 0
        %1010 = vmatpush1.bf16.msra.mxu0 0
        %1011 = vmatprep.subr.bf16.mxu0 0
        %1012 = vmatpush1.bf16.msra.mxu0 0
        %1013 = vmatprep.subr.bf16.mxu0 0
        %1014 = vmatpush1.bf16.msra.mxu0 0
        %1015 = vmatprep.mubr.bf16.mxu0 0
        %1016 = vmatmul.mubr.bf16.gmra.mrb[0].mxu0 %v972
        %v1017 = vpop.f32.mrb[0].mxu0
        %v1018 = vadd.f32 0.0, %v1017
        %v1019 = vpop.f32.mrb[0].mxu0
        %v1020 = vpop.f32.mrb[0].mxu0
        %v1021 = vadd.f32 0.0, %v1020
        %v1022 = vpop.f32.mrb[0].mxu0
        %1023 = vmatprep.mubr.bf16.mxu0 0
        %1024 = vmatmul.mubr.bf16.gmra.mrb[0].mxu0 %v975
        %v1025 = vpop.f32.mrb[0].mxu0
        %v1026 = vadd.f32 0.0, %v1025
        %v1027 = vpop.f32.mrb[0].mxu0
        %v1028 = vpop.f32.mrb[0].mxu0
        %v1029 = vadd.f32 0.0, %v1028
        %v1030 = vpop.f32.mrb[0].mxu0
        %1031 = vmatprep.mubr.bf16.mxu0 0
        %1032 = vmatmul.mubr.bf16.gmra.mrb[0].mxu0 %v978
        %v1033 = vpop.f32.mrb[0].mxu0
        %v1034 = vadd.f32 0.0, %v1033
        %v1035 = vpop.f32.mrb[0].mxu0
        %v1036 = vpop.f32.mrb[0].mxu0
        %v1037 = vadd.f32 0.0, %v1036
        %v1038 = vpop.f32.mrb[0].mxu0
        %1039 = vmatprep.mubr.bf16.mxu0 0
        %1040 = vmatmul.mubr.bf16.gmra.mrb[0].mxu0 %v981
        %v1041 = vpop.f32.mrb[0].mxu0
        %v1042 = vadd.f32 0.0, %v1041
        %v1043 = vpop.f32.mrb[0].mxu0
        %v1044 = vpop.f32.mrb[0].mxu0
        %v1045 = vadd.f32 0.0, %v1044
        %v1046 = vpop.f32.mrb[0].mxu0
        %1047 = vdwg.mxu0
        %v1048 = vld [vmem:[%s5] sm:$0x1]
        %v1049 = vld [vmem:[%s5 + $0x1] sm:$0x1]
        %v1050 = vld [vmem:[%s5 + $0x2] sm:$0x1]
        %v1051 = vld [vmem:[%s5 + $0x3] sm:$0x1]
        %v1052 = vld [vmem:[%s5 + $0x4] sm:$0x1]
        %v1053 = vld [vmem:[%s5 + $0x5] sm:$0x1]
        %v1054 = vld [vmem:[%s5 + $0x6] sm:$0x1]
        %v1055 = vld [vmem:[%s5 + $0x7] sm:$0x1]
        %v1064 = vlaneseq
        %v1065 = vshrl.u32 %v1064, 7
        %v1066 = vsub.s32 0, %v1065
        %v1067 = vrot.slane %v1048, %v1066
        %v1068 = vlaneseq
        %v1069 = vshrl.u32 %v1068, 7
        %v1070 = vsub.s32 0, %v1069
        %v1071 = vrot.slane %v1049, %v1070
        %v1072 = vlaneseq
        %v1073 = vshrl.u32 %v1072, 7
        %v1074 = vsub.s32 0, %v1073
        %v1075 = vrot.slane %v1050, %v1074
        %v1076 = vlaneseq
        %v1077 = vshrl.u32 %v1076, 7
        %v1078 = vsub.s32 0, %v1077
        %v1079 = vrot.slane %v1051, %v1078
        %v1080 = vlaneseq
        %v1081 = vshrl.u32 %v1080, 7
        %v1082 = vsub.s32 0, %v1081
        %v1083 = vrot.slane %v1052, %v1082
        %v1084 = vlaneseq
        %v1085 = vshrl.u32 %v1084, 7
        %v1086 = vsub.s32 0, %v1085
        %v1087 = vrot.slane %v1053, %v1086
        %v1088 = vlaneseq
        %v1089 = vshrl.u32 %v1088, 7
        %v1090 = vsub.s32 0, %v1089
        %v1091 = vrot.slane %v1054, %v1090
        %v1092 = vlaneseq
        %v1093 = vshrl.u32 %v1092, 7
        %v1094 = vsub.s32 0, %v1093
        %v1095 = vrot.slane %v1055, %v1094
        %v1104 = vmul.f32 %v1018, %v1067
        %v1105 = vmul.f32 %v1021, %v1071
        %v1106 = vmul.f32 %v1026, %v1075
        %v1107 = vmul.f32 %v1029, %v1079
        %v1108 = vmul.f32 %v1034, %v1083
        %v1109 = vmul.f32 %v1037, %v1087
        %v1110 = vmul.f32 %v1042, %v1091
        %v1111 = vmul.f32 %v1045, %v1095
        %v1112 = vsel %vm561, %v1104, 0.0
        %v1113 = vsel %vm561, %v1105, 0.0
        %v1114 = vadd.f32 %v1112, %v1113
        %v1115 = vsel %vm561, %v1106, 0.0
        %v1116 = vadd.f32 %v1114, %v1115
        %v1117 = vsel %vm561, %v1107, 0.0
        %v1118 = vadd.f32 %v1116, %v1117
        %v1119 = vsel %vm561, %v1108, 0.0
        %v1120 = vadd.f32 %v1118, %v1119
        %v1121 = vsel %vm561, %v1109, 0.0
        %v1122 = vadd.f32 %v1120, %v1121
        %v1123 = vsel %vm561, %v1110, 0.0
        %v1124 = vadd.f32 %v1122, %v1123
        %v1125 = vsel %vm561, %v1111, 0.0
        %v1126 = vadd.f32 %v1124, %v1125
        %v1127 = vpack.c.bf16 %v1126, %v1126
        %v1128 = vld [vmem:[%s8] sm:$0xf]
        %v1129 = vld [vmem:[%s8 + $0x4] sm:$0xf]
        %v1130 = vld [vmem:[%s8 + $0x8] sm:$0xf]
        %v1131 = vld [vmem:[%s8 + $0xc] sm:$0xf]
        %v1132 = vld [vmem:[%s8 + $0x10] sm:$0xf]
        %v1133 = vld [vmem:[%s8 + $0x14] sm:$0xf]
        %v1134 = vld [vmem:[%s8 + $0x18] sm:$0xf]
        %v1135 = vld [vmem:[%s8 + $0x1c] sm:$0xf]
        %v1136 = vlaneseq
        %v1137 = vshrl.u32 %v1136, 7
        %v1138 = vsub.s32 2, %v1137
        %v1139 = vrot.slane %v519, %v1138
        %v1148 = vunpack.c.l.b16 %v1128
        %v1149 = vunpack.c.l.b16 %v1129
        %v1150 = vunpack.c.l.b16 %v1130
        %v1151 = vunpack.c.l.b16 %v1131
        %v1152 = vunpack.c.l.b16 %v1132
        %v1153 = vunpack.c.l.b16 %v1133
        %v1154 = vunpack.c.l.b16 %v1134
        %v1155 = vunpack.c.l.b16 %v1135
        %v1156 = vpack.c.b16 %v1149, %v1148
        %v1157 = vpack.c.b16 %v1151, %v1150
        %v1158 = vpack.c.b16 %v1153, %v1152
        %v1159 = vpack.c.b16 %v1155, %v1154
        %v1165 = vsel %vm561, %v1127, 0
        %1167 = vmatprep.subr.bf16.mxu0 0
        %1168 = vmatpush1.bf16.msra.mxu0 %v1156
        %1169 = vmatprep.subr.bf16.mxu0 0
        %1170 = vmatpush1.bf16.msra.mxu0 %v1157
        %1171 = vmatprep.subr.bf16.mxu0 0
        %1172 = vmatpush1.bf16.msra.mxu0 %v1158
        %1173 = vmatprep.subr.bf16.mxu0 0
        %1174 = vmatpush1.bf16.msra.mxu0 %v1159
        %1175 = vmatprep.subr.bf16.mxu0 0
        %1176 = vmatpush1.bf16.msra.mxu0 0
        %1177 = vmatprep.subr.bf16.mxu0 0
        %1178 = vmatpush1.bf16.msra.mxu0 0
        %1179 = vmatprep.subr.bf16.mxu0 0
        %1180 = vmatpush1.bf16.msra.mxu0 0
        %1181 = vmatprep.subr.bf16.mxu0 0
        %1182 = vmatpush1.bf16.msra.mxu0 0
        %1183 = vmatprep.subr.bf16.mxu0 0
        %1184 = vmatpush1.bf16.msra.mxu0 0
        %1185 = vmatprep.subr.bf16.mxu0 0
        %1186 = vmatpush1.bf16.msra.mxu0 0
        %1187 = vmatprep.subr.bf16.mxu0 0
        %1188 = vmatpush1.bf16.msra.mxu0 0
        %1189 = vmatprep.subr.bf16.mxu0 0
        %1190 = vmatpush1.bf16.msra.mxu0 0
        %1191 = vmatprep.subr.bf16.mxu0 0
        %1192 = vmatpush1.bf16.msra.mxu0 0
        %1193 = vmatprep.subr.bf16.mxu0 0
        %1194 = vmatpush1.bf16.msra.mxu0 0
        %1195 = vmatprep.subr.bf16.mxu0 0
        %1196 = vmatpush1.bf16.msra.mxu0 0
        %1197 = vmatprep.subr.bf16.mxu0 0
        %1198 = vmatpush1.bf16.msra.mxu0 0
        %1199 = vmatprep.mubr.bf16.mxu0 0
        %1200 = vmatmul.mubr.bf16.gmra.mrb[0].mxu0 %v1165
        %v1201 = vpop.f32.mrb[0].mxu0
        %v1202 = vadd.f32 %v1139, %v1201
        %v1203 = vpop.f32.mrb[0].mxu0
        %v1204 = vpop.f32.mrb[0].mxu0
        %v1205 = vpop.f32.mrb[0].mxu0
        %1206 = vdwg.mxu0
        %v1207 = vld [vmem:[%s4] sm:$0xff]
        %v1208 = vadd.f32 %v1202, %v1207
        %v1209 = vsel %vm561, %v1208, 0.0
        %1210 = vadd.xlane.f32.xlu0 %v1209
        %v1211 = vpop.xlane.xlu0 %1210
        %v1212 = vrcp.pop 64.0
        %v1213 = vmul.f32 %v1211, %v1212
        %v1214 = vsub.f32 %v1208, %v1213
        %v1215 = vmul.f32 %v1214, %v1214
        %v1216 = vsel %vm561, %v1215, 0.0
        %1217 = vadd.xlane.f32.xlu0 %v1216
        %v1218 = vpop.xlane.xlu0 %1217
        %v1219 = vmul.f32 %v1218, %v1212
        %v1220 = vadd.f32 %v1219, 1e-05
        %v1221 = vrsqrt.pop %v1220
        %v1222 = vmul.f32 %v1214, %v1221
        %v1223 = vlaneseq
        %v1224 = vshrl.u32 %v1223, 7
        %v1225 = vsub.s32 3, %v1224
        %v1226 = vrot.slane %v519, %v1225
        %v1227 = vmul.f32 %v1222, %v1226
        %v1228 = vlaneseq
        %v1229 = vshrl.u32 %v1228, 7
        %v1230 = vsub.s32 4, %v1229
        %v1231 = vrot.slane %v519, %v1230
        %v1232 = vadd.f32 %v1227, %v1231
        %v1233 = vpack.c.bf16 %v1232, %v1232
        %v1234 = vld [vmem:[%s9] sm:$0xff]
        %v1235 = vld [vmem:[%s9 + $0x8] sm:$0xff]
        %v1236 = vld [vmem:[%s9 + $0x10] sm:$0xff]
        %v1237 = vld [vmem:[%s9 + $0x18] sm:$0xff]
        %v1238 = vld [vmem:[%s9 + $0x20] sm:$0xff]
        %v1239 = vld [vmem:[%s9 + $0x28] sm:$0xff]
        %v1240 = vld [vmem:[%s9 + $0x30] sm:$0xff]
        %v1241 = vld [vmem:[%s9 + $0x38] sm:$0xff]
        %v1242 = vld [vmem:[%s11] sm:$0x3]
        %v1244 = vlaneseq
        %v1245 = vshrl.u32 %v1244, 7
        %v1246 = vsub.s32 0, %v1245
        %v1247 = vrot.slane %v1242, %v1246
        %v1248 = vlaneseq
        %v1249 = vshrl.u32 %v1248, 7
        %v1250 = vsub.s32 1, %v1249
        %v1251 = vrot.slane %v1242, %v1250
        %v1262 = vunpack.c.l.b16 %v1234
        %v1263 = vunpack.c.h.b16 %v1234
        %v1264 = vunpack.c.l.b16 %v1235
        %v1265 = vunpack.c.h.b16 %v1235
        %v1266 = vunpack.c.l.b16 %v1236
        %v1267 = vunpack.c.h.b16 %v1236
        %v1268 = vunpack.c.l.b16 %v1237
        %v1269 = vunpack.c.h.b16 %v1237
        %v1270 = vunpack.c.l.b16 %v1238
        %v1271 = vunpack.c.h.b16 %v1238
        %v1272 = vunpack.c.l.b16 %v1239
        %v1273 = vunpack.c.h.b16 %v1239
        %v1274 = vunpack.c.l.b16 %v1240
        %v1275 = vunpack.c.h.b16 %v1240
        %v1276 = vunpack.c.l.b16 %v1241
        %v1277 = vunpack.c.h.b16 %v1241
        %v1278 = vpack.c.b16 %v1264, %v1262
        %v1279 = vpack.c.b16 %v1265, %v1263
        %v1280 = vpack.c.b16 %v1268, %v1266
        %v1281 = vpack.c.b16 %v1269, %v1267
        %v1282 = vpack.c.b16 %v1272, %v1270
        %v1283 = vpack.c.b16 %v1273, %v1271
        %v1284 = vpack.c.b16 %v1276, %v1274
        %v1285 = vpack.c.b16 %v1277, %v1275
        %v1295 = vsel %vm561, %v1233, 0
        %1297 = vmatprep.subr.bf16.mxu0 %v1279
        %1298 = vmatpush1.bf16.msra.mxu0 %v1278
        %1299 = vmatprep.subr.bf16.mxu0 %v1281
        %1300 = vmatpush1.bf16.msra.mxu0 %v1280
        %1301 = vmatprep.subr.bf16.mxu0 %v1283
        %1302 = vmatpush1.bf16.msra.mxu0 %v1282
        %1303 = vmatprep.subr.bf16.mxu0 %v1285
        %1304 = vmatpush1.bf16.msra.mxu0 %v1284
        %1305 = vmatprep.subr.bf16.mxu0 0
        %1306 = vmatpush1.bf16.msra.mxu0 0
        %1307 = vmatprep.subr.bf16.mxu0 0
        %1308 = vmatpush1.bf16.msra.mxu0 0
        %1309 = vmatprep.subr.bf16.mxu0 0
        %1310 = vmatpush1.bf16.msra.mxu0 0
        %1311 = vmatprep.subr.bf16.mxu0 0
        %1312 = vmatpush1.bf16.msra.mxu0 0
        %1313 = vmatprep.subr.bf16.mxu0 0
        %1314 = vmatpush1.bf16.msra.mxu0 0
        %1315 = vmatprep.subr.bf16.mxu0 0
        %1316 = vmatpush1.bf16.msra.mxu0 0
        %1317 = vmatprep.subr.bf16.mxu0 0
        %1318 = vmatpush1.bf16.msra.mxu0 0
        %1319 = vmatprep.subr.bf16.mxu0 0
        %1320 = vmatpush1.bf16.msra.mxu0 0
        %1321 = vmatprep.subr.bf16.mxu0 0
        %1322 = vmatpush1.bf16.msra.mxu0 0
        %1323 = vmatprep.subr.bf16.mxu0 0
        %1324 = vmatpush1.bf16.msra.mxu0 0
        %1325 = vmatprep.subr.bf16.mxu0 0
        %1326 = vmatpush1.bf16.msra.mxu0 0
        %1327 = vmatprep.subr.bf16.mxu0 0
        %1328 = vmatpush1.bf16.msra.mxu0 0
        %1329 = vmatprep.mubr.bf16.mxu0 0
        %1330 = vmatmul.mubr.bf16.gmra.mrb[0].mxu0 %v1295
        %v1331 = vpop.f32.mrb[0].mxu0
        %v1332 = vadd.f32 %v1247, %v1331
        %v1333 = vpop.f32.mrb[0].mxu0
        %v1334 = vadd.f32 %v1251, %v1333
        %v1335 = vpop.f32.mrb[0].mxu0
        %v1336 = vpop.f32.mrb[0].mxu0
        %1337 = vdwg.mxu0
        %v1338 = vmax.f32 %v1332, 0.0
        %v1339 = vmax.f32 %v1334, 0.0
        %v1340 = vpack.c.bf16 %v1338, %v1338
        %v1341 = vpack.c.bf16 %v1339, %v1339
        %v1342 = vld [vmem:[%s10] sm:$0xf]
        %v1343 = vld [vmem:[%s10 + $0x4] sm:$0xf]
        %v1344 = vld [vmem:[%s10 + $0x8] sm:$0xf]
        %v1345 = vld [vmem:[%s10 + $0xc] sm:$0xf]
        %v1346 = vld [vmem:[%s10 + $0x10] sm:$0xf]
        %v1347 = vld [vmem:[%s10 + $0x14] sm:$0xf]
        %v1348 = vld [vmem:[%s10 + $0x18] sm:$0xf]
        %v1349 = vld [vmem:[%s10 + $0x1c] sm:$0xf]
        %v1350 = vld [vmem:[%s10 + $0x20] sm:$0xf]
        %v1351 = vld [vmem:[%s10 + $0x24] sm:$0xf]
        %v1352 = vld [vmem:[%s10 + $0x28] sm:$0xf]
        %v1353 = vld [vmem:[%s10 + $0x2c] sm:$0xf]
        %v1354 = vld [vmem:[%s10 + $0x30] sm:$0xf]
        %v1355 = vld [vmem:[%s10 + $0x34] sm:$0xf]
        %v1356 = vld [vmem:[%s10 + $0x38] sm:$0xf]
        %v1357 = vld [vmem:[%s10 + $0x3c] sm:$0xf]
        %v1358 = vld [vmem:[%s10 + $0x40] sm:$0xf]
        %v1359 = vld [vmem:[%s10 + $0x44] sm:$0xf]
        %v1360 = vld [vmem:[%s10 + $0x48] sm:$0xf]
        %v1361 = vld [vmem:[%s10 + $0x4c] sm:$0xf]
        %v1362 = vld [vmem:[%s10 + $0x50] sm:$0xf]
        %v1363 = vld [vmem:[%s10 + $0x54] sm:$0xf]
        %v1364 = vld [vmem:[%s10 + $0x58] sm:$0xf]
        %v1365 = vld [vmem:[%s10 + $0x5c] sm:$0xf]
        %v1366 = vld [vmem:[%s10 + $0x60] sm:$0xf]
        %v1367 = vld [vmem:[%s10 + $0x64] sm:$0xf]
        %v1368 = vld [vmem:[%s10 + $0x68] sm:$0xf]
        %v1369 = vld [vmem:[%s10 + $0x6c] sm:$0xf]
        %v1370 = vld [vmem:[%s10 + $0x70] sm:$0xf]
        %v1371 = vld [vmem:[%s10 + $0x74] sm:$0xf]
        %v1372 = vld [vmem:[%s10 + $0x78] sm:$0xf]
        %v1373 = vld [vmem:[%s10 + $0x7c] sm:$0xf]
        %v1374 = vlaneseq
        %v1375 = vshrl.u32 %v1374, 7
        %v1376 = vsub.s32 5, %v1375
        %v1377 = vrot.slane %v519, %v1376
        %v1410 = vunpack.c.l.b16 %v1342
        %v1411 = vunpack.c.l.b16 %v1343
        %v1412 = vunpack.c.l.b16 %v1344
        %v1413 = vunpack.c.l.b16 %v1345
        %v1414 = vunpack.c.l.b16 %v1346
        %v1415 = vunpack.c.l.b16 %v1347
        %v1416 = vunpack.c.l.b16 %v1348
        %v1417 = vunpack.c.l.b16 %v1349
        %v1418 = vunpack.c.l.b16 %v1350
        %v1419 = vunpack.c.l.b16 %v1351
        %v1420 = vunpack.c.l.b16 %v1352
        %v1421 = vunpack.c.l.b16 %v1353
        %v1422 = vunpack.c.l.b16 %v1354
        %v1423 = vunpack.c.l.b16 %v1355
        %v1424 = vunpack.c.l.b16 %v1356
        %v1425 = vunpack.c.l.b16 %v1357
        %v1426 = vunpack.c.l.b16 %v1358
        %v1427 = vunpack.c.l.b16 %v1359
        %v1428 = vunpack.c.l.b16 %v1360
        %v1429 = vunpack.c.l.b16 %v1361
        %v1430 = vunpack.c.l.b16 %v1362
        %v1431 = vunpack.c.l.b16 %v1363
        %v1432 = vunpack.c.l.b16 %v1364
        %v1433 = vunpack.c.l.b16 %v1365
        %v1434 = vunpack.c.l.b16 %v1366
        %v1435 = vunpack.c.l.b16 %v1367
        %v1436 = vunpack.c.l.b16 %v1368
        %v1437 = vunpack.c.l.b16 %v1369
        %v1438 = vunpack.c.l.b16 %v1370
        %v1439 = vunpack.c.l.b16 %v1371
        %v1440 = vunpack.c.l.b16 %v1372
        %v1441 = vunpack.c.l.b16 %v1373
        %v1442 = vpack.c.b16 %v1411, %v1410
        %v1443 = vpack.c.b16 %v1413, %v1412
        %v1444 = vpack.c.b16 %v1415, %v1414
        %v1445 = vpack.c.b16 %v1417, %v1416
        %v1446 = vpack.c.b16 %v1419, %v1418
        %v1447 = vpack.c.b16 %v1421, %v1420
        %v1448 = vpack.c.b16 %v1423, %v1422
        %v1449 = vpack.c.b16 %v1425, %v1424
        %v1450 = vpack.c.b16 %v1427, %v1426
        %v1451 = vpack.c.b16 %v1429, %v1428
        %v1452 = vpack.c.b16 %v1431, %v1430
        %v1453 = vpack.c.b16 %v1433, %v1432
        %v1454 = vpack.c.b16 %v1435, %v1434
        %v1455 = vpack.c.b16 %v1437, %v1436
        %v1456 = vpack.c.b16 %v1439, %v1438
        %v1457 = vpack.c.b16 %v1441, %v1440
        %1474 = vmatprep.subr.bf16.mxu0 0
        %1475 = vmatpush1.bf16.msra.mxu0 %v1442
        %1476 = vmatprep.subr.bf16.mxu0 0
        %1477 = vmatpush1.bf16.msra.mxu0 %v1443
        %1478 = vmatprep.subr.bf16.mxu0 0
        %1479 = vmatpush1.bf16.msra.mxu0 %v1444
        %1480 = vmatprep.subr.bf16.mxu0 0
        %1481 = vmatpush1.bf16.msra.mxu0 %v1445
        %1482 = vmatprep.subr.bf16.mxu0 0
        %1483 = vmatpush1.bf16.msra.mxu0 %v1446
        %1484 = vmatprep.subr.bf16.mxu0 0
        %1485 = vmatpush1.bf16.msra.mxu0 %v1447
        %1486 = vmatprep.subr.bf16.mxu0 0
        %1487 = vmatpush1.bf16.msra.mxu0 %v1448
        %1488 = vmatprep.subr.bf16.mxu0 0
        %1489 = vmatpush1.bf16.msra.mxu0 %v1449
        %1490 = vmatprep.subr.bf16.mxu0 0
        %1491 = vmatpush1.bf16.msra.mxu0 %v1450
        %1492 = vmatprep.subr.bf16.mxu0 0
        %1493 = vmatpush1.bf16.msra.mxu0 %v1451
        %1494 = vmatprep.subr.bf16.mxu0 0
        %1495 = vmatpush1.bf16.msra.mxu0 %v1452
        %1496 = vmatprep.subr.bf16.mxu0 0
        %1497 = vmatpush1.bf16.msra.mxu0 %v1453
        %1498 = vmatprep.subr.bf16.mxu0 0
        %1499 = vmatpush1.bf16.msra.mxu0 %v1454
        %1500 = vmatprep.subr.bf16.mxu0 0
        %1501 = vmatpush1.bf16.msra.mxu0 %v1455
        %1502 = vmatprep.subr.bf16.mxu0 0
        %1503 = vmatpush1.bf16.msra.mxu0 %v1456
        %1504 = vmatprep.subr.bf16.mxu0 0
        %1505 = vmatpush1.bf16.msra.mxu0 %v1457
        %1506 = vmatprep.mubr.bf16.mxu0 %v1341
        %1507 = vmatmul.mubr.bf16.gmra.mrb[0].mxu0 %v1340
        %v1508 = vpop.f32.mrb[0].mxu0
        %v1509 = vadd.f32 %v1377, %v1508
        %v1510 = vpop.f32.mrb[0].mxu0
        %v1511 = vpop.f32.mrb[0].mxu0
        %v1512 = vpop.f32.mrb[0].mxu0
        %1513 = vdwg.mxu0
        %v1514 = vadd.f32 %v1232, %v1509
        %v1515 = vsel %vm561, %v1514, 0.0
        %1516 = vadd.xlane.f32.xlu0 %v1515
        %v1517 = vpop.xlane.xlu0 %1516
        %v1518 = vmul.f32 %v1517, %v1212
        %v1519 = vsub.f32 %v1514, %v1518
        %v1520 = vmul.f32 %v1519, %v1519
        %v1521 = vsel %vm561, %v1520, 0.0
        %1522 = vadd.xlane.f32.xlu0 %v1521
        %v1523 = vpop.xlane.xlu0 %1522
        %v1524 = vmul.f32 %v1523, %v1212
        %v1525 = vadd.f32 %v1524, 1e-05
        %v1526 = vrsqrt.pop %v1525
        %v1527 = vmul.f32 %v1519, %v1526
        %v1528 = vlaneseq
        %v1529 = vshrl.u32 %v1528, 7
        %v1530 = vsub.s32 6, %v1529
        %v1531 = vrot.slane %v519, %v1530
        %v1532 = vmul.f32 %v1527, %v1531
        %v1533 = vlaneseq
        %v1534 = vshrl.u32 %v1533, 7
        %v1535 = vsub.s32 7, %v1534
        %v1536 = vrot.slane %v519, %v1535
        %v1537 = vadd.f32 %v1532, %v1536
        %1538 = vst.msk [vmem:[%s503] sm:$0xff] %vm561, %v1537
        %s1539 = sand.u32 %s329, 1
        %s1540 = scalar_lea.sflag [#allocation4], %s1539
        %s1541 = sand.u32 %s329, 1
        %s1542 = smul.addr %s1541, 8
        %s1543 = scalar_lea.vmem [#allocation7], %s1542
        // Predicated region
        $region81: #{tpu_custom_call.1} parent=71 // pred_check
          %p1544 = pneg %p339
        $region82: #{tpu_custom_call.1} parent=71 // pred_check_branch
          %1546 = sbr.rel (%p1544) target = $region84
        $region83: #{tpu_custom_call.1} parent=71 // pred_region
          %s1548 = ssub.s32 128, 128
          %1549 = vsyncadd %s1540, %s1548
          %s1550 = smul.addr %s33, 128
          %s1551 = scalar_lea.hbm %s13, %s1550
          %s1553 = sshll.u32 %s1543, 4
          %s1554 = int_to_ptr.vmem [resolvable:$true] %s1553
          %1556 = dma.vmem_to_hbm [thread:$0]  %s1554, 128, %s1551, %s1540
        $region84: #{tpu_custom_call.1} parent=71 // pred_fallthru
          _
      $region72: #{tpu_custom_call.1} parent=5 // pred_fallthru
        _
      %p1557 = scmp.le.s32.totalorder 2, %s28
      // Predicated region
      $region85: #{tpu_custom_call.1} parent=5 // pred_check
        %p1558 = pneg %p1557
      $region86: #{tpu_custom_call.1} parent=5 // pred_check_branch
        %1560 = sbr.rel (%p1558) target = $region88
      $region87: #{tpu_custom_call.1} parent=5 // pred_region
        %s1561 = ssub.s32 %s28, 2
        // Predicated region
        $region89: #{tpu_custom_call.1} parent=87 // pred_check
          %p1562 = pneg %p345
        $region90: #{tpu_custom_call.1} parent=87 // pred_check_branch
          %1564 = sbr.rel (%p1562) target = $region92
        $region91: #{tpu_custom_call.1} parent=87 // pred_region
          %s1565 = sand.u32 %s330, 1
          %s1566 = scalar_lea.sflag [#allocation4], %s1565
          %s1567 = sand.u32 %s330, 1
          %s1568 = smul.addr %s1567, 8
          %s1569 = scalar_lea.vmem [#allocation7], %s1568
          %1570 = dma.done %s1566, 128
        $region92: #{tpu_custom_call.1} parent=87 // pred_fallthru
          _
      $region88: #{tpu_custom_call.1} parent=5 // pred_fallthru
        _
    $region6: #{tpu_custom_call.1} parent=1 // loop_footer
      %s32 = sadd.s32 1, %s28
    $region7: #{tpu_custom_call.1} parent=1 // loop_footer_branch
      %27 = sbr.rel target = $region3
    $region8: #{tpu_custom_call.1} parent=1 // loop_exit
      _
    %1571 = vsyncpa [#allocation3], 1
    %s1572 = scalar_lea.sflag [#allocation3], 1
    %1573 = vsyncpa %s1572, 1
    %1574 = vsyncpa [#allocation6], 1
    %s1575 = scalar_lea.sflag [#allocation6], 1
    %1576 = vsyncpa %s1575, 1
    %1577 = vsyncpa [#allocation4], 1
    %s1578 = scalar_lea.sflag [#allocation4], 1
    %1579 = vsyncpa %s1578, 1

// kernel: tpu_custom_call.1
$region0: #{tpu_custom_call.1}
  #allocation0 [shape = 'u32[]', space=smem, size = 0x4, offset = 0x4, fixed_abs, tag = 'smem constant byte address 0x4 - core index']
  #allocation1 [shape = 'u32[144,128]{1,0:T(1,128)}', space=vmem, size = 0x12000, scoped, tag = 'internal scratch']
  %s0 = inlined_call_operand.hbm [shape: bf16[2,16,64], index: 0, kind: input, shape index: {}]
  %s1 = inlined_call_operand.vmem [shape: f32[2,1,16], index: 1, kind: input, shape index: {}]
  %s2 = inlined_call_operand.hbm [shape: f32[2,1,16], index: 2, kind: input, shape index: {}]
  %s3 = inlined_call_operand.vmem [shape: bf16[64,64], index: 3, kind: input, shape index: {}]
  %s4 = inlined_call_operand.vmem [shape: f32[8,64], index: 4, kind: input, shape index: {}]
  %s5 = inlined_call_operand.vmem [shape: f32[8,1,64], index: 5, kind: input, shape index: {}]
  %s6 = inlined_call_operand.vmem [shape: bf16[64,64], index: 6, kind: input, shape index: {}]
  %s7 = inlined_call_operand.vmem [shape: bf16[64,64], index: 7, kind: input, shape index: {}]
  %s8 = inlined_call_operand.vmem [shape: bf16[64,64], index: 8, kind: input, shape index: {}]
  %s9 = inlined_call_operand.vmem [shape: bf16[64,256], index: 9, kind: input, shape index: {}]
  %s10 = inlined_call_operand.vmem [shape: bf16[256,64], index: 10, kind: input, shape index: {}]
  %s11 = inlined_call_operand.vmem [shape: f32[1,256], index: 11, kind: input, shape index: {}]
  %s12 = inlined_call_operand.vmem [shape: f32[8,64], index: 12, kind: input, shape index: {}]
  %s13 = inlined_call_operand.hbm [shape: f32[2,8,64], index: 13, kind: output, shape index: {}]
  %s14 = sld [smem:[#allocation0]]
  $region93: #{tpu_custom_call.1} parent=0
    _
  %s16 = ssub.s32 1, %s14
  %s17 = scalar_select 0, %s16, %s14
  $region1: #{tpu_custom_call.1} parent=0
    #allocation2 [shape = 'u8[8192]{0}', space=vmem, size = 0x2000, scoped, tag = 'input window, operand 0']
    #allocation3 [shape = 's32[2]{0}', space=sflag, size = 0x8, scoped, tag = 'scoped memory for tpu_custom_call.1']
    #allocation4 [shape = 's32[2]{0}', space=sflag, size = 0x8, scoped, tag = 'scoped memory for tpu_custom_call.1']
    #allocation5 [shape = 'u8[1024]{0}', space=vmem, size = 0x400, scoped, tag = 'input window, operand 2']
    #allocation6 [shape = 's32[2]{0}', space=sflag, size = 0x8, scoped, tag = 'scoped memory for tpu_custom_call.1']
    #allocation7 [shape = 'u8[8192]{0}', space=vmem, size = 0x2000, scoped, tag = 'output window, operand 0']
    %18 = vsyncpa [#allocation3], 0
    %s19 = scalar_lea.sflag [#allocation3], 1
    %20 = vsyncpa %s19, 0
    %21 = vsyncpa [#allocation6], 0
    %s22 = scalar_lea.sflag [#allocation6], 1
    %23 = vsyncpa %s22, 0
    %24 = vsyncpa [#allocation4], 0
    %s25 = scalar_lea.sflag [#allocation4], 1
    %26 = vsyncpa %s25, 0
    loop: start=0, step=1, limit=4
    $region2: #{tpu_custom_call.1} parent=1 // loop_pre_header
      _
    $region3: #{tpu_custom_call.1} parent=1 // loop_header
      %s28 = sphi 0, %s32
      %p29 = scmp.ge.s32.totalorder %s28, 4
      %s38 = sphi 0, %s40
      %s41 = sphi 0, %s38
      %s42 = sphi 0, %s41
      %s58 = sphi 0, %s42
      %s64 = sphi 0, %s66
      %s67 = sphi 0, %s64
      %s68 = sphi 0, %s67
      %s84 = sphi 0, %s68
      %s90 = sphi 0, %s92
      %s93 = sphi 0, %s90
      %s94 = sphi 0, %s93
      %s110 = sphi 0, %s94
      %s114 = sphi 0, %s114
      %s116 = sphi 0, %s114
      %s117 = sphi 0, %s116
      %s131 = sphi 0, %s117
      %s135 = sphi 0, %s135
      %s137 = sphi 0, %s135
      %s138 = sphi 0, %s137
      %s152 = sphi 0, %s138
      %s156 = sphi 0, %s156
      %s158 = sphi 0, %s156
      %s159 = sphi 0, %s158
      %s173 = sphi 0, %s159
      %s177 = sphi 0, %s177
      %s179 = sphi 0, %s177
      %s180 = sphi 0, %s179
      %s194 = sphi 0, %s180
      %s198 = sphi 0, %s198
      %s200 = sphi 0, %s198
      %s201 = sphi 0, %s200
      %s215 = sphi 0, %s201
      %s219 = sphi 0, %s219
      %s221 = sphi 0, %s219
      %s222 = sphi 0, %s221
      %s236 = sphi 0, %s222
      %s240 = sphi 0, %s240
      %s242 = sphi 0, %s240
      %s243 = sphi 0, %s242
      %s257 = sphi 0, %s243
      %s261 = sphi 0, %s261
      %s263 = sphi 0, %s261
      %s264 = sphi 0, %s263
      %s278 = sphi 0, %s264
      %s282 = sphi 0, %s282
      %s284 = sphi 0, %s282
      %s285 = sphi 0, %s284
      %s299 = sphi 0, %s285
      %s303 = sphi 0, %s303
      %s305 = sphi 0, %s303
      %s306 = sphi 0, %s305
      %s320 = sphi 0, %s306
      %s326 = sphi 0, %s328
      %s329 = sphi 0, %s326
      %s330 = sphi 0, %s329
      %s346 = sphi 0, %s330
    $region4: #{tpu_custom_call.1} parent=1 // loop_header_branch
      %31 = sbr.rel (%p29) target = $region8
    $region5: #{tpu_custom_call.1} parent=1 // loop_body
      %s33 = ssub.s32 %s28, 1
      %s34 = ssub.s32 %s28, 2
      %s35 = sadd.s32 %s28, 1
      %s36 = ssub.s32 %s28, %s35
      %p37 = scmp.eq.s32.totalorder %s36, 0
      %s39 = sadd.s32 %s38, 1
      %s40 = scalar_select %p37, %s38, %s39
      %p43 = pneg %p37
      %p44 = scmp.eq.s32.totalorder %s28, 1
      %p45 = por %p43, %p44
      %p46 = scmp.ne.s32.totalorder %s38, %s41
      %p47 = scmp.eq.s32.totalorder %s28, 0
      %p48 = por %p46, %p47
      %p49 = scmp.ne.s32.totalorder %s38, %s41
      %p50 = scmp.eq.s32.totalorder %s33, 1
      %p51 = por %p49, %p50
      %p52 = scmp.ne.s32.totalorder %s41, %s42
      %p53 = scmp.eq.s32.totalorder %s33, 0
      %p54 = por %p52, %p53
      %p55 = scmp.ne.s32.totalorder %s41, %s42
      %p56 = scmp.eq.s32.totalorder %s34, 1
      %p57 = por %p55, %p56
      %p59 = scmp.ne.s32.totalorder %s42, %s58
      %p60 = scmp.eq.s32.totalorder %s34, 0
      %p61 = por %p59, %p60
      %s62 = ssub.s32 %s28, %s35
      %p63 = scmp.eq.s32.totalorder %s62, 0
      %s65 = sadd.s32 %s64, 1
      %s66 = scalar_select %p63, %s64, %s65
      %p69 = pneg %p63
      %p70 = scmp.eq.s32.totalorder %s28, 1
      %p71 = por %p69, %p70
      %p72 = scmp.ne.s32.totalorder %s64, %s67
      %p73 = scmp.eq.s32.totalorder %s28, 0
      %p74 = por %p72, %p73
      %p75 = scmp.ne.s32.totalorder %s64, %s67
      %p76 = scmp.eq.s32.totalorder %s33, 1
      %p77 = por %p75, %p76
      %p78 = scmp.ne.s32.totalorder %s67, %s68
      %p79 = scmp.eq.s32.totalorder %s33, 0
      %p80 = por %p78, %p79
      %p81 = scmp.ne.s32.totalorder %s67, %s68
      %p82 = scmp.eq.s32.totalorder %s34, 1
      %p83 = por %p81, %p82
      %p85 = scmp.ne.s32.totalorder %s68, %s84
      %p86 = scmp.eq.s32.totalorder %s34, 0
      %p87 = por %p85, %p86
      %s88 = ssub.s32 %s28, %s35
      %p89 = scmp.eq.s32.totalorder %s88, 0
      %s91 = sadd.s32 %s90, 1
      %s92 = scalar_select %p89, %s90, %s91
      %p95 = pneg %p89
      %p96 = scmp.eq.s32.totalorder %s28, 1
      %p97 = por %p95, %p96
      %p98 = scmp.ne.s32.totalorder %s90, %s93
      %p99 = scmp.eq.s32.totalorder %s28, 0
      %p100 = por %p98, %p99
      %p101 = scmp.ne.s32.totalorder %s90, %s93
      %p102 = scmp.eq.s32.totalorder %s33, 1
      %p103 = por %p101, %p102
      %p104 = scmp.ne.s32.totalorder %s93, %s94
      %p105 = scmp.eq.s32.totalorder %s33, 0
      %p106 = por %p104, %p105
      %p107 = scmp.ne.s32.totalorder %s93, %s94
      %p108 = scmp.eq.s32.totalorder %s34, 1
      %p109 = por %p107, %p108
      %p111 = scmp.ne.s32.totalorder %s94, %s110
      %p112 = scmp.eq.s32.totalorder %s34, 0
      %p113 = por %p111, %p112
      %s115 = sadd.s32 %s114, 1
      %p118 = scmp.eq.s32.totalorder %s28, 1
      %p119 = scmp.ne.s32.totalorder %s114, %s116
      %p120 = scmp.eq.s32.totalorder %s28, 0
      %p121 = por %p119, %p120
      %p122 = scmp.ne.s32.totalorder %s114, %s116
      %p123 = scmp.eq.s32.totalorder %s33, 1
      %p124 = por %p122, %p123
      %p125 = scmp.ne.s32.totalorder %s116, %s117
      %p126 = scmp.eq.s32.totalorder %s33, 0
      %p127 = por %p125, %p126
      %p128 = scmp.ne.s32.totalorder %s116, %s117
      %p129 = scmp.eq.s32.totalorder %s34, 1
      %p130 = por %p128, %p129
      %p132 = scmp.ne.s32.totalorder %s117, %s131
      %p133 = scmp.eq.s32.totalorder %s34, 0
      %p134 = por %p132, %p133
      %s136 = sadd.s32 %s135, 1
      %p139 = scmp.eq.s32.totalorder %s28, 1
      %p140 = scmp.ne.s32.totalorder %s135, %s137
      %p141 = scmp.eq.s32.totalorder %s28, 0
      %p142 = por %p140, %p141
      %p143 = scmp.ne.s32.totalorder %s135, %s137
      %p144 = scmp.eq.s32.totalorder %s33, 1
      %p145 = por %p143, %p144
      %p146 = scmp.ne.s32.totalorder %s137, %s138
      %p147 = scmp.eq.s32.totalorder %s33, 0
      %p148 = por %p146, %p147
      %p149 = scmp.ne.s32.totalorder %s137, %s138
      %p150 = scmp.eq.s32.totalorder %s34, 1
      %p151 = por %p149, %p150
      %p153 = scmp.ne.s32.totalorder %s138, %s152
      %p154 = scmp.eq.s32.totalorder %s34, 0
      %p155 = por %p153, %p154
      %s157 = sadd.s32 %s156, 1
      %p160 = scmp.eq.s32.totalorder %s28, 1
      %p161 = scmp.ne.s32.totalorder %s156, %s158
      %p162 = scmp.eq.s32.totalorder %s28, 0
      %p163 = por %p161, %p162
      %p164 = scmp.ne.s32.totalorder %s156, %s158
      %p165 = scmp.eq.s32.totalorder %s33, 1
      %p166 = por %p164, %p165
      %p167 = scmp.ne.s32.totalorder %s158, %s159
      %p168 = scmp.eq.s32.totalorder %s33, 0
      %p169 = por %p167, %p168
      %p170 = scmp.ne.s32.totalorder %s158, %s159
      %p171 = scmp.eq.s32.totalorder %s34, 1
      %p172 = por %p170, %p171
      %p174 = scmp.ne.s32.totalorder %s159, %s173
      %p175 = scmp.eq.s32.totalorder %s34, 0
      %p176 = por %p174, %p175
      %s178 = sadd.s32 %s177, 1
      %p181 = scmp.eq.s32.totalorder %s28, 1
      %p182 = scmp.ne.s32.totalorder %s177, %s179
      %p183 = scmp.eq.s32.totalorder %s28, 0
      %p184 = por %p182, %p183
      %p185 = scmp.ne.s32.totalorder %s177, %s179
      %p186 = scmp.eq.s32.totalorder %s33, 1
      %p187 = por %p185, %p186
      %p188 = scmp.ne.s32.totalorder %s179, %s180
      %p189 = scmp.eq.s32.totalorder %s33, 0
      %p190 = por %p188, %p189
      %p191 = scmp.ne.s32.totalorder %s179, %s180
      %p192 = scmp.eq.s32.totalorder %s34, 1
      %p193 = por %p191, %p192
      %p195 = scmp.ne.s32.totalorder %s180, %s194
      %p196 = scmp.eq.s32.totalorder %s34, 0
      %p197 = por %p195, %p196
      %s199 = sadd.s32 %s198, 1
      %p202 = scmp.eq.s32.totalorder %s28, 1
      %p203 = scmp.ne.s32.totalorder %s198, %s200
      %p204 = scmp.eq.s32.totalorder %s28, 0
      %p205 = por %p203, %p204
      %p206 = scmp.ne.s32.totalorder %s198, %s200
      %p207 = scmp.eq.s32.totalorder %s33, 1
      %p208 = por %p206, %p207
      %p209 = scmp.ne.s32.totalorder %s200, %s201
      %p210 = scmp.eq.s32.totalorder %s33, 0
      %p211 = por %p209, %p210
      %p212 = scmp.ne.s32.totalorder %s200, %s201
      %p213 = scmp.eq.s32.totalorder %s34, 1
      %p214 = por %p212, %p213
      %p216 = scmp.ne.s32.totalorder %s201, %s215
      %p217 = scmp.eq.s32.totalorder %s34, 0
      %p218 = por %p216, %p217
      %s220 = sadd.s32 %s219, 1
      %p223 = scmp.eq.s32.totalorder %s28, 1
      %p224 = scmp.ne.s32.totalorder %s219, %s221
      %p225 = scmp.eq.s32.totalorder %s28, 0
      %p226 = por %p224, %p225
      %p227 = scmp.ne.s32.totalorder %s219, %s221
      %p228 = scmp.eq.s32.totalorder %s33, 1
      %p229 = por %p227, %p228
      %p230 = scmp.ne.s32.totalorder %s221, %s222
      %p231 = scmp.eq.s32.totalorder %s33, 0
      %p232 = por %p230, %p231
      %p233 = scmp.ne.s32.totalorder %s221, %s222
      %p234 = scmp.eq.s32.totalorder %s34, 1
      %p235 = por %p233, %p234
      %p237 = scmp.ne.s32.totalorder %s222, %s236
      %p238 = scmp.eq.s32.totalorder %s34, 0
      %p239 = por %p237, %p238
      %s241 = sadd.s32 %s240, 1
      %p244 = scmp.eq.s32.totalorder %s28, 1
      %p245 = scmp.ne.s32.totalorder %s240, %s242
      %p246 = scmp.eq.s32.totalorder %s28, 0
      %p247 = por %p245, %p246
      %p248 = scmp.ne.s32.totalorder %s240, %s242
      %p249 = scmp.eq.s32.totalorder %s33, 1
      %p250 = por %p248, %p249
      %p251 = scmp.ne.s32.totalorder %s242, %s243
      %p252 = scmp.eq.s32.totalorder %s33, 0
      %p253 = por %p251, %p252
      %p254 = scmp.ne.s32.totalorder %s242, %s243
      %p255 = scmp.eq.s32.totalorder %s34, 1
      %p256 = por %p254, %p255
      %p258 = scmp.ne.s32.totalorder %s243, %s257
      %p259 = scmp.eq.s32.totalorder %s34, 0
      %p260 = por %p258, %p259
      %s262 = sadd.s32 %s261, 1
      %p265 = scmp.eq.s32.totalorder %s28, 1
      %p266 = scmp.ne.s32.totalorder %s261, %s263
      %p267 = scmp.eq.s32.totalorder %s28, 0
      %p268 = por %p266, %p267
      %p269 = scmp.ne.s32.totalorder %s261, %s263
      %p270 = scmp.eq.s32.totalorder %s33, 1
      %p271 = por %p269, %p270
      %p272 = scmp.ne.s32.totalorder %s263, %s264
      %p273 = scmp.eq.s32.totalorder %s33, 0
      %p274 = por %p272, %p273
      %p275 = scmp.ne.s32.totalorder %s263, %s264
      %p276 = scmp.eq.s32.totalorder %s34, 1
      %p277 = por %p275, %p276
      %p279 = scmp.ne.s32.totalorder %s264, %s278
      %p280 = scmp.eq.s32.totalorder %s34, 0
      %p281 = por %p279, %p280
      %s283 = sadd.s32 %s282, 1
      %p286 = scmp.eq.s32.totalorder %s28, 1
      %p287 = scmp.ne.s32.totalorder %s282, %s284
      %p288 = scmp.eq.s32.totalorder %s28, 0
      %p289 = por %p287, %p288
      %p290 = scmp.ne.s32.totalorder %s282, %s284
      %p291 = scmp.eq.s32.totalorder %s33, 1
      %p292 = por %p290, %p291
      %p293 = scmp.ne.s32.totalorder %s284, %s285
      %p294 = scmp.eq.s32.totalorder %s33, 0
      %p295 = por %p293, %p294
      %p296 = scmp.ne.s32.totalorder %s284, %s285
      %p297 = scmp.eq.s32.totalorder %s34, 1
      %p298 = por %p296, %p297
      %p300 = scmp.ne.s32.totalorder %s285, %s299
      %p301 = scmp.eq.s32.totalorder %s34, 0
      %p302 = por %p300, %p301
      %s304 = sadd.s32 %s303, 1
      %p307 = scmp.eq.s32.totalorder %s28, 1
      %p308 = scmp.ne.s32.totalorder %s303, %s305
      %p309 = scmp.eq.s32.totalorder %s28, 0
      %p310 = por %p308, %p309
      %p311 = scmp.ne.s32.totalorder %s303, %s305
      %p312 = scmp.eq.s32.totalorder %s33, 1
      %p313 = por %p311, %p312
      %p314 = scmp.ne.s32.totalorder %s305, %s306
      %p315 = scmp.eq.s32.totalorder %s33, 0
      %p316 = por %p314, %p315
      %p317 = scmp.ne.s32.totalorder %s305, %s306
      %p318 = scmp.eq.s32.totalorder %s34, 1
      %p319 = por %p317, %p318
      %p321 = scmp.ne.s32.totalorder %s306, %s320
      %p322 = scmp.eq.s32.totalorder %s34, 0
      %p323 = por %p321, %p322
      %s324 = ssub.s32 %s28, %s35
      %p325 = scmp.eq.s32.totalorder %s324, 0
      %s327 = sadd.s32 %s326, 1
      %s328 = scalar_select %p325, %s326, %s327
      %p331 = pneg %p325
      %p332 = scmp.eq.s32.totalorder %s28, 1
      %p333 = por %p331, %p332
      %p334 = scmp.ne.s32.totalorder %s326, %s329
      %p335 = scmp.eq.s32.totalorder %s28, 0
      %p336 = por %p334, %p335
      %p337 = scmp.ne.s32.totalorder %s326, %s329
      %p338 = scmp.eq.s32.totalorder %s33, 1
      %p339 = por %p337, %p338
      %p340 = scmp.ne.s32.totalorder %s329, %s330
      %p341 = scmp.eq.s32.totalorder %s33, 0
      %p342 = por %p340, %p341
      %p343 = scmp.ne.s32.totalorder %s329, %s330
      %p344 = scmp.eq.s32.totalorder %s34, 1
      %p345 = por %p343, %p344
      %p347 = scmp.ne.s32.totalorder %s330, %s346
      %p348 = scmp.eq.s32.totalorder %s34, 0
      %p349 = por %p347, %p348
      %p350 = scmp.le.s32.totalorder 1, %s28
      %p351 = scmp.lt.s32.totalorder %s28, 3
      %p352 = pnand %p350, %p351
      %p353 = pneg %p352
      // Predicated region
      $region9: #{tpu_custom_call.1} parent=5 // pred_check
        _
      $region10: #{tpu_custom_call.1} parent=5 // pred_check_branch
        %355 = sbr.rel (%p352) target = $region12
      $region11: #{tpu_custom_call.1} parent=5 // pred_region
        %s356 = ssub.s32 %s28, 1
        // Predicated region
        $region13: #{tpu_custom_call.1} parent=11 // pred_check
          %p357 = pneg %p127
        $region14: #{tpu_custom_call.1} parent=11 // pred_check_branch
          %359 = sbr.rel (%p357) target = $region16
        $region15: #{tpu_custom_call.1} parent=11 // pred_region
          _
        $region16: #{tpu_custom_call.1} parent=11 // pred_fallthru
          _
        // Predicated region
        $region17: #{tpu_custom_call.1} parent=11 // pred_check
          %p360 = pneg %p148
        $region18: #{tpu_custom_call.1} parent=11 // pred_check_branch
          %362 = sbr.rel (%p360) target = $region20
        $region19: #{tpu_custom_call.1} parent=11 // pred_region
          _
        $region20: #{tpu_custom_call.1} parent=11 // pred_fallthru
          _
        // Predicated region
        $region21: #{tpu_custom_call.1} parent=11 // pred_check
          %p363 = pneg %p169
        $region22: #{tpu_custom_call.1} parent=11 // pred_check_branch
          %365 = sbr.rel (%p363) target = $region24
        $region23: #{tpu_custom_call.1} parent=11 // pred_region
          _
        $region24: #{tpu_custom_call.1} parent=11 // pred_fallthru
          _
        // Predicated region
        $region25: #{tpu_custom_call.1} parent=11 // pred_check
          %p366 = pneg %p190
        $region26: #{tpu_custom_call.1} parent=11 // pred_check_branch
          %368 = sbr.rel (%p366) target = $region28
        $region27: #{tpu_custom_call.1} parent=11 // pred_region
          _
        $region28: #{tpu_custom_call.1} parent=11 // pred_fallthru
          _
        // Predicated region
        $region29: #{tpu_custom_call.1} parent=11 // pred_check
          %p369 = pneg %p211
        $region30: #{tpu_custom_call.1} parent=11 // pred_check_branch
          %371 = sbr.rel (%p369) target = $region32
        $region31: #{tpu_custom_call.1} parent=11 // pred_region
          _
        $region32: #{tpu_custom_call.1} parent=11 // pred_fallthru
          _
        // Predicated region
        $region33: #{tpu_custom_call.1} parent=11 // pred_check
          %p372 = pneg %p232
        $region34: #{tpu_custom_call.1} parent=11 // pred_check_branch
          %374 = sbr.rel (%p372) target = $region36
        $region35: #{tpu_custom_call.1} parent=11 // pred_region
          _
        $region36: #{tpu_custom_call.1} parent=11 // pred_fallthru
          _
        // Predicated region
        $region37: #{tpu_custom_call.1} parent=11 // pred_check
          %p375 = pneg %p253
        $region38: #{tpu_custom_call.1} parent=11 // pred_check_branch
          %377 = sbr.rel (%p375) target = $region40
        $region39: #{tpu_custom_call.1} parent=11 // pred_region
          _
        $region40: #{tpu_custom_call.1} parent=11 // pred_fallthru
          _
        // Predicated region
        $region41: #{tpu_custom_call.1} parent=11 // pred_check
          %p378 = pneg %p274
        $region42: #{tpu_custom_call.1} parent=11 // pred_check_branch
          %380 = sbr.rel (%p378) target = $region44
        $region43: #{tpu_custom_call.1} parent=11 // pred_region
          _
        $region44: #{tpu_custom_call.1} parent=11 // pred_fallthru
          _
        // Predicated region
        $region45: #{tpu_custom_call.1} parent=11 // pred_check
          %p381 = pneg %p295
        $region46: #{tpu_custom_call.1} parent=11 // pred_check_branch
          %383 = sbr.rel (%p381) target = $region48
        $region47: #{tpu_custom_call.1} parent=11 // pred_region
          _
        $region48: #{tpu_custom_call.1} parent=11 // pred_fallthru
          _
        // Predicated region
        $region49: #{tpu_custom_call.1} parent=11 // pred_check
          %p384 = pneg %p316
        $region50: #{tpu_custom_call.1} parent=11 // pred_check_branch
          %386 = sbr.rel (%p384) target = $region52
        $region51: #{tpu_custom_call.1} parent=11 // pred_region
          _
        $region52: #{tpu_custom_call.1} parent=11 // pred_fallthru
          _
      $region12: #{tpu_custom_call.1} parent=5 // pred_fallthru
        _
      %p387 = scmp.lt.s32.totalorder %s28, 2
      // Predicated region
      $region53: #{tpu_custom_call.1} parent=5 // pred_check
        %p388 = pneg %p387
      $region54: #{tpu_custom_call.1} parent=5 // pred_check_branch
        %390 = sbr.rel (%p388) target = $region56
      $region55: #{tpu_custom_call.1} parent=5 // pred_region
        // Predicated region
        $region57: #{tpu_custom_call.1} parent=55 // pred_check
          %p391 = pneg %p48
        $region58: #{tpu_custom_call.1} parent=55 // pred_check_branch
          %393 = sbr.rel (%p391) target = $region60
        $region59: #{tpu_custom_call.1} parent=55 // pred_region
          %s394 = sand.u32 %s38, 1
          %s395 = scalar_lea.sflag [#allocation3], %s394
          %s396 = sand.u32 %s38, 1
          %s397 = smul.addr %s396, 8
          %s398 = scalar_lea.vmem [#allocation2], %s397
          %s400 = ssub.s32 128, 128
          %401 = vsyncadd %s395, %s400
          %s402 = smul.addr %s28, 2
          %s403 = smul.addr %s402, 64
          %s404 = scalar_lea.hbm %s0, %s403
          %s405 = sshll.u32 %s398, 4
          %s406 = int_to_ptr.vmem [resolvable:$true] %s405
          %411 = dma.hbm_to_vmem [thread:$0]  %s404, 128, %s406, %s395, 64, 64, 4
        $region60: #{tpu_custom_call.1} parent=55 // pred_fallthru
          _
        // Predicated region
        $region61: #{tpu_custom_call.1} parent=55 // pred_check
          %p412 = pneg %p74
        $region62: #{tpu_custom_call.1} parent=55 // pred_check_branch
          %414 = sbr.rel (%p412) target = $region64
        $region63: #{tpu_custom_call.1} parent=55 // pred_region
          %p415 = scmp.lt.s32.totalorder %s28, 1
          %s416 = scalar_select %p415, %s28, 1
          %s417 = scalar_lea.vmem %s1, %s416
        $region64: #{tpu_custom_call.1} parent=55 // pred_fallthru
          _
        // Predicated region
        $region65: #{tpu_custom_call.1} parent=55 // pred_check
          %p418 = pneg %p100
        $region66: #{tpu_custom_call.1} parent=55 // pred_check_branch
          %420 = sbr.rel (%p418) target = $region68
        $region67: #{tpu_custom_call.1} parent=55 // pred_region
          %s421 = sand.u32 %s90, 1
          %s422 = scalar_lea.sflag [#allocation6], %s421
          %s423 = sand.u32 %s90, 1
          %s424 = scalar_lea.vmem [#allocation5], %s423
          %s426 = ssub.s32 16, 16
          %427 = vsyncadd %s422, %s426
          %s428 = smul.addr %s28, 16
          %s429 = scalar_lea.hbm %s2, %s428
          %s431 = sshll.u32 %s424, 4
          %s432 = int_to_ptr.vmem [resolvable:$true] %s431
          %434 = dma.hbm_to_vmem [thread:$0]  %s429, 16, %s432, %s422
        $region68: #{tpu_custom_call.1} parent=55 // pred_fallthru
          _
      $region56: #{tpu_custom_call.1} parent=5 // pred_fallthru
        _
      %p435 = scmp.le.s32.totalorder 1, %s28
      %p436 = scmp.lt.s32.totalorder %s28, 3
      %p437 = pnand %p435, %p436
      %p438 = pneg %p437
      // Predicated region
      $region69: #{tpu_custom_call.1} parent=5 // pred_check
        _
      $region70: #{tpu_custom_call.1} parent=5 // pred_check_branch
        %440 = sbr.rel (%p437) target = $region72
      $region71: #{tpu_custom_call.1} parent=5 // pred_region
        %s441 = ssub.s32 %s28, 1
        %s442 = sand.u32 %s41, 1
        %s443 = scalar_lea.sflag [#allocation3], %s442
        %s444 = sand.u32 %s41, 1
        %s445 = smul.addr %s444, 8
        %s446 = scalar_lea.vmem [#allocation2], %s445
        // Predicated region
        $region73: #{tpu_custom_call.1} parent=71 // pred_check
          %p447 = pneg %p54
        $region74: #{tpu_custom_call.1} parent=71 // pred_check_branch
          %449 = sbr.rel (%p447) target = $region76
        $region75: #{tpu_custom_call.1} parent=71 // pred_region
          %450 = dma.done %s443, 128
        $region76: #{tpu_custom_call.1} parent=71 // pred_fallthru
          _
        %s451 = sand.u32 %s93, 1
        %s452 = scalar_lea.sflag [#allocation6], %s451
        %s453 = sand.u32 %s93, 1
        %s454 = scalar_lea.vmem [#allocation5], %s453
        // Predicated region
        $region77: #{tpu_custom_call.1} parent=71 // pred_check
          %p455 = pneg %p106
        $region78: #{tpu_custom_call.1} parent=71 // pred_check_branch
          %457 = sbr.rel (%p455) target = $region80
        $region79: #{tpu_custom_call.1} parent=71 // pred_region
          %458 = dma.done %s452, 16
        $region80: #{tpu_custom_call.1} parent=71 // pred_fallthru
          _
        %s459 = sand.u32 %s41, 1
        %s460 = scalar_lea.sflag [#allocation3], %s459
        %s461 = sand.u32 %s41, 1
        %s462 = smul.addr %s461, 8
        %s463 = scalar_lea.vmem [#allocation2], %s462
        %p464 = pneg %p54
        %p465 = pneg %p51
        %p466 = scmp.lt.s32.totalorder %s33, 1
        %s467 = scalar_select %p466, %s33, 1
        %s468 = scalar_lea.vmem %s1, %s467
        %p469 = pneg %p80
        %p470 = pneg %p77
        %s471 = sand.u32 %s93, 1
        %s472 = scalar_lea.sflag [#allocation6], %s471
        %s473 = sand.u32 %s93, 1
        %s474 = scalar_lea.vmem [#allocation5], %s473
        %p475 = pneg %p106
        %p476 = pneg %p103
        %p477 = pneg %p127
        %p478 = pneg %p124
        %p479 = pneg %p148
        %p480 = pneg %p145
        %p481 = pneg %p169
        %p482 = pneg %p166
        %p483 = pneg %p190
        %p484 = pneg %p187
        %p485 = pneg %p211
        %p486 = pneg %p208
        %p487 = pneg %p232
        %p488 = pneg %p229
        %p489 = pneg %p253
        %p490 = pneg %p250
        %p491 = pneg %p274
        %p492 = pneg %p271
        %p493 = pneg %p295
        %p494 = pneg %p292
        %p495 = pneg %p316
        %p496 = pneg %p313
        %p497 = pneg %p342
        %p498 = pneg %p339
        %s499 = sand.u32 %s329, 1
        %s500 = scalar_lea.sflag [#allocation4], %s499
        %s501 = sand.u32 %s329, 1
        %s502 = smul.addr %s501, 8
        %s503 = scalar_lea.vmem [#allocation7], %s502
        %p504 = scmp.lt.s32.totalorder %s33, 1
        %s505 = scalar_select %p504, %s33, 1
        %s506 = scalar_lea.vmem %s1, %s505
        %v508 = vld [vmem:[%s446] sm:$0xf]
        %v509 = vld [vmem:[%s446 + $0x4] sm:$0xf]
        %v510 = vld [vmem:[%s506] sm:$0x1]
        %v511 = vld [vmem:[%s3] sm:$0xf]
        %v512 = vld [vmem:[%s3 + $0x4] sm:$0xf]
        %v513 = vld [vmem:[%s3 + $0x8] sm:$0xf]
        %v514 = vld [vmem:[%s3 + $0xc] sm:$0xf]
        %v515 = vld [vmem:[%s3 + $0x10] sm:$0xf]
        %v516 = vld [vmem:[%s3 + $0x14] sm:$0xf]
        %v517 = vld [vmem:[%s3 + $0x18] sm:$0xf]
        %v518 = vld [vmem:[%s3 + $0x1c] sm:$0xf]
        %v519 = vld [vmem:[%s12] sm:$0xff]
        %v520 = vld [vmem:[%s6] sm:$0xf]
        %v521 = vld [vmem:[%s6 + $0x4] sm:$0xf]
        %v522 = vld [vmem:[%s6 + $0x8] sm:$0xf]
        %v523 = vld [vmem:[%s6 + $0xc] sm:$0xf]
        %v524 = vld [vmem:[%s6 + $0x10] sm:$0xf]
        %v525 = vld [vmem:[%s6 + $0x14] sm:$0xf]
        %v526 = vld [vmem:[%s6 + $0x18] sm:$0xf]
        %v527 = vld [vmem:[%s6 + $0x1c] sm:$0xf]
        %v528 = vlaneseq
        %v529 = vshrl.u32 %v528, 7
        %v530 = vsub.s32 0, %v529
        %v531 = vrot.slane %v519, %v530
        %v534 = vunpack.c.l.b16 %v508
        %v535 = vunpack.c.l.b16 %v509
        %v536 = vpack.c.b16 %v535, %v534
        %v545 = vunpack.c.l.b16 %v520
        %v546 = vunpack.c.l.b16 %v521
        %v547 = vunpack.c.l.b16 %v522
        %v548 = vunpack.c.l.b16 %v523
        %v549 = vunpack.c.l.b16 %v524
        %v550 = vunpack.c.l.b16 %v525
        %v551 = vunpack.c.l.b16 %v526
        %v552 = vunpack.c.l.b16 %v527
        %v553 = vpack.c.b16 %v546, %v545
        %v554 = vpack.c.b16 %v548, %v547
        %v555 = vpack.c.b16 %v550, %v549
        %v556 = vpack.c.b16 %v552, %v551
        %vm561 = vcmask 523264
        %v563 = vsel %vm561, %v536, 0
        %565 = vmatprep.subr.bf16.mxu0 0
        %566 = vmatpush1.bf16.msra.mxu0 %v553
        %567 = vmatprep.subr.bf16.mxu0 0
        %568 = vmatpush1.bf16.msra.mxu0 %v554
        %569 = vmatprep.subr.bf16.mxu0 0
        %570 = vmatpush1.bf16.msra.mxu0 %v555
        %571 = vmatprep.subr.bf16.mxu0 0
        %572 = vmatpush1.bf16.msra.mxu0 %v556
        %573 = vmatprep.subr.bf16.mxu0 0
        %574 = vmatpush1.bf16.msra.mxu0 0
        %575 = vmatprep.subr.bf16.mxu0 0
        %576 = vmatpush1.bf16.msra.mxu0 0
        %577 = vmatprep.subr.bf16.mxu0 0
        %578 = vmatpush1.bf16.msra.mxu0 0
        %579 = vmatprep.subr.bf16.mxu0 0
        %580 = vmatpush1.bf16.msra.mxu0 0
        %581 = vmatprep.subr.bf16.mxu0 0
        %582 = vmatpush1.bf16.msra.mxu0 0
        %583 = vmatprep.subr.bf16.mxu0 0
        %584 = vmatpush1.bf16.msra.mxu0 0
        %585 = vmatprep.subr.bf16.mxu0 0
        %586 = vmatpush1.bf16.msra.mxu0 0
        %587 = vmatprep.subr.bf16.mxu0 0
        %588 = vmatpush1.bf16.msra.mxu0 0
        %589 = vmatprep.subr.bf16.mxu0 0
        %590 = vmatpush1.bf16.msra.mxu0 0
        %591 = vmatprep.subr.bf16.mxu0 0
        %592 = vmatpush1.bf16.msra.mxu0 0
        %593 = vmatprep.subr.bf16.mxu0 0
        %594 = vmatpush1.bf16.msra.mxu0 0
        %595 = vmatprep.subr.bf16.mxu0 0
        %596 = vmatpush1.bf16.msra.mxu0 0
        %597 = vmatprep.mubr.bf16.mxu0 0
        %598 = vmatmul.mubr.bf16.gmra.mrb[0].mxu0 %v563
        %v599 = vpop.f32.mrb[0].mxu0
        %v600 = vadd.f32 %v531, %v599
        %v601 = vpop.f32.mrb[0].mxu0
        %v602 = vpop.f32.mrb[0].mxu0
        %v603 = vadd.f32 %v531, %v602
        %v604 = vpop.f32.mrb[0].mxu0
        %605 = vdwg.mxu0
        %v606 = vld [vmem:[%s7] sm:$0xf]
        %v607 = vld [vmem:[%s7 + $0x4] sm:$0xf]
        %v608 = vld [vmem:[%s7 + $0x8] sm:$0xf]
        %v609 = vld [vmem:[%s7 + $0xc] sm:$0xf]
        %v610 = vld [vmem:[%s7 + $0x10] sm:$0xf]
        %v611 = vld [vmem:[%s7 + $0x14] sm:$0xf]
        %v612 = vld [vmem:[%s7 + $0x18] sm:$0xf]
        %v613 = vld [vmem:[%s7 + $0x1c] sm:$0xf]
        %v614 = vlaneseq
        %v615 = vshrl.u32 %v614, 7
        %v616 = vsub.s32 1, %v615
        %v617 = vrot.slane %v519, %v616
        %v626 = vunpack.c.l.b16 %v606
        %v627 = vunpack.c.l.b16 %v607
        %v628 = vunpack.c.l.b16 %v608
        %v629 = vunpack.c.l.b16 %v609
        %v630 = vunpack.c.l.b16 %v610
        %v631 = vunpack.c.l.b16 %v611
        %v632 = vunpack.c.l.b16 %v612
        %v633 = vunpack.c.l.b16 %v613
        %v634 = vpack.c.b16 %v627, %v626
        %v635 = vpack.c.b16 %v629, %v628
        %v636 = vpack.c.b16 %v631, %v630
        %v637 = vpack.c.b16 %v633, %v632
        %642 = vmatprep.subr.bf16.mxu0 0
        %643 = vmatpush1.bf16.msra.mxu0 %v634
        %644 = vmatprep.subr.bf16.mxu0 0
        %645 = vmatpush1.bf16.msra.mxu0 %v635
        %646 = vmatprep.subr.bf16.mxu0 0
        %647 = vmatpush1.bf16.msra.mxu0 %v636
        %648 = vmatprep.subr.bf16.mxu0 0
        %649 = vmatpush1.bf16.msra.mxu0 %v637
        %650 = vmatprep.subr.bf16.mxu0 0
        %651 = vmatpush1.bf16.msra.mxu0 0
        %652 = vmatprep.subr.bf16.mxu0 0
        %653 = vmatpush1.bf16.msra.mxu0 0
        %654 = vmatprep.subr.bf16.mxu0 0
        %655 = vmatpush1.bf16.msra.mxu0 0
        %656 = vmatprep.subr.bf16.mxu0 0
        %657 = vmatpush1.bf16.msra.mxu0 0
        %658 = vmatprep.subr.bf16.mxu0 0
        %659 = vmatpush1.bf16.msra.mxu0 0
        %660 = vmatprep.subr.bf16.mxu0 0
        %661 = vmatpush1.bf16.msra.mxu0 0
        %662 = vmatprep.subr.bf16.mxu0 0
        %663 = vmatpush1.bf16.msra.mxu0 0
        %664 = vmatprep.subr.bf16.mxu0 0
        %665 = vmatpush1.bf16.msra.mxu0 0
        %666 = vmatprep.subr.bf16.mxu0 0
        %667 = vmatpush1.bf16.msra.mxu0 0
        %668 = vmatprep.subr.bf16.mxu0 0
        %669 = vmatpush1.bf16.msra.mxu0 0
        %670 = vmatprep.subr.bf16.mxu0 0
        %671 = vmatpush1.bf16.msra.mxu0 0
        %672 = vmatprep.subr.bf16.mxu0 0
        %673 = vmatpush1.bf16.msra.mxu0 0
        %674 = vmatprep.mubr.bf16.mxu0 0
        %675 = vmatmul.mubr.bf16.gmra.mrb[0].mxu0 %v563
        %v676 = vpop.f32.mrb[0].mxu0
        %v677 = vadd.f32 %v617, %v676
        %v678 = vpop.f32.mrb[0].mxu0
        %v679 = vpop.f32.mrb[0].mxu0
        %v680 = vadd.f32 %v617, %v679
        %v681 = vpop.f32.mrb[0].mxu0
        %682 = vdwg.mxu0
        %v683 = vpack.c.bf16 %v603, %v600
        %v684 = vpack.c.bf16 %v680, %v677
        %v693 = vunpack.c.l.b16 %v511
        %v694 = vunpack.c.l.b16 %v512
        %v695 = vunpack.c.l.b16 %v513
        %v696 = vunpack.c.l.b16 %v514
        %v697 = vunpack.c.l.b16 %v515
        %v698 = vunpack.c.l.b16 %v516
        %v699 = vunpack.c.l.b16 %v517
        %v700 = vunpack.c.l.b16 %v518
        %v701 = vpack.c.b16 %v694, %v693
        %v702 = vpack.c.b16 %v696, %v695
        %v703 = vpack.c.b16 %v698, %v697
        %v704 = vpack.c.b16 %v700, %v699
        %v706 = vsel %vm561, %v701, 0
        %v709 = vsel %vm561, %v702, 0
        %v712 = vsel %vm561, %v703, 0
        %v715 = vsel %vm561, %v704, 0
        %v718 = vsel %vm561, %v683, 0
        %720 = vmatprep.subr.bf16.mxu0 0
        %721 = vmatpush1.bf16.xpose.msra.mxu0 %v718
        %722 = vmatprep.subr.bf16.mxu0 0
        %723 = vmatpush1.bf16.xpose.msra.mxu0 0
        %724 = vmatprep.subr.bf16.mxu0 0
        %725 = vmatpush1.bf16.xpose.msra.mxu0 0
        %726 = vmatprep.subr.bf16.mxu0 0
        %727 = vmatpush1.bf16.xpose.msra.mxu0 0
        %728 = vmatprep.subr.bf16.mxu0 0
        %729 = vmatpush1.bf16.xpose.msra.mxu0 0
        %730 = vmatprep.subr.bf16.mxu0 0
        %731 = vmatpush1.bf16.xpose.msra.mxu0 0
        %732 = vmatprep.subr.bf16.mxu0 0
        %733 = vmatpush1.bf16.xpose.msra.mxu0 0
        %734 = vmatprep.subr.bf16.mxu0 0
        %735 = vmatpush1.bf16.xpose.msra.mxu0 0
        %736 = vmatprep.subr.bf16.mxu0 0
        %737 = vmatpush1.bf16.xpose.msra.mxu0 0
        %738 = vmatprep.subr.bf16.mxu0 0
        %739 = vmatpush1.bf16.xpose.msra.mxu0 0
        %740 = vmatprep.subr.bf16.mxu0 0
        %741 = vmatpush1.bf16.xpose.msra.mxu0 0
        %742 = vmatprep.subr.bf16.mxu0 0
        %743 = vmatpush1.bf16.xpose.msra.mxu0 0
        %744 = vmatprep.subr.bf16.mxu0 0
        %745 = vmatpush1.bf16.xpose.msra.mxu0 0
        %746 = vmatprep.subr.bf16.mxu0 0
        %747 = vmatpush1.bf16.xpose.msra.mxu0 0
        %748 = vmatprep.subr.bf16.mxu0 0
        %749 = vmatpush1.bf16.xpose.msra.mxu0 0
        %750 = vmatprep.subr.bf16.mxu0 0
        %751 = vmatpush1.bf16.xpose.msra.mxu0 0
        %752 = vmatprep.mubr.bf16.mxu0 0
        %753 = vmatmul.mubr.bf16.gmra.mrb[0].mxu0 %v706
        %v754 = vpop.f32.mrb[0].mxu0
        %v755 = vadd.f32 0.0, %v754
        %v756 = vpop.f32.mrb[0].mxu0
        %v757 = vpop.f32.mrb[0].mxu0
        %v758 = vadd.f32 0.0, %v757
        %v759 = vpop.f32.mrb[0].mxu0
        %760 = vmatprep.mubr.bf16.mxu0 0
        %761 = vmatmul.mubr.bf16.gmra.mrb[0].mxu0 %v709
        %v762 = vpop.f32.mrb[0].mxu0
        %v763 = vadd.f32 0.0, %v762
        %v764 = vpop.f32.mrb[0].mxu0
        %v765 = vpop.f32.mrb[0].mxu0
        %v766 = vadd.f32 0.0, %v765
        %v767 = vpop.f32.mrb[0].mxu0
        %768 = vmatprep.mubr.bf16.mxu0 0
        %769 = vmatmul.mubr.bf16.gmra.mrb[0].mxu0 %v712
        %v770 = vpop.f32.mrb[0].mxu0
        %v771 = vadd.f32 0.0, %v770
        %v772 = vpop.f32.mrb[0].mxu0
        %v773 = vpop.f32.mrb[0].mxu0
        %v774 = vadd.f32 0.0, %v773
        %v775 = vpop.f32.mrb[0].mxu0
        %776 = vmatprep.mubr.bf16.mxu0 0
        %777 = vmatmul.mubr.bf16.gmra.mrb[0].mxu0 %v715
        %v778 = vpop.f32.mrb[0].mxu0
        %v779 = vadd.f32 0.0, %v778
        %v780 = vpop.f32.mrb[0].mxu0
        %v781 = vpop.f32.mrb[0].mxu0
        %v782 = vadd.f32 0.0, %v781
        %v783 = vpop.f32.mrb[0].mxu0
        %784 = vdwg.mxu0
        %v785 = vmul.f32 %v755, 0.35355338
        %v786 = vmul.f32 %v758, 0.35355338
        %v787 = vmul.f32 %v763, 0.35355338
        %v788 = vmul.f32 %v766, 0.35355338
        %v789 = vmul.f32 %v771, 0.35355338
        %v790 = vmul.f32 %v774, 0.35355338
        %v791 = vmul.f32 %v779, 0.35355338
        %v792 = vmul.f32 %v782, 0.35355338
        %v794 = vlaneseq
        %v795 = vshrl.u32 %v794, 7
        %v796 = vsub.s32 0, %v795
        %v797 = vrot.slane %v510, %v796
        %v799 = vadd.f32 %v785, %v797
        %v800 = vadd.f32 %v786, %v797
        %v801 = vadd.f32 %v787, %v797
        %v802 = vadd.f32 %v788, %v797
        %v803 = vadd.f32 %v789, %v797
        %v804 = vadd.f32 %v790, %v797
        %v805 = vadd.f32 %v791, %v797
        %v806 = vadd.f32 %v792, %v797
        %vm807 = vcmask 130048
        %v808 = vsel %vm807, %v799, -inf
        %809 = vmax.xlane.f32.xlu0 %v808
        %v810 = vpop.xlane.xlu0 %809
        %v811 = vsel %vm807, %v800, -inf
        %812 = vmax.xlane.f32.xlu0 %v811
        %v813 = vpop.xlane.xlu0 %812
        %v814 = vsel %vm807, %v801, -inf
        %815 = vmax.xlane.f32.xlu0 %v814
        %v816 = vpop.xlane.xlu0 %815
        %v817 = vsel %vm807, %v802, -inf
        %818 = vmax.xlane.f32.xlu0 %v817
        %v819 = vpop.xlane.xlu0 %818
        %v820 = vsel %vm807, %v803, -inf
        %821 = vmax.xlane.f32.xlu0 %v820
        %v822 = vpop.xlane.xlu0 %821
        %v823 = vsel %vm807, %v804, -inf
        %824 = vmax.xlane.f32.xlu0 %v823
        %v825 = vpop.xlane.xlu0 %824
        %v826 = vsel %vm807, %v805, -inf
        %827 = vmax.xlane.f32.xlu0 %v826
        %v828 = vpop.xlane.xlu0 %827
        %v829 = vsel %vm807, %v806, -inf
        %830 = vmax.xlane.f32.xlu0 %v829
        %v831 = vpop.xlane.xlu0 %830
        %v832 = vsub.f32 %v799, %v810
        %v833 = vsub.f32 %v800, %v813
        %v834 = vsub.f32 %v801, %v816
        %v835 = vsub.f32 %v802, %v819
        %v836 = vsub.f32 %v803, %v822
        %v837 = vsub.f32 %v804, %v825
        %v838 = vsub.f32 %v805, %v828
        %v839 = vsub.f32 %v806, %v831
        %v840 = vmul.f32 %v832, 1.442695
        %v841 = vpow.pop %v840
        %v842 = vmul.f32 %v833, 1.442695
        %v843 = vpow.pop %v842
        %v844 = vmul.f32 %v834, 1.442695
        %v845 = vpow.pop %v844
        %v846 = vmul.f32 %v835, 1.442695
        %v847 = vpow.pop %v846
        %v848 = vmul.f32 %v836, 1.442695
        %v849 = vpow.pop %v848
        %v850 = vmul.f32 %v837, 1.442695
        %v851 = vpow.pop %v850
        %v852 = vmul.f32 %v838, 1.442695
        %v853 = vpow.pop %v852
        %v854 = vmul.f32 %v839, 1.442695
        %v855 = vpow.pop %v854
        %v856 = vsel %vm807, %v841, 0.0
        %857 = vadd.xlane.f32.xlu0 %v856
        %v858 = vpop.xlane.xlu0 %857
        %v859 = vsel %vm807, %v843, 0.0
        %860 = vadd.xlane.f32.xlu0 %v859
        %v861 = vpop.xlane.xlu0 %860
        %v862 = vsel %vm807, %v845, 0.0
        %863 = vadd.xlane.f32.xlu0 %v862
        %v864 = vpop.xlane.xlu0 %863
        %v865 = vsel %vm807, %v847, 0.0
        %866 = vadd.xlane.f32.xlu0 %v865
        %v867 = vpop.xlane.xlu0 %866
        %v868 = vsel %vm807, %v849, 0.0
        %869 = vadd.xlane.f32.xlu0 %v868
        %v870 = vpop.xlane.xlu0 %869
        %v871 = vsel %vm807, %v851, 0.0
        %872 = vadd.xlane.f32.xlu0 %v871
        %v873 = vpop.xlane.xlu0 %872
        %v874 = vsel %vm807, %v853, 0.0
        %875 = vadd.xlane.f32.xlu0 %v874
        %v876 = vpop.xlane.xlu0 %875
        %v877 = vsel %vm807, %v855, 0.0
        %878 = vadd.xlane.f32.xlu0 %v877
        %v879 = vpop.xlane.xlu0 %878
        %v880 = vrcp.pop %v858
        %v881 = vrcp.pop %v861
        %v882 = vrcp.pop %v864
        %v883 = vrcp.pop %v867
        %v884 = vrcp.pop %v870
        %v885 = vrcp.pop %v873
        %v886 = vrcp.pop %v876
        %v887 = vrcp.pop %v879
        %v888 = vmul.f32 %v841, %v880
        %v889 = vmul.f32 %v843, %v881
        %v890 = vmul.f32 %v845, %v882
        %v891 = vmul.f32 %v847, %v883
        %v892 = vmul.f32 %v849, %v884
        %v893 = vmul.f32 %v851, %v885
        %v894 = vmul.f32 %v853, %v886
        %v895 = vmul.f32 %v855, %v887
        %v896 = vmul.f32 %v888, 0.5
        %v897 = vmul.f32 %v889, 0.5
        %v898 = vmul.f32 %v890, 0.5
        %v899 = vmul.f32 %v891, 0.5
        %v900 = vmul.f32 %v892, 0.5
        %v901 = vmul.f32 %v893, 0.5
        %v902 = vmul.f32 %v894, 0.5
        %v903 = vmul.f32 %v895, 0.5
        %v904 = vld [vmem:[%s454] sm:$0x1]
        %v906 = vlaneseq
        %v907 = vshrl.u32 %v906, 7
        %v908 = vsub.s32 0, %v907
        %v909 = vrot.slane %v904, %v908
        %v911 = vadd.f32 %v896, %v909
        %v912 = vadd.f32 %v897, %v909
        %v913 = vadd.f32 %v898, %v909
        %v914 = vadd.f32 %v899, %v909
        %v915 = vadd.f32 %v900, %v909
        %v916 = vadd.f32 %v901, %v909
        %v917 = vadd.f32 %v902, %v909
        %v918 = vadd.f32 %v903, %v909
        %v919 = vsel %vm807, %v911, 0.0
        %920 = vadd.xlane.f32.xlu0 %v919
        %v921 = vpop.xlane.xlu0 %920
        %v922 = vsel %vm807, %v912, 0.0
        %923 = vadd.xlane.f32.xlu0 %v922
        %v924 = vpop.xlane.xlu0 %923
        %v925 = vsel %vm807, %v913, 0.0
        %926 = vadd.xlane.f32.xlu0 %v925
        %v927 = vpop.xlane.xlu0 %926
        %v928 = vsel %vm807, %v914, 0.0
        %929 = vadd.xlane.f32.xlu0 %v928
        %v930 = vpop.xlane.xlu0 %929
        %v931 = vsel %vm807, %v915, 0.0
        %932 = vadd.xlane.f32.xlu0 %v931
        %v933 = vpop.xlane.xlu0 %932
        %v934 = vsel %vm807, %v916, 0.0
        %935 = vadd.xlane.f32.xlu0 %v934
        %v936 = vpop.xlane.xlu0 %935
        %v937 = vsel %vm807, %v917, 0.0
        %938 = vadd.xlane.f32.xlu0 %v937
        %v939 = vpop.xlane.xlu0 %938
        %v940 = vsel %vm807, %v918, 0.0
        %941 = vadd.xlane.f32.xlu0 %v940
        %v942 = vpop.xlane.xlu0 %941
        %v943 = vadd.f32 %v921, 1e-09
        %v944 = vadd.f32 %v924, 1e-09
        %v945 = vadd.f32 %v927, 1e-09
        %v946 = vadd.f32 %v930, 1e-09
        %v947 = vadd.f32 %v933, 1e-09
        %v948 = vadd.f32 %v936, 1e-09
        %v949 = vadd.f32 %v939, 1e-09
        %v950 = vadd.f32 %v942, 1e-09
        %v951 = vrcp.pop %v943
        %v952 = vrcp.pop %v944
        %v953 = vrcp.pop %v945
        %v954 = vrcp.pop %v946
        %v955 = vrcp.pop %v947
        %v956 = vrcp.pop %v948
        %v957 = vrcp.pop %v949
        %v958 = vrcp.pop %v950
        %v959 = vmul.f32 %v911, %v951
        %v960 = vmul.f32 %v912, %v952
        %v961 = vmul.f32 %v913, %v953
        %v962 = vmul.f32 %v914, %v954
        %v963 = vmul.f32 %v915, %v955
        %v964 = vmul.f32 %v916, %v956
        %v965 = vmul.f32 %v917, %v957
        %v966 = vmul.f32 %v918, %v958
        %v967 = vpack.c.bf16 %v960, %v959
        %v968 = vpack.c.bf16 %v962, %v961
        %v969 = vpack.c.bf16 %v964, %v963
        %v970 = vpack.c.bf16 %v966, %v965
        %v972 = vsel %vm807, %v967, 0
        %v975 = vsel %vm807, %v968, 0
        %v978 = vsel %vm807, %v969, 0
        %v981 = vsel %vm807, %v970, 0
        %983 = vmatprep.subr.bf16.mxu0 0
        %984 = vmatpush1.bf16.msra.mxu0 %v684
        %985 = vmatprep.subr.bf16.mxu0 0
        %986 = vmatpush1.bf16.msra.mxu0 0
        %987 = vmatprep.subr.bf16.mxu0 0
        %988 = vmatpush1.bf16.msra.mxu0 0
        %989 = vmatprep.subr.bf16.mxu0 0
        %990 = vmatpush1.bf16.msra.mxu0 0
        %991 = vmatprep.subr.bf16.mxu0 0
        %992 = vmatpush1.bf16.msra.mxu0 0
        %993 = vmatprep.subr.bf16.mxu0 0
        %994 = vmatpush1.bf16.msra.mxu0 0
        %995 = vmatprep.subr.bf16.mxu0 0
        %996 = vmatpush1.bf16.msra.mxu0 0
        %997 = vmatprep.subr.bf16.mxu0 0
        %998 = vmatpush1.bf16.msra.mxu0 0
        %999 = vmatprep.subr.bf16.mxu0 0
        %1000 = vmatpush1.bf16.msra.mxu0 0
        %1001 = vmatprep.subr.bf16.mxu0 0
        %1002 = vmatpush1.bf16.msra.mxu0 0
        %1003 = vmatprep.subr.bf16.mxu0 0
        %1004 = vmatpush1.bf16.msra.mxu0 0
        %1005 = vmatprep.subr.bf16.mxu0 0
        %1006 = vmatpush1.bf16.msra.mxu0 0
        %1007 = vmatprep.subr.bf16.mxu0 0
        %1008 = vmatpush1.bf16.msra.mxu0 0
        %1009 = vmatprep.subr.bf16.mxu0 0
        %1010 = vmatpush1.bf16.msra.mxu0 0
        %1011 = vmatprep.subr.bf16.mxu0 0
        %1012 = vmatpush1.bf16.msra.mxu0 0
        %1013 = vmatprep.subr.bf16.mxu0 0
        %1014 = vmatpush1.bf16.msra.mxu0 0
        %1015 = vmatprep.mubr.bf16.mxu0 0
        %1016 = vmatmul.mubr.bf16.gmra.mrb[0].mxu0 %v972
        %v1017 = vpop.f32.mrb[0].mxu0
        %v1018 = vadd.f32 0.0, %v1017
        %v1019 = vpop.f32.mrb[0].mxu0
        %v1020 = vpop.f32.mrb[0].mxu0
        %v1021 = vadd.f32 0.0, %v1020
        %v1022 = vpop.f32.mrb[0].mxu0
        %1023 = vmatprep.mubr.bf16.mxu0 0
        %1024 = vmatmul.mubr.bf16.gmra.mrb[0].mxu0 %v975
        %v1025 = vpop.f32.mrb[0].mxu0
        %v1026 = vadd.f32 0.0, %v1025
        %v1027 = vpop.f32.mrb[0].mxu0
        %v1028 = vpop.f32.mrb[0].mxu0
        %v1029 = vadd.f32 0.0, %v1028
        %v1030 = vpop.f32.mrb[0].mxu0
        %1031 = vmatprep.mubr.bf16.mxu0 0
        %1032 = vmatmul.mubr.bf16.gmra.mrb[0].mxu0 %v978
        %v1033 = vpop.f32.mrb[0].mxu0
        %v1034 = vadd.f32 0.0, %v1033
        %v1035 = vpop.f32.mrb[0].mxu0
        %v1036 = vpop.f32.mrb[0].mxu0
        %v1037 = vadd.f32 0.0, %v1036
        %v1038 = vpop.f32.mrb[0].mxu0
        %1039 = vmatprep.mubr.bf16.mxu0 0
        %1040 = vmatmul.mubr.bf16.gmra.mrb[0].mxu0 %v981
        %v1041 = vpop.f32.mrb[0].mxu0
        %v1042 = vadd.f32 0.0, %v1041
        %v1043 = vpop.f32.mrb[0].mxu0
        %v1044 = vpop.f32.mrb[0].mxu0
        %v1045 = vadd.f32 0.0, %v1044
        %v1046 = vpop.f32.mrb[0].mxu0
        %1047 = vdwg.mxu0
        %v1048 = vld [vmem:[%s5] sm:$0x1]
        %v1049 = vld [vmem:[%s5 + $0x1] sm:$0x1]
        %v1050 = vld [vmem:[%s5 + $0x2] sm:$0x1]
        %v1051 = vld [vmem:[%s5 + $0x3] sm:$0x1]
        %v1052 = vld [vmem:[%s5 + $0x4] sm:$0x1]
        %v1053 = vld [vmem:[%s5 + $0x5] sm:$0x1]
        %v1054 = vld [vmem:[%s5 + $0x6] sm:$0x1]
        %v1055 = vld [vmem:[%s5 + $0x7] sm:$0x1]
        %v1064 = vlaneseq
        %v1065 = vshrl.u32 %v1064, 7
        %v1066 = vsub.s32 0, %v1065
        %v1067 = vrot.slane %v1048, %v1066
        %v1068 = vlaneseq
        %v1069 = vshrl.u32 %v1068, 7
        %v1070 = vsub.s32 0, %v1069
        %v1071 = vrot.slane %v1049, %v1070
        %v1072 = vlaneseq
        %v1073 = vshrl.u32 %v1072, 7
        %v1074 = vsub.s32 0, %v1073
        %v1075 = vrot.slane %v1050, %v1074
        %v1076 = vlaneseq
        %v1077 = vshrl.u32 %v1076, 7
        %v1078 = vsub.s32 0, %v1077
        %v1079 = vrot.slane %v1051, %v1078
        %v1080 = vlaneseq
        %v1081 = vshrl.u32 %v1080, 7
        %v1082 = vsub.s32 0, %v1081
        %v1083 = vrot.slane %v1052, %v1082
        %v1084 = vlaneseq
        %v1085 = vshrl.u32 %v1084, 7
        %v1086 = vsub.s32 0, %v1085
        %v1087 = vrot.slane %v1053, %v1086
        %v1088 = vlaneseq
        %v1089 = vshrl.u32 %v1088, 7
        %v1090 = vsub.s32 0, %v1089
        %v1091 = vrot.slane %v1054, %v1090
        %v1092 = vlaneseq
        %v1093 = vshrl.u32 %v1092, 7
        %v1094 = vsub.s32 0, %v1093
        %v1095 = vrot.slane %v1055, %v1094
        %v1104 = vmul.f32 %v1018, %v1067
        %v1105 = vmul.f32 %v1021, %v1071
        %v1106 = vmul.f32 %v1026, %v1075
        %v1107 = vmul.f32 %v1029, %v1079
        %v1108 = vmul.f32 %v1034, %v1083
        %v1109 = vmul.f32 %v1037, %v1087
        %v1110 = vmul.f32 %v1042, %v1091
        %v1111 = vmul.f32 %v1045, %v1095
        %v1112 = vsel %vm561, %v1104, 0.0
        %v1113 = vsel %vm561, %v1105, 0.0
        %v1114 = vadd.f32 %v1112, %v1113
        %v1115 = vsel %vm561, %v1106, 0.0
        %v1116 = vadd.f32 %v1114, %v1115
        %v1117 = vsel %vm561, %v1107, 0.0
        %v1118 = vadd.f32 %v1116, %v1117
        %v1119 = vsel %vm561, %v1108, 0.0
        %v1120 = vadd.f32 %v1118, %v1119
        %v1121 = vsel %vm561, %v1109, 0.0
        %v1122 = vadd.f32 %v1120, %v1121
        %v1123 = vsel %vm561, %v1110, 0.0
        %v1124 = vadd.f32 %v1122, %v1123
        %v1125 = vsel %vm561, %v1111, 0.0
        %v1126 = vadd.f32 %v1124, %v1125
        %v1127 = vpack.c.bf16 %v1126, %v1126
        %v1128 = vld [vmem:[%s8] sm:$0xf]
        %v1129 = vld [vmem:[%s8 + $0x4] sm:$0xf]
        %v1130 = vld [vmem:[%s8 + $0x8] sm:$0xf]
        %v1131 = vld [vmem:[%s8 + $0xc] sm:$0xf]
        %v1132 = vld [vmem:[%s8 + $0x10] sm:$0xf]
        %v1133 = vld [vmem:[%s8 + $0x14] sm:$0xf]
        %v1134 = vld [vmem:[%s8 + $0x18] sm:$0xf]
        %v1135 = vld [vmem:[%s8 + $0x1c] sm:$0xf]
        %v1136 = vlaneseq
        %v1137 = vshrl.u32 %v1136, 7
        %v1138 = vsub.s32 2, %v1137
        %v1139 = vrot.slane %v519, %v1138
        %v1148 = vunpack.c.l.b16 %v1128
        %v1149 = vunpack.c.l.b16 %v1129
        %v1150 = vunpack.c.l.b16 %v1130
        %v1151 = vunpack.c.l.b16 %v1131
        %v1152 = vunpack.c.l.b16 %v1132
        %v1153 = vunpack.c.l.b16 %v1133
        %v1154 = vunpack.c.l.b16 %v1134
        %v1155 = vunpack.c.l.b16 %v1135
        %v1156 = vpack.c.b16 %v1149, %v1148
        %v1157 = vpack.c.b16 %v1151, %v1150
        %v1158 = vpack.c.b16 %v1153, %v1152
        %v1159 = vpack.c.b16 %v1155, %v1154
        %v1165 = vsel %vm561, %v1127, 0
        %1167 = vmatprep.subr.bf16.mxu0 0
        %1168 = vmatpush1.bf16.msra.mxu0 %v1156
        %1169 = vmatprep.subr.bf16.mxu0 0
        %1170 = vmatpush1.bf16.msra.mxu0 %v1157
        %1171 = vmatprep.subr.bf16.mxu0 0
        %1172 = vmatpush1.bf16.msra.mxu0 %v1158
        %1173 = vmatprep.subr.bf16.mxu0 0
        %1174 = vmatpush1.bf16.msra.mxu0 %v1159
        %1175 = vmatprep.subr.bf16.mxu0 0
        %1176 = vmatpush1.bf16.msra.mxu0 0
        %1177 = vmatprep.subr.bf16.mxu0 0
        %1178 = vmatpush1.bf16.msra.mxu0 0
        %1179 = vmatprep.subr.bf16.mxu0 0
        %1180 = vmatpush1.bf16.msra.mxu0 0
        %1181 = vmatprep.subr.bf16.mxu0 0
        %1182 = vmatpush1.bf16.msra.mxu0 0
        %1183 = vmatprep.subr.bf16.mxu0 0
        %1184 = vmatpush1.bf16.msra.mxu0 0
        %1185 = vmatprep.subr.bf16.mxu0 0
        %1186 = vmatpush1.bf16.msra.mxu0 0
        %1187 = vmatprep.subr.bf16.mxu0 0
        %1188 = vmatpush1.bf16.msra.mxu0 0
        %1189 = vmatprep.subr.bf16.mxu0 0
        %1190 = vmatpush1.bf16.msra.mxu0 0
        %1191 = vmatprep.subr.bf16.mxu0 0
        %1192 = vmatpush1.bf16.msra.mxu0 0
        %1193 = vmatprep.subr.bf16.mxu0 0
        %1194 = vmatpush1.bf16.msra.mxu0 0
        %1195 = vmatprep.subr.bf16.mxu0 0
        %1196 = vmatpush1.bf16.msra.mxu0 0
        %1197 = vmatprep.subr.bf16.mxu0 0
        %1198 = vmatpush1.bf16.msra.mxu0 0
        %1199 = vmatprep.mubr.bf16.mxu0 0
        %1200 = vmatmul.mubr.bf16.gmra.mrb[0].mxu0 %v1165
        %v1201 = vpop.f32.mrb[0].mxu0
        %v1202 = vadd.f32 %v1139, %v1201
        %v1203 = vpop.f32.mrb[0].mxu0
        %v1204 = vpop.f32.mrb[0].mxu0
        %v1205 = vpop.f32.mrb[0].mxu0
        %1206 = vdwg.mxu0
        %v1207 = vld [vmem:[%s4] sm:$0xff]
        %v1208 = vadd.f32 %v1202, %v1207
        %v1209 = vsel %vm561, %v1208, 0.0
        %1210 = vadd.xlane.f32.xlu0 %v1209
        %v1211 = vpop.xlane.xlu0 %1210
        %v1212 = vrcp.pop 64.0
        %v1213 = vmul.f32 %v1211, %v1212
        %v1214 = vsub.f32 %v1208, %v1213
        %v1215 = vmul.f32 %v1214, %v1214
        %v1216 = vsel %vm561, %v1215, 0.0
        %1217 = vadd.xlane.f32.xlu0 %v1216
        %v1218 = vpop.xlane.xlu0 %1217
        %v1219 = vmul.f32 %v1218, %v1212
        %v1220 = vadd.f32 %v1219, 1e-05
        %v1221 = vrsqrt.pop %v1220
        %v1222 = vmul.f32 %v1214, %v1221
        %v1223 = vlaneseq
        %v1224 = vshrl.u32 %v1223, 7
        %v1225 = vsub.s32 3, %v1224
        %v1226 = vrot.slane %v519, %v1225
        %v1227 = vmul.f32 %v1222, %v1226
        %v1228 = vlaneseq
        %v1229 = vshrl.u32 %v1228, 7
        %v1230 = vsub.s32 4, %v1229
        %v1231 = vrot.slane %v519, %v1230
        %v1232 = vadd.f32 %v1227, %v1231
        %v1233 = vpack.c.bf16 %v1232, %v1232
        %v1234 = vld [vmem:[%s9] sm:$0xff]
        %v1235 = vld [vmem:[%s9 + $0x8] sm:$0xff]
        %v1236 = vld [vmem:[%s9 + $0x10] sm:$0xff]
        %v1237 = vld [vmem:[%s9 + $0x18] sm:$0xff]
        %v1238 = vld [vmem:[%s9 + $0x20] sm:$0xff]
        %v1239 = vld [vmem:[%s9 + $0x28] sm:$0xff]
        %v1240 = vld [vmem:[%s9 + $0x30] sm:$0xff]
        %v1241 = vld [vmem:[%s9 + $0x38] sm:$0xff]
        %v1242 = vld [vmem:[%s11] sm:$0x3]
        %v1244 = vlaneseq
        %v1245 = vshrl.u32 %v1244, 7
        %v1246 = vsub.s32 0, %v1245
        %v1247 = vrot.slane %v1242, %v1246
        %v1248 = vlaneseq
        %v1249 = vshrl.u32 %v1248, 7
        %v1250 = vsub.s32 1, %v1249
        %v1251 = vrot.slane %v1242, %v1250
        %v1262 = vunpack.c.l.b16 %v1234
        %v1263 = vunpack.c.h.b16 %v1234
        %v1264 = vunpack.c.l.b16 %v1235
        %v1265 = vunpack.c.h.b16 %v1235
        %v1266 = vunpack.c.l.b16 %v1236
        %v1267 = vunpack.c.h.b16 %v1236
        %v1268 = vunpack.c.l.b16 %v1237
        %v1269 = vunpack.c.h.b16 %v1237
        %v1270 = vunpack.c.l.b16 %v1238
        %v1271 = vunpack.c.h.b16 %v1238
        %v1272 = vunpack.c.l.b16 %v1239
        %v1273 = vunpack.c.h.b16 %v1239
        %v1274 = vunpack.c.l.b16 %v1240
        %v1275 = vunpack.c.h.b16 %v1240
        %v1276 = vunpack.c.l.b16 %v1241
        %v1277 = vunpack.c.h.b16 %v1241
        %v1278 = vpack.c.b16 %v1264, %v1262
        %v1279 = vpack.c.b16 %v1265, %v1263
        %v1280 = vpack.c.b16 %v1268, %v1266
        %v1281 = vpack.c.b16 %v1269, %v1267
        %v1282 = vpack.c.b16 %v1272, %v1270
        %v1283 = vpack.c.b16 %v1273, %v1271
        %v1284 = vpack.c.b16 %v1276, %v1274
        %v1285 = vpack.c.b16 %v1277, %v1275
        %v1295 = vsel %vm561, %v1233, 0
        %1297 = vmatprep.subr.bf16.mxu0 %v1279
        %1298 = vmatpush1.bf16.msra.mxu0 %v1278
        %1299 = vmatprep.subr.bf16.mxu0 %v1281
        %1300 = vmatpush1.bf16.msra.mxu0 %v1280
        %1301 = vmatprep.subr.bf16.mxu0 %v1283
        %1302 = vmatpush1.bf16.msra.mxu0 %v1282
        %1303 = vmatprep.subr.bf16.mxu0 %v1285
        %1304 = vmatpush1.bf16.msra.mxu0 %v1284
        %1305 = vmatprep.subr.bf16.mxu0 0
        %1306 = vmatpush1.bf16.msra.mxu0 0
        %1307 = vmatprep.subr.bf16.mxu0 0
        %1308 = vmatpush1.bf16.msra.mxu0 0
        %1309 = vmatprep.subr.bf16.mxu0 0
        %1310 = vmatpush1.bf16.msra.mxu0 0
        %1311 = vmatprep.subr.bf16.mxu0 0
        %1312 = vmatpush1.bf16.msra.mxu0 0
        %1313 = vmatprep.subr.bf16.mxu0 0
        %1314 = vmatpush1.bf16.msra.mxu0 0
        %1315 = vmatprep.subr.bf16.mxu0 0
        %1316 = vmatpush1.bf16.msra.mxu0 0
        %1317 = vmatprep.subr.bf16.mxu0 0
        %1318 = vmatpush1.bf16.msra.mxu0 0
        %1319 = vmatprep.subr.bf16.mxu0 0
        %1320 = vmatpush1.bf16.msra.mxu0 0
        %1321 = vmatprep.subr.bf16.mxu0 0
        %1322 = vmatpush1.bf16.msra.mxu0 0
        %1323 = vmatprep.subr.bf16.mxu0 0
        %1324 = vmatpush1.bf16.msra.mxu0 0
        %1325 = vmatprep.subr.bf16.mxu0 0
        %1326 = vmatpush1.bf16.msra.mxu0 0
        %1327 = vmatprep.subr.bf16.mxu0 0
        %1328 = vmatpush1.bf16.msra.mxu0 0
        %1329 = vmatprep.mubr.bf16.mxu0 0
        %1330 = vmatmul.mubr.bf16.gmra.mrb[0].mxu0 %v1295
        %v1331 = vpop.f32.mrb[0].mxu0
        %v1332 = vadd.f32 %v1247, %v1331
        %v1333 = vpop.f32.mrb[0].mxu0
        %v1334 = vadd.f32 %v1251, %v1333
        %v1335 = vpop.f32.mrb[0].mxu0
        %v1336 = vpop.f32.mrb[0].mxu0
        %1337 = vdwg.mxu0
        %v1338 = vmax.f32 %v1332, 0.0
        %v1339 = vmax.f32 %v1334, 0.0
        %v1340 = vpack.c.bf16 %v1338, %v1338
        %v1341 = vpack.c.bf16 %v1339, %v1339
        %v1342 = vld [vmem:[%s10] sm:$0xf]
        %v1343 = vld [vmem:[%s10 + $0x4] sm:$0xf]
        %v1344 = vld [vmem:[%s10 + $0x8] sm:$0xf]
        %v1345 = vld [vmem:[%s10 + $0xc] sm:$0xf]
        %v1346 = vld [vmem:[%s10 + $0x10] sm:$0xf]
        %v1347 = vld [vmem:[%s10 + $0x14] sm:$0xf]
        %v1348 = vld [vmem:[%s10 + $0x18] sm:$0xf]
        %v1349 = vld [vmem:[%s10 + $0x1c] sm:$0xf]
        %v1350 = vld [vmem:[%s10 + $0x20] sm:$0xf]
        %v1351 = vld [vmem:[%s10 + $0x24] sm:$0xf]
        %v1352 = vld [vmem:[%s10 + $0x28] sm:$0xf]
        %v1353 = vld [vmem:[%s10 + $0x2c] sm:$0xf]
        %v1354 = vld [vmem:[%s10 + $0x30] sm:$0xf]
        %v1355 = vld [vmem:[%s10 + $0x34] sm:$0xf]
        %v1356 = vld [vmem:[%s10 + $0x38] sm:$0xf]
        %v1357 = vld [vmem:[%s10 + $0x3c] sm:$0xf]
        %v1358 = vld [vmem:[%s10 + $0x40] sm:$0xf]
        %v1359 = vld [vmem:[%s10 + $0x44] sm:$0xf]
        %v1360 = vld [vmem:[%s10 + $0x48] sm:$0xf]
        %v1361 = vld [vmem:[%s10 + $0x4c] sm:$0xf]
        %v1362 = vld [vmem:[%s10 + $0x50] sm:$0xf]
        %v1363 = vld [vmem:[%s10 + $0x54] sm:$0xf]
        %v1364 = vld [vmem:[%s10 + $0x58] sm:$0xf]
        %v1365 = vld [vmem:[%s10 + $0x5c] sm:$0xf]
        %v1366 = vld [vmem:[%s10 + $0x60] sm:$0xf]
        %v1367 = vld [vmem:[%s10 + $0x64] sm:$0xf]
        %v1368 = vld [vmem:[%s10 + $0x68] sm:$0xf]
        %v1369 = vld [vmem:[%s10 + $0x6c] sm:$0xf]
        %v1370 = vld [vmem:[%s10 + $0x70] sm:$0xf]
        %v1371 = vld [vmem:[%s10 + $0x74] sm:$0xf]
        %v1372 = vld [vmem:[%s10 + $0x78] sm:$0xf]
        %v1373 = vld [vmem:[%s10 + $0x7c] sm:$0xf]
        %v1374 = vlaneseq
        %v1375 = vshrl.u32 %v1374, 7
        %v1376 = vsub.s32 5, %v1375
        %v1377 = vrot.slane %v519, %v1376
        %v1410 = vunpack.c.l.b16 %v1342
        %v1411 = vunpack.c.l.b16 %v1343
        %v1412 = vunpack.c.l.b16 %v1344
        %v1413 = vunpack.c.l.b16 %v1345
        %v1414 = vunpack.c.l.b16 %v1346
        %v1415 = vunpack.c.l.b16 %v1347
        %v1416 = vunpack.c.l.b16 %v1348
        %v1417 = vunpack.c.l.b16 %v1349
        %v1418 = vunpack.c.l.b16 %v1350
        %v1419 = vunpack.c.l.b16 %v1351
        %v1420 = vunpack.c.l.b16 %v1352
        %v1421 = vunpack.c.l.b16 %v1353
        %v1422 = vunpack.c.l.b16 %v1354
        %v1423 = vunpack.c.l.b16 %v1355
        %v1424 = vunpack.c.l.b16 %v1356
        %v1425 = vunpack.c.l.b16 %v1357
        %v1426 = vunpack.c.l.b16 %v1358
        %v1427 = vunpack.c.l.b16 %v1359
        %v1428 = vunpack.c.l.b16 %v1360
        %v1429 = vunpack.c.l.b16 %v1361
        %v1430 = vunpack.c.l.b16 %v1362
        %v1431 = vunpack.c.l.b16 %v1363
        %v1432 = vunpack.c.l.b16 %v1364
        %v1433 = vunpack.c.l.b16 %v1365
        %v1434 = vunpack.c.l.b16 %v1366
        %v1435 = vunpack.c.l.b16 %v1367
        %v1436 = vunpack.c.l.b16 %v1368
        %v1437 = vunpack.c.l.b16 %v1369
        %v1438 = vunpack.c.l.b16 %v1370
        %v1439 = vunpack.c.l.b16 %v1371
        %v1440 = vunpack.c.l.b16 %v1372
        %v1441 = vunpack.c.l.b16 %v1373
        %v1442 = vpack.c.b16 %v1411, %v1410
        %v1443 = vpack.c.b16 %v1413, %v1412
        %v1444 = vpack.c.b16 %v1415, %v1414
        %v1445 = vpack.c.b16 %v1417, %v1416
        %v1446 = vpack.c.b16 %v1419, %v1418
        %v1447 = vpack.c.b16 %v1421, %v1420
        %v1448 = vpack.c.b16 %v1423, %v1422
        %v1449 = vpack.c.b16 %v1425, %v1424
        %v1450 = vpack.c.b16 %v1427, %v1426
        %v1451 = vpack.c.b16 %v1429, %v1428
        %v1452 = vpack.c.b16 %v1431, %v1430
        %v1453 = vpack.c.b16 %v1433, %v1432
        %v1454 = vpack.c.b16 %v1435, %v1434
        %v1455 = vpack.c.b16 %v1437, %v1436
        %v1456 = vpack.c.b16 %v1439, %v1438
        %v1457 = vpack.c.b16 %v1441, %v1440
        %1474 = vmatprep.subr.bf16.mxu0 0
        %1475 = vmatpush1.bf16.msra.mxu0 %v1442
        %1476 = vmatprep.subr.bf16.mxu0 0
        %1477 = vmatpush1.bf16.msra.mxu0 %v1443
        %1478 = vmatprep.subr.bf16.mxu0 0
        %1479 = vmatpush1.bf16.msra.mxu0 %v1444
        %1480 = vmatprep.subr.bf16.mxu0 0
        %1481 = vmatpush1.bf16.msra.mxu0 %v1445
        %1482 = vmatprep.subr.bf16.mxu0 0
        %1483 = vmatpush1.bf16.msra.mxu0 %v1446
        %1484 = vmatprep.subr.bf16.mxu0 0
        %1485 = vmatpush1.bf16.msra.mxu0 %v1447
        %1486 = vmatprep.subr.bf16.mxu0 0
        %1487 = vmatpush1.bf16.msra.mxu0 %v1448
        %1488 = vmatprep.subr.bf16.mxu0 0
        %1489 = vmatpush1.bf16.msra.mxu0 %v1449
        %1490 = vmatprep.subr.bf16.mxu0 0
        %1491 = vmatpush1.bf16.msra.mxu0 %v1450
        %1492 = vmatprep.subr.bf16.mxu0 0
        %1493 = vmatpush1.bf16.msra.mxu0 %v1451
        %1494 = vmatprep.subr.bf16.mxu0 0
        %1495 = vmatpush1.bf16.msra.mxu0 %v1452
        %1496 = vmatprep.subr.bf16.mxu0 0
        %1497 = vmatpush1.bf16.msra.mxu0 %v1453
        %1498 = vmatprep.subr.bf16.mxu0 0
        %1499 = vmatpush1.bf16.msra.mxu0 %v1454
        %1500 = vmatprep.subr.bf16.mxu0 0
        %1501 = vmatpush1.bf16.msra.mxu0 %v1455
        %1502 = vmatprep.subr.bf16.mxu0 0
        %1503 = vmatpush1.bf16.msra.mxu0 %v1456
        %1504 = vmatprep.subr.bf16.mxu0 0
        %1505 = vmatpush1.bf16.msra.mxu0 %v1457
        %1506 = vmatprep.mubr.bf16.mxu0 %v1341
        %1507 = vmatmul.mubr.bf16.gmra.mrb[0].mxu0 %v1340
        %v1508 = vpop.f32.mrb[0].mxu0
        %v1509 = vadd.f32 %v1377, %v1508
        %v1510 = vpop.f32.mrb[0].mxu0
        %v1511 = vpop.f32.mrb[0].mxu0
        %v1512 = vpop.f32.mrb[0].mxu0
        %1513 = vdwg.mxu0
        %v1514 = vadd.f32 %v1232, %v1509
        %v1515 = vsel %vm561, %v1514, 0.0
        %1516 = vadd.xlane.f32.xlu0 %v1515
        %v1517 = vpop.xlane.xlu0 %1516
        %v1518 = vmul.f32 %v1517, %v1212
        %v1519 = vsub.f32 %v1514, %v1518
        %v1520 = vmul.f32 %v1519, %v1519
        %v1521 = vsel %vm561, %v1520, 0.0
        %1522 = vadd.xlane.f32.xlu0 %v1521
        %v1523 = vpop.xlane.xlu0 %1522
        %v1524 = vmul.f32 %v1523, %v1212
        %v1525 = vadd.f32 %v1524, 1e-05
        %v1526 = vrsqrt.pop %v1525
        %v1527 = vmul.f32 %v1519, %v1526
        %v1528 = vlaneseq
        %v1529 = vshrl.u32 %v1528, 7
        %v1530 = vsub.s32 6, %v1529
        %v1531 = vrot.slane %v519, %v1530
        %v1532 = vmul.f32 %v1527, %v1531
        %v1533 = vlaneseq
        %v1534 = vshrl.u32 %v1533, 7
        %v1535 = vsub.s32 7, %v1534
        %v1536 = vrot.slane %v519, %v1535
        %v1537 = vadd.f32 %v1532, %v1536
        %1538 = vst.msk [vmem:[%s503] sm:$0xff] %vm561, %v1537
        %s1539 = sand.u32 %s329, 1
        %s1540 = scalar_lea.sflag [#allocation4], %s1539
        %s1541 = sand.u32 %s329, 1
        %s1542 = smul.addr %s1541, 8
        %s1543 = scalar_lea.vmem [#allocation7], %s1542
        // Predicated region
        $region81: #{tpu_custom_call.1} parent=71 // pred_check
          %p1544 = pneg %p339
        $region82: #{tpu_custom_call.1} parent=71 // pred_check_branch
          %1546 = sbr.rel (%p1544) target = $region84
        $region83: #{tpu_custom_call.1} parent=71 // pred_region
          %s1548 = ssub.s32 128, 128
          %1549 = vsyncadd %s1540, %s1548
          %s1550 = smul.addr %s33, 128
          %s1551 = scalar_lea.hbm %s13, %s1550
          %s1553 = sshll.u32 %s1543, 4
          %s1554 = int_to_ptr.vmem [resolvable:$true] %s1553
          %1556 = dma.vmem_to_hbm [thread:$0]  %s1554, 128, %s1551, %s1540
        $region84: #{tpu_custom_call.1} parent=71 // pred_fallthru
          _
      $region72: #{tpu_custom_call.1} parent=5 // pred_fallthru
        _
      %p1557 = scmp.le.s32.totalorder 2, %s28
      // Predicated region
      $region85: #{tpu_custom_call.1} parent=5 // pred_check
        %p1558 = pneg %p1557
      $region86: #{tpu_custom_call.1} parent=5 // pred_check_branch
        %1560 = sbr.rel (%p1558) target = $region88
      $region87: #{tpu_custom_call.1} parent=5 // pred_region
        %s1561 = ssub.s32 %s28, 2
        // Predicated region
        $region89: #{tpu_custom_call.1} parent=87 // pred_check
          %p1562 = pneg %p345
        $region90: #{tpu_custom_call.1} parent=87 // pred_check_branch
          %1564 = sbr.rel (%p1562) target = $region92
        $region91: #{tpu_custom_call.1} parent=87 // pred_region
          %s1565 = sand.u32 %s330, 1
          %s1566 = scalar_lea.sflag [#allocation4], %s1565
          %s1567 = sand.u32 %s330, 1
          %s1568 = smul.addr %s1567, 8
          %s1569 = scalar_lea.vmem [#allocation7], %s1568
          %1570 = dma.done %s1566, 128
        $region92: #{tpu_custom_call.1} parent=87 // pred_fallthru
          _
      $region88: #{tpu_custom_call.1} parent=5 // pred_fallthru
        _
    $region6: #{tpu_custom_call.1} parent=1 // loop_footer
      %s32 = sadd.s32 1, %s28
    $region7: #{tpu_custom_call.1} parent=1 // loop_footer_branch
      %27 = sbr.rel target = $region3
    $region8: #{tpu_custom_call.1} parent=1 // loop_exit
      _
    %1571 = vsyncpa [#allocation3], 1
    %s1572 = scalar_lea.sflag [#allocation3], 1
    %1573 = vsyncpa %s1572, 1
    %1574 = vsyncpa [#allocation6], 1
    %s1575 = scalar_lea.sflag [#allocation6], 1
    %1576 = vsyncpa %s1575, 1
    %1577 = vsyncpa [#allocation4], 1
    %s1578 = scalar_lea.sflag [#allocation4], 1
    %1579 = vsyncpa %s1578, 1

</llo_original>
